<compile_context>
chip_gen: v6e
topology: v6e:2x2x1
jax: 0.10.0
libtpu: 0.0.40
codegen_flags: <defaults>
</compile_context>

<pallas_src>
import math

import jax
import jax.numpy as jnp
from jax.experimental import pallas as pl
from jax.experimental.pallas import tpu as pltpu


def _round_up(x, m):
    return ((x + m - 1) // m) * m


# ------------------- fully fused stem + pool (one pallas_call) --------------------

def se_init_block_fused(x_nhwc, p1, p2, p3):
    """conv3x3(s2)+BN+ReLU -> conv3x3+BN+ReLU -> conv3x3+BN+ReLU -> maxpool3x3(s2,p1).

    Input NHWC f32, output NHWC f32 of shape (N, H//4, W//4, C3).  One grid step
    per image; all intermediates stay in VMEM.
    """
    N, H, W, Cin = x_nhwc.shape
    assert H % 4 == 0 and W % 4 == 0, "spatial dims must be divisible by 4"
    C1, C2, C3 = p1[0].shape[0], p2[0].shape[0], p3[0].shape[0]
    assert p2[0].shape[1] == C1 and p3[0].shape[1] == C2

    Ho, Wo = H // 2, W // 2                 # spatial size after conv1 (kept by conv2/3)
    Hpo, Wpo = Ho // 2, Wo // 2             # spatial size after the max pool

    # --- stride-2 conv1 via space-to-depth phases (no 9x im2col buffer) ---
    xpad = jnp.pad(x_nhwc, ((0, 0), (1, 1), (1, 1), (0, 0)))
    Hh, Wh = (H + 2) // 2, (W + 2) // 2     # per-phase spatial size
    L1 = Ho * Wh                            # conv1 flat output length (row stride Wh)
    Lph = _round_up(max(Hh * Wh, L1 + Wh + 1), 8)   # flat phase length + tap slack
    phases = []
    for py in (0, 1):
        for px in (0, 1):
            p = xpad[:, py::2, px::2, :].reshape(N, Hh * Wh, Cin)
            p = jnp.pad(p, ((0, 0), (0, Lph - Hh * Wh), (0, 0)))
            phases.append(p.astype(jnp.bfloat16))

    # --- weights: (Cout,Cin,3,3) -> (9,Cin,Cout), BN scale folded, bf16 ---
    def prep_w(w, scale):
        wt = jnp.transpose(w, (2, 3, 1, 0)).reshape(9, w.shape[1], w.shape[0])
        return (wt * scale[None, None, :]).astype(jnp.bfloat16)

    w1, b1 = prep_w(p1[0], p1[1]), p1[2].reshape(1, C1).astype(jnp.float32)
    w2, b2 = prep_w(p2[0], p2[1]), p2[2].reshape(1, C2).astype(jnp.float32)
    w3, b3 = prep_w(p3[0], p3[1]), p3[2].reshape(1, C3).astype(jnp.float32)

    # stride-1 conv flat geometry: padded rows of width Wp, output row stride Wp.
    Wp = Wo + 2
    Ls = Ho * Wp                            # flat conv2/conv3 output length
    Lbuf = _round_up(Ls + 2 * Wp + 2, 8)    # padded-input scratch length (+ tap slack)

    # max-pool flat geometry over the zero-padded conv3 image (rows of width Wp2).
    Wp2 = Wo + 2
    Lv = (Ho - 2) * Wp2 + Wo - 1            # highest flat index needed by the pool + 1
    Lv_pad = _round_up(Lv, 8)               # vertical-max slab length
    Lh = _round_up(Lv_pad + 2 * Wp2, 8)     # horizontal-max slab length
    Lpool = _round_up(max((Ho + 2) * Wp2, Lh + 2), 8)   # padded conv3 scratch length

    def stem_kernel(p00, p01, p10, p11, w1_ref, b1_ref, w2_ref, b2_ref,
                    w3_ref, b3_ref, o_ref, buf2, buf3, bufp, vbuf):
        ph = ((p00, p01), (p10, p11))

        # ---- conv1: 9 taps, each a contiguous slab of one stride-2 phase ----
        acc = jnp.zeros((L1, C1), jnp.float32)
        for dy in range(3):
            for dx in range(3):
                src = ph[dy % 2][dx % 2]
                off = (dy // 2) * Wh + (dx // 2)
                slab = src[0, off:off + L1, :]                 # bf16 (L1, Cin)
                acc = acc + jnp.dot(slab, w1_ref[dy * 3 + dx],
                                    preferred_element_type=jnp.float32)
        a1 = jnp.maximum(acc + b1_ref[...], 0.0)               # (L1, C1) f32

        # scatter valid columns into a zero-padded flat image in VMEM scratch
        # (buf2 = conv2 input: rows of width Wp with a one-pixel zero ring).
        buf2[...] = jnp.zeros_like(buf2)
        for r in range(Ho):
            dst = (r + 1) * Wp + 1
            buf2[dst:dst + Wo, :] = a1[r * Wh:r * Wh + Wo, :]

        # ---- conv2: 9 shifted slabs of buf2 ----
        acc = jnp.zeros((Ls, C2), jnp.float32)
        for dy in range(3):
            for dx in range(3):
                off = dy * Wp + dx
                slab = buf2[off:off + Ls, :].astype(jnp.bfloat16)
                acc = acc + jnp.dot(slab, w2_ref[dy * 3 + dx],
                                    preferred_element_type=jnp.float32)
        a2 = jnp.maximum(acc + b2_ref[...], 0.0)               # (Ls, C2) f32

        buf3[...] = jnp.zeros_like(buf3)
        for r in range(Ho):
            dst = (r + 1) * Wp + 1
            buf3[dst:dst + Wo, :] = a2[r * Wp:r * Wp + Wo, :]

        # ---- conv3: 9 shifted slabs of buf3 ----
        acc = jnp.zeros((Ls, C3), jnp.float32)
        for dy in range(3):
            for dx in range(3):
                off = dy * Wp + dx
                slab = buf3[off:off + Ls, :].astype(jnp.bfloat16)
                acc = acc + jnp.dot(slab, w3_ref[dy * 3 + dx],
                                    preferred_element_type=jnp.float32)
        a3 = jnp.maximum(acc + b3_ref[...], 0.0)               # (Ls, C3) f32

        # ---- maxpool 3x3 / stride 2 / pad 1, fully in VMEM ----
        # zero padding is equivalent to -inf padding because a3 >= 0 (post-ReLU)
        bufp[...] = jnp.zeros_like(bufp)
        for r in range(Ho):
            dst = (r + 1) * Wp2 + 1
            bufp[dst:dst + Wo, :] = a3[r * Wp:r * Wp + Wo, :]
        # separable running max: 3 columns horizontally, then 3 rows vertically
        hm = jnp.maximum(jnp.maximum(bufp[0:Lh, :], bufp[1:Lh + 1, :]),
                         bufp[2:Lh + 2, :])
        vm = jnp.maximum(jnp.maximum(hm[0:Lv_pad, :], hm[Wp2:Wp2 + Lv_pad, :]),
                         hm[2 * Wp2:2 * Wp2 + Lv_pad, :])
        vbuf[...] = vm
        # stride-2 row/column selection via strided loads from VMEM scratch
        for r in range(Hpo):
            o_ref[0, r, :, :] = vbuf[pl.ds(2 * r * Wp2, Wpo, stride=2), :]

    return pl.pallas_call(
        stem_kernel,
        out_shape=jax.ShapeDtypeStruct((N, Hpo, Wpo, C3), jnp.float32),
        grid=(N,),
        in_specs=[pl.BlockSpec((1, Lph, Cin), lambda n: (n, 0, 0))] * 4 + [
            pl.BlockSpec((9, Cin, C1), lambda n: (0, 0, 0)),
            pl.BlockSpec((1, C1), lambda n: (0, 0)),
            pl.BlockSpec((9, C1, C2), lambda n: (0, 0, 0)),
            pl.BlockSpec((1, C2), lambda n: (0, 0)),
            pl.BlockSpec((9, C2, C3), lambda n: (0, 0, 0)),
            pl.BlockSpec((1, C3), lambda n: (0, 0)),
        ],
        out_specs=pl.BlockSpec((1, Hpo, Wpo, C3), lambda n: (n, 0, 0, 0)),
        scratch_shapes=[pltpu.VMEM((Lbuf, C1), jnp.float32),
                        pltpu.VMEM((Lbuf, C2), jnp.float32),
                        pltpu.VMEM((Lpool, C3), jnp.float32),
                        pltpu.VMEM((Lv_pad, C3), jnp.float32)],
        compiler_params=pltpu.CompilerParams(dimension_semantics=("parallel",)),
    )(*phases, w1, b1, w2, b2, w3, b3)


# ---------------------------------- module ----------------------------------------

def se_init_block(x_nchw, p1, p2, p3):
    x = jnp.transpose(x_nchw, (0, 2, 3, 1))        # NCHW -> NHWC
    y = se_init_block_fused(x, p1, p2, p3)         # NHWC f32, pooled
    return jnp.transpose(y, (0, 3, 1, 2))          # NHWC -> NCHW


# -------------------- deterministic parameter construction ------------------------

def init_conv_block(key, cin, cout, eps=1e-5):
    kw, kg, kb, km, kv = jax.random.split(key, 5)
    w = jax.random.normal(kw, (cout, cin, 3, 3), jnp.float32) / math.sqrt(cin * 9)
    gamma = 1.0 + 0.1 * jax.random.normal(kg, (cout,), jnp.float32)
    beta = 0.1 * jax.random.normal(kb, (cout,), jnp.float32)
    mean = 0.1 * jax.random.normal(km, (cout,), jnp.float32)
    var = jnp.abs(jax.random.normal(kv, (cout,), jnp.float32)) + 0.5
    scale = gamma / jnp.sqrt(var + eps)            # folded BatchNorm (inference stats)
    bias = beta - mean * scale
    return w, scale, bias


# ------------------------------ pure-JAX reference --------------------------------

def ref_forward(x_nchw, params):
    x = x_nchw
    for (w, scale, bias), s in zip(params, (2, 1, 1)):
        x = jax.lax.conv_general_dilated(
            x, w, (s, s), ((1, 1), (1, 1)),
            dimension_numbers=("NCHW", "OIHW", "NCHW"),
            precision=jax.lax.Precision.HIGHEST)
        x = x * scale[None, :, None, None] + bias[None, :, None, None]
        x = jnp.maximum(x, 0.0)
    x = jax.lax.reduce_window(x, -jnp.inf, jax.lax.max,
                              (1, 1, 3, 3), (1, 1, 2, 2),
                              ((0, 0), (0, 0), (1, 1), (1, 1)))
    return x


# -------------------------------------- main --------------------------------------

if __name__ == "__main__":
    key = jax.random.PRNGKey(0)
    kx, k1, k2, k3 = jax.random.split(key, 4)

    in_channels, out_channels = 4, 32
    mid_channels = out_channels // 2
    x = jax.random.normal(kx, (2, in_channels, 16, 16), jnp.float32)  # NCHW

    p1 = init_conv_block(k1, in_channels, mid_channels)   # conv1, stride 2
    p2 = init_conv_block(k2, mid_channels, mid_channels)  # conv2
    p3 = init_conv_block(k3, mid_channels, out_channels)  # conv3

    fwd = jax.jit(se_init_block)
    out = jax.block_until_ready(fwd(x, p1, p2, p3))
    ref = ref_forward(x, [p1, p2, p3])

    assert out.shape == (2, out_channels, 4, 4), out.shape
    assert ref.shape == out.shape
    # bf16 MXU operands -> looser tolerance than a pure-f32 pipeline.
    if not jnp.allclose(out, ref, atol=3e-2, rtol=3e-2):
        err = float(jnp.max(jnp.abs(out - ref)))
        raise AssertionError(f"Pallas output does not match reference (max err {err})")
    print("KERNEL_OK")
</pallas_src>

<mosaic_0001>
module attributes {stable_mosaic.version = 11 : i64} {
  func.func @stem_kernel(%arg0: i32, %arg1: memref<1x88x4xbf16, #tpu.memory_space<vmem>>, %arg2: memref<1x88x4xbf16, #tpu.memory_space<vmem>>, %arg3: memref<1x88x4xbf16, #tpu.memory_space<vmem>>, %arg4: memref<1x88x4xbf16, #tpu.memory_space<vmem>>, %arg5: memref<9x4x16xbf16, #tpu.memory_space<vmem>>, %arg6: memref<1x16xf32, #tpu.memory_space<vmem>>, %arg7: memref<9x16x16xbf16, #tpu.memory_space<vmem>>, %arg8: memref<1x16xf32, #tpu.memory_space<vmem>>, %arg9: memref<9x16x32xbf16, #tpu.memory_space<vmem>>, %arg10: memref<1x32xf32, #tpu.memory_space<vmem>>, %arg11: memref<1x4x4x32xf32, #tpu.memory_space<vmem>>, %arg12: memref<104x16xf32, #tpu.memory_space<vmem>>, %arg13: memref<104x16xf32, #tpu.memory_space<vmem>>, %arg14: memref<104x32xf32, #tpu.memory_space<vmem>>, %arg15: memref<72x32xf32, #tpu.memory_space<vmem>>) attributes {dimension_semantics = [#tpu.dimension_semantics<parallel>], iteration_bounds = array<i64: 2>, scalar_prefetch = 0 : i64, scratch_operands = 4 : i64, tpu.core_type = #tpu.core_type<tc>, window_params = [{transform_indices = @transform_0, window_bounds = array<i64: 1, 88, 4>}, {transform_indices = @transform_1, window_bounds = array<i64: 1, 88, 4>}, {transform_indices = @transform_2, window_bounds = array<i64: 1, 88, 4>}, {transform_indices = @transform_3, window_bounds = array<i64: 1, 88, 4>}, {pipeline_mode = #tpu.pipeline_mode<synchronous>, transform_indices = @transform_4, window_bounds = array<i64: 9, 4, 16>}, {pipeline_mode = #tpu.pipeline_mode<synchronous>, transform_indices = @transform_5, window_bounds = array<i64: 1, 16>}, {pipeline_mode = #tpu.pipeline_mode<synchronous>, transform_indices = @transform_6, window_bounds = array<i64: 9, 16, 16>}, {pipeline_mode = #tpu.pipeline_mode<synchronous>, transform_indices = @transform_7, window_bounds = array<i64: 1, 16>}, {pipeline_mode = #tpu.pipeline_mode<synchronous>, transform_indices = @transform_8, window_bounds = array<i64: 9, 16, 32>}, {pipeline_mode = #tpu.pipeline_mode<synchronous>, transform_indices = @transform_9, window_bounds = array<i64: 1, 32>}, {transform_indices = @transform_10, window_bounds = array<i64: 1, 4, 4, 32>}]} {
    %cst = arith.constant 0.000000e+00 : f32
    %0 = vector.broadcast %cst : f32 to vector<72x16xf32>
    %c0 = arith.constant 0 : index
    %c0_0 = arith.constant 0 : index
    %c0_1 = arith.constant 0 : index
    %1 = vector.load %arg1[%c0, %c0_0, %c0_1] : memref<1x88x4xbf16, #tpu.memory_space<vmem>>, vector<1x72x4xbf16>
    %2 = vector.shape_cast %1 : vector<1x72x4xbf16> to vector<72x4xbf16>
    %c0_2 = arith.constant 0 : index
    %c0_3 = arith.constant 0 : index
    %c0_4 = arith.constant 0 : index
    %3 = vector.load %arg5[%c0_2, %c0_3, %c0_4] : memref<9x4x16xbf16, #tpu.memory_space<vmem>>, vector<1x4x16xbf16>
    %4 = vector.shape_cast %3 : vector<1x4x16xbf16> to vector<4x16xbf16>
    %cst_5 = arith.constant dense<0.000000e+00> : vector<72x16xf32>
    %5 = tpu.matmul %2, %4, %cst_5 {dimension_numbers = #tpu.dot_dimension_numbers<[1], [0], [0], [1], [0, 0, 1, 1], [], []>} : vector<72x4xbf16>, vector<4x16xbf16>, vector<72x16xf32> -> vector<72x16xf32>
    %6 = arith.addf %0, %5 : vector<72x16xf32>
    %c0_6 = arith.constant 0 : index
    %c0_7 = arith.constant 0 : index
    %c0_8 = arith.constant 0 : index
    %7 = vector.load %arg2[%c0_6, %c0_7, %c0_8] : memref<1x88x4xbf16, #tpu.memory_space<vmem>>, vector<1x72x4xbf16>
    %8 = vector.shape_cast %7 : vector<1x72x4xbf16> to vector<72x4xbf16>
    %c1 = arith.constant 1 : index
    %c0_9 = arith.constant 0 : index
    %c0_10 = arith.constant 0 : index
    %9 = vector.load %arg5[%c1, %c0_9, %c0_10] : memref<9x4x16xbf16, #tpu.memory_space<vmem>>, vector<1x4x16xbf16>
    %10 = vector.shape_cast %9 : vector<1x4x16xbf16> to vector<4x16xbf16>
    %cst_11 = arith.constant dense<0.000000e+00> : vector<72x16xf32>
    %11 = tpu.matmul %8, %10, %cst_11 {dimension_numbers = #tpu.dot_dimension_numbers<[1], [0], [0], [1], [0, 0, 1, 1], [], []>} : vector<72x4xbf16>, vector<4x16xbf16>, vector<72x16xf32> -> vector<72x16xf32>
    %12 = arith.addf %6, %11 : vector<72x16xf32>
    %c0_12 = arith.constant 0 : index
    %c1_13 = arith.constant 1 : index
    %c0_14 = arith.constant 0 : index
    %13 = vector.load %arg1[%c0_12, %c1_13, %c0_14] : memref<1x88x4xbf16, #tpu.memory_space<vmem>>, vector<1x72x4xbf16>
    %14 = vector.shape_cast %13 : vector<1x72x4xbf16> to vector<72x4xbf16>
    %c2 = arith.constant 2 : index
    %c0_15 = arith.constant 0 : index
    %c0_16 = arith.constant 0 : index
    %15 = vector.load %arg5[%c2, %c0_15, %c0_16] : memref<9x4x16xbf16, #tpu.memory_space<vmem>>, vector<1x4x16xbf16>
    %16 = vector.shape_cast %15 : vector<1x4x16xbf16> to vector<4x16xbf16>
    %cst_17 = arith.constant dense<0.000000e+00> : vector<72x16xf32>
    %17 = tpu.matmul %14, %16, %cst_17 {dimension_numbers = #tpu.dot_dimension_numbers<[1], [0], [0], [1], [0, 0, 1, 1], [], []>} : vector<72x4xbf16>, vector<4x16xbf16>, vector<72x16xf32> -> vector<72x16xf32>
    %18 = arith.addf %12, %17 : vector<72x16xf32>
    %c0_18 = arith.constant 0 : index
    %c0_19 = arith.constant 0 : index
    %c0_20 = arith.constant 0 : index
    %19 = vector.load %arg3[%c0_18, %c0_19, %c0_20] : memref<1x88x4xbf16, #tpu.memory_space<vmem>>, vector<1x72x4xbf16>
    %20 = vector.shape_cast %19 : vector<1x72x4xbf16> to vector<72x4xbf16>
    %c3 = arith.constant 3 : index
    %c0_21 = arith.constant 0 : index
    %c0_22 = arith.constant 0 : index
    %21 = vector.load %arg5[%c3, %c0_21, %c0_22] : memref<9x4x16xbf16, #tpu.memory_space<vmem>>, vector<1x4x16xbf16>
    %22 = vector.shape_cast %21 : vector<1x4x16xbf16> to vector<4x16xbf16>
    %cst_23 = arith.constant dense<0.000000e+00> : vector<72x16xf32>
    %23 = tpu.matmul %20, %22, %cst_23 {dimension_numbers = #tpu.dot_dimension_numbers<[1], [0], [0], [1], [0, 0, 1, 1], [], []>} : vector<72x4xbf16>, vector<4x16xbf16>, vector<72x16xf32> -> vector<72x16xf32>
    %24 = arith.addf %18, %23 : vector<72x16xf32>
    %c0_24 = arith.constant 0 : index
    %c0_25 = arith.constant 0 : index
    %c0_26 = arith.constant 0 : index
    %25 = vector.load %arg4[%c0_24, %c0_25, %c0_26] : memref<1x88x4xbf16, #tpu.memory_space<vmem>>, vector<1x72x4xbf16>
    %26 = vector.shape_cast %25 : vector<1x72x4xbf16> to vector<72x4xbf16>
    %c4 = arith.constant 4 : index
    %c0_27 = arith.constant 0 : index
    %c0_28 = arith.constant 0 : index
    %27 = vector.load %arg5[%c4, %c0_27, %c0_28] : memref<9x4x16xbf16, #tpu.memory_space<vmem>>, vector<1x4x16xbf16>
    %28 = vector.shape_cast %27 : vector<1x4x16xbf16> to vector<4x16xbf16>
    %cst_29 = arith.constant dense<0.000000e+00> : vector<72x16xf32>
    %29 = tpu.matmul %26, %28, %cst_29 {dimension_numbers = #tpu.dot_dimension_numbers<[1], [0], [0], [1], [0, 0, 1, 1], [], []>} : vector<72x4xbf16>, vector<4x16xbf16>, vector<72x16xf32> -> vector<72x16xf32>
    %30 = arith.addf %24, %29 : vector<72x16xf32>
    %c0_30 = arith.constant 0 : index
    %c1_31 = arith.constant 1 : index
    %c0_32 = arith.constant 0 : index
    %31 = vector.load %arg3[%c0_30, %c1_31, %c0_32] : memref<1x88x4xbf16, #tpu.memory_space<vmem>>, vector<1x72x4xbf16>
    %32 = vector.shape_cast %31 : vector<1x72x4xbf16> to vector<72x4xbf16>
    %c5 = arith.constant 5 : index
    %c0_33 = arith.constant 0 : index
    %c0_34 = arith.constant 0 : index
    %33 = vector.load %arg5[%c5, %c0_33, %c0_34] : memref<9x4x16xbf16, #tpu.memory_space<vmem>>, vector<1x4x16xbf16>
    %34 = vector.shape_cast %33 : vector<1x4x16xbf16> to vector<4x16xbf16>
    %cst_35 = arith.constant dense<0.000000e+00> : vector<72x16xf32>
    %35 = tpu.matmul %32, %34, %cst_35 {dimension_numbers = #tpu.dot_dimension_numbers<[1], [0], [0], [1], [0, 0, 1, 1], [], []>} : vector<72x4xbf16>, vector<4x16xbf16>, vector<72x16xf32> -> vector<72x16xf32>
    %36 = arith.addf %30, %35 : vector<72x16xf32>
    %c0_36 = arith.constant 0 : index
    %c9 = arith.constant 9 : index
    %c0_37 = arith.constant 0 : index
    %37 = vector.load %arg1[%c0_36, %c9, %c0_37] : memref<1x88x4xbf16, #tpu.memory_space<vmem>>, vector<1x72x4xbf16>
    %38 = vector.shape_cast %37 : vector<1x72x4xbf16> to vector<72x4xbf16>
    %c6 = arith.constant 6 : index
    %c0_38 = arith.constant 0 : index
    %c0_39 = arith.constant 0 : index
    %39 = vector.load %arg5[%c6, %c0_38, %c0_39] : memref<9x4x16xbf16, #tpu.memory_space<vmem>>, vector<1x4x16xbf16>
    %40 = vector.shape_cast %39 : vector<1x4x16xbf16> to vector<4x16xbf16>
    %cst_40 = arith.constant dense<0.000000e+00> : vector<72x16xf32>
    %41 = tpu.matmul %38, %40, %cst_40 {dimension_numbers = #tpu.dot_dimension_numbers<[1], [0], [0], [1], [0, 0, 1, 1], [], []>} : vector<72x4xbf16>, vector<4x16xbf16>, vector<72x16xf32> -> vector<72x16xf32>
    %42 = arith.addf %36, %41 : vector<72x16xf32>
    %c0_41 = arith.constant 0 : index
    %c9_42 = arith.constant 9 : index
    %c0_43 = arith.constant 0 : index
    %43 = vector.load %arg2[%c0_41, %c9_42, %c0_43] : memref<1x88x4xbf16, #tpu.memory_space<vmem>>, vector<1x72x4xbf16>
    %44 = vector.shape_cast %43 : vector<1x72x4xbf16> to vector<72x4xbf16>
    %c7 = arith.constant 7 : index
    %c0_44 = arith.constant 0 : index
    %c0_45 = arith.constant 0 : index
    %45 = vector.load %arg5[%c7, %c0_44, %c0_45] : memref<9x4x16xbf16, #tpu.memory_space<vmem>>, vector<1x4x16xbf16>
    %46 = vector.shape_cast %45 : vector<1x4x16xbf16> to vector<4x16xbf16>
    %cst_46 = arith.constant dense<0.000000e+00> : vector<72x16xf32>
    %47 = tpu.matmul %44, %46, %cst_46 {dimension_numbers = #tpu.dot_dimension_numbers<[1], [0], [0], [1], [0, 0, 1, 1], [], []>} : vector<72x4xbf16>, vector<4x16xbf16>, vector<72x16xf32> -> vector<72x16xf32>
    %48 = arith.addf %42, %47 : vector<72x16xf32>
    %c0_47 = arith.constant 0 : index
    %c10 = arith.constant 10 : index
    %c0_48 = arith.constant 0 : index
    %49 = vector.load %arg1[%c0_47, %c10, %c0_48] : memref<1x88x4xbf16, #tpu.memory_space<vmem>>, vector<1x72x4xbf16>
    %50 = vector.shape_cast %49 : vector<1x72x4xbf16> to vector<72x4xbf16>
    %c8 = arith.constant 8 : index
    %c0_49 = arith.constant 0 : index
    %c0_50 = arith.constant 0 : index
    %51 = vector.load %arg5[%c8, %c0_49, %c0_50] : memref<9x4x16xbf16, #tpu.memory_space<vmem>>, vector<1x4x16xbf16>
    %52 = vector.shape_cast %51 : vector<1x4x16xbf16> to vector<4x16xbf16>
    %cst_51 = arith.constant dense<0.000000e+00> : vector<72x16xf32>
    %53 = tpu.matmul %50, %52, %cst_51 {dimension_numbers = #tpu.dot_dimension_numbers<[1], [0], [0], [1], [0, 0, 1, 1], [], []>} : vector<72x4xbf16>, vector<4x16xbf16>, vector<72x16xf32> -> vector<72x16xf32>
    %54 = arith.addf %48, %53 : vector<72x16xf32>
    %c0_52 = arith.constant 0 : index
    %c0_53 = arith.constant 0 : index
    %55 = vector.load %arg6[%c0_52, %c0_53] : memref<1x16xf32, #tpu.memory_space<vmem>>, vector<1x16xf32>
    %56 = vector.broadcast %55 : vector<1x16xf32> to vector<72x16xf32>
    %57 = arith.addf %54, %56 : vector<72x16xf32>
    %cst_54 = arith.constant 0.000000e+00 : f32
    %58 = vector.broadcast %cst_54 : f32 to vector<72x16xf32>
    %59 = arith.maximumf %57, %58 : vector<72x16xf32>
    %cst_55 = arith.constant 0.000000e+00 : f32
    %60 = vector.broadcast %cst_55 : f32 to vector<104x16xf32>
    %c0_56 = arith.constant 0 : index
    %c0_57 = arith.constant 0 : index
    %61 = vector.load %arg12[%c0_56, %c0_57] : memref<104x16xf32, #tpu.memory_space<vmem>>, vector<104x16xf32>
    tpu.vector_store %arg12[%c0_56, %c0_57], %60 {strides = array<i32>} : memref<104x16xf32, #tpu.memory_space<vmem>>, vector<104x16xf32>,
    %62 = vector.extract_strided_slice %59 {offsets = [0, 0], sizes = [8, 16], strides = [1, 1]} : vector<72x16xf32> to vector<8x16xf32>
    %c11 = arith.constant 11 : index
    %c0_58 = arith.constant 0 : index
    %63 = vector.load %arg12[%c11, %c0_58] : memref<104x16xf32, #tpu.memory_space<vmem>>, vector<8x16xf32>
    tpu.vector_store %arg12[%c11, %c0_58], %62 {strides = array<i32>} : memref<104x16xf32, #tpu.memory_space<vmem>>, vector<8x16xf32>,
    %64 = vector.extract_strided_slice %59 {offsets = [9, 0], sizes = [8, 16], strides = [1, 1]} : vector<72x16xf32> to vector<8x16xf32>
    %c21 = arith.constant 21 : index
    %c0_59 = arith.constant 0 : index
    %65 = vector.load %arg12[%c21, %c0_59] : memref<104x16xf32, #tpu.memory_space<vmem>>, vector<8x16xf32>
    tpu.vector_store %arg12[%c21, %c0_59], %64 {strides = array<i32>} : memref<104x16xf32, #tpu.memory_space<vmem>>, vector<8x16xf32>,
    %66 = vector.extract_strided_slice %59 {offsets = [18, 0], sizes = [8, 16], strides = [1, 1]} : vector<72x16xf32> to vector<8x16xf32>
    %c31 = arith.constant 31 : index
    %c0_60 = arith.constant 0 : index
    %67 = vector.load %arg12[%c31, %c0_60] : memref<104x16xf32, #tpu.memory_space<vmem>>, vector<8x16xf32>
    tpu.vector_store %arg12[%c31, %c0_60], %66 {strides = array<i32>} : memref<104x16xf32, #tpu.memory_space<vmem>>, vector<8x16xf32>,
    %68 = vector.extract_strided_slice %59 {offsets = [27, 0], sizes = [8, 16], strides = [1, 1]} : vector<72x16xf32> to vector<8x16xf32>
    %c41 = arith.constant 41 : index
    %c0_61 = arith.constant 0 : index
    %69 = vector.load %arg12[%c41, %c0_61] : memref<104x16xf32, #tpu.memory_space<vmem>>, vector<8x16xf32>
    tpu.vector_store %arg12[%c41, %c0_61], %68 {strides = array<i32>} : memref<104x16xf32, #tpu.memory_space<vmem>>, vector<8x16xf32>,
    %70 = vector.extract_strided_slice %59 {offsets = [36, 0], sizes = [8, 16], strides = [1, 1]} : vector<72x16xf32> to vector<8x16xf32>
    %c51 = arith.constant 51 : index
    %c0_62 = arith.constant 0 : index
    %71 = vector.load %arg12[%c51, %c0_62] : memref<104x16xf32, #tpu.memory_space<vmem>>, vector<8x16xf32>
    tpu.vector_store %arg12[%c51, %c0_62], %70 {strides = array<i32>} : memref<104x16xf32, #tpu.memory_space<vmem>>, vector<8x16xf32>,
    %72 = vector.extract_strided_slice %59 {offsets = [45, 0], sizes = [8, 16], strides = [1, 1]} : vector<72x16xf32> to vector<8x16xf32>
    %c61 = arith.constant 61 : index
    %c0_63 = arith.constant 0 : index
    %73 = vector.load %arg12[%c61, %c0_63] : memref<104x16xf32, #tpu.memory_space<vmem>>, vector<8x16xf32>
    tpu.vector_store %arg12[%c61, %c0_63], %72 {strides = array<i32>} : memref<104x16xf32, #tpu.memory_space<vmem>>, vector<8x16xf32>,
    %74 = vector.extract_strided_slice %59 {offsets = [54, 0], sizes = [8, 16], strides = [1, 1]} : vector<72x16xf32> to vector<8x16xf32>
    %c71 = arith.constant 71 : index
    %c0_64 = arith.constant 0 : index
    %75 = vector.load %arg12[%c71, %c0_64] : memref<104x16xf32, #tpu.memory_space<vmem>>, vector<8x16xf32>
    tpu.vector_store %arg12[%c71, %c0_64], %74 {strides = array<i32>} : memref<104x16xf32, #tpu.memory_space<vmem>>, vector<8x16xf32>,
    %76 = vector.extract_strided_slice %59 {offsets = [63, 0], sizes = [8, 16], strides = [1, 1]} : vector<72x16xf32> to vector<8x16xf32>
    %c81 = arith.constant 81 : index
    %c0_65 = arith.constant 0 : index
    %77 = vector.load %arg12[%c81, %c0_65] : memref<104x16xf32, #tpu.memory_space<vmem>>, vector<8x16xf32>
    tpu.vector_store %arg12[%c81, %c0_65], %76 {strides = array<i32>} : memref<104x16xf32, #tpu.memory_space<vmem>>, vector<8x16xf32>,
    %cst_66 = arith.constant 0.000000e+00 : f32
    %78 = vector.broadcast %cst_66 : f32 to vector<80x16xf32>
    %c0_67 = arith.constant 0 : index
    %c0_68 = arith.constant 0 : index
    %79 = vector.load %arg12[%c0_67, %c0_68] : memref<104x16xf32, #tpu.memory_space<vmem>>, vector<80x16xf32>
    %80 = arith.truncf %79 : vector<80x16xf32> to vector<80x16xbf16>
    %c0_69 = arith.constant 0 : index
    %c0_70 = arith.constant 0 : index
    %c0_71 = arith.constant 0 : index
    %81 = vector.load %arg7[%c0_69, %c0_70, %c0_71] : memref<9x16x16xbf16, #tpu.memory_space<vmem>>, vector<1x16x16xbf16>
    %82 = vector.shape_cast %81 : vector<1x16x16xbf16> to vector<16x16xbf16>
    %cst_72 = arith.constant dense<0.000000e+00> : vector<80x16xf32>
    %83 = tpu.matmul %80, %82, %cst_72 {dimension_numbers = #tpu.dot_dimension_numbers<[1], [0], [0], [1], [0, 0, 1, 1], [], []>} : vector<80x16xbf16>, vector<16x16xbf16>, vector<80x16xf32> -> vector<80x16xf32>
    %84 = arith.addf %78, %83 : vector<80x16xf32>
    %c1_73 = arith.constant 1 : index
    %c0_74 = arith.constant 0 : index
    %85 = vector.load %arg12[%c1_73, %c0_74] : memref<104x16xf32, #tpu.memory_space<vmem>>, vector<80x16xf32>
    %86 = arith.truncf %85 : vector<80x16xf32> to vector<80x16xbf16>
    %c1_75 = arith.constant 1 : index
    %c0_76 = arith.constant 0 : index
    %c0_77 = arith.constant 0 : index
    %87 = vector.load %arg7[%c1_75, %c0_76, %c0_77] : memref<9x16x16xbf16, #tpu.memory_space<vmem>>, vector<1x16x16xbf16>
    %88 = vector.shape_cast %87 : vector<1x16x16xbf16> to vector<16x16xbf16>
    %cst_78 = arith.constant dense<0.000000e+00> : vector<80x16xf32>
    %89 = tpu.matmul %86, %88, %cst_78 {dimension_numbers = #tpu.dot_dimension_numbers<[1], [0], [0], [1], [0, 0, 1, 1], [], []>} : vector<80x16xbf16>, vector<16x16xbf16>, vector<80x16xf32> -> vector<80x16xf32>
    %90 = arith.addf %84, %89 : vector<80x16xf32>
    %c2_79 = arith.constant 2 : index
    %c0_80 = arith.constant 0 : index
    %91 = vector.load %arg12[%c2_79, %c0_80] : memref<104x16xf32, #tpu.memory_space<vmem>>, vector<80x16xf32>
    %92 = arith.truncf %91 : vector<80x16xf32> to vector<80x16xbf16>
    %c2_81 = arith.constant 2 : index
    %c0_82 = arith.constant 0 : index
    %c0_83 = arith.constant 0 : index
    %93 = vector.load %arg7[%c2_81, %c0_82, %c0_83] : memref<9x16x16xbf16, #tpu.memory_space<vmem>>, vector<1x16x16xbf16>
    %94 = vector.shape_cast %93 : vector<1x16x16xbf16> to vector<16x16xbf16>
    %cst_84 = arith.constant dense<0.000000e+00> : vector<80x16xf32>
    %95 = tpu.matmul %92, %94, %cst_84 {dimension_numbers = #tpu.dot_dimension_numbers<[1], [0], [0], [1], [0, 0, 1, 1], [], []>} : vector<80x16xbf16>, vector<16x16xbf16>, vector<80x16xf32> -> vector<80x16xf32>
    %96 = arith.addf %90, %95 : vector<80x16xf32>
    %c10_85 = arith.constant 10 : index
    %c0_86 = arith.constant 0 : index
    %97 = vector.load %arg12[%c10_85, %c0_86] : memref<104x16xf32, #tpu.memory_space<vmem>>, vector<80x16xf32>
    %98 = arith.truncf %97 : vector<80x16xf32> to vector<80x16xbf16>
    %c3_87 = arith.constant 3 : index
    %c0_88 = arith.constant 0 : index
    %c0_89 = arith.constant 0 : index
    %99 = vector.load %arg7[%c3_87, %c0_88, %c0_89] : memref<9x16x16xbf16, #tpu.memory_space<vmem>>, vector<1x16x16xbf16>
    %100 = vector.shape_cast %99 : vector<1x16x16xbf16> to vector<16x16xbf16>
    %cst_90 = arith.constant dense<0.000000e+00> : vector<80x16xf32>
    %101 = tpu.matmul %98, %100, %cst_90 {dimension_numbers = #tpu.dot_dimension_numbers<[1], [0], [0], [1], [0, 0, 1, 1], [], []>} : vector<80x16xbf16>, vector<16x16xbf16>, vector<80x16xf32> -> vector<80x16xf32>
    %102 = arith.addf %96, %101 : vector<80x16xf32>
    %c11_91 = arith.constant 11 : index
    %c0_92 = arith.constant 0 : index
    %103 = vector.load %arg12[%c11_91, %c0_92] : memref<104x16xf32, #tpu.memory_space<vmem>>, vector<80x16xf32>
    %104 = arith.truncf %103 : vector<80x16xf32> to vector<80x16xbf16>
    %c4_93 = arith.constant 4 : index
    %c0_94 = arith.constant 0 : index
    %c0_95 = arith.constant 0 : index
    %105 = vector.load %arg7[%c4_93, %c0_94, %c0_95] : memref<9x16x16xbf16, #tpu.memory_space<vmem>>, vector<1x16x16xbf16>
    %106 = vector.shape_cast %105 : vector<1x16x16xbf16> to vector<16x16xbf16>
    %cst_96 = arith.constant dense<0.000000e+00> : vector<80x16xf32>
    %107 = tpu.matmul %104, %106, %cst_96 {dimension_numbers = #tpu.dot_dimension_numbers<[1], [0], [0], [1], [0, 0, 1, 1], [], []>} : vector<80x16xbf16>, vector<16x16xbf16>, vector<80x16xf32> -> vector<80x16xf32>
    %108 = arith.addf %102, %107 : vector<80x16xf32>
    %c12 = arith.constant 12 : index
    %c0_97 = arith.constant 0 : index
    %109 = vector.load %arg12[%c12, %c0_97] : memref<104x16xf32, #tpu.memory_space<vmem>>, vector<80x16xf32>
    %110 = arith.truncf %109 : vector<80x16xf32> to vector<80x16xbf16>
    %c5_98 = arith.constant 5 : index
    %c0_99 = arith.constant 0 : index
    %c0_100 = arith.constant 0 : index
    %111 = vector.load %arg7[%c5_98, %c0_99, %c0_100] : memref<9x16x16xbf16, #tpu.memory_space<vmem>>, vector<1x16x16xbf16>
    %112 = vector.shape_cast %111 : vector<1x16x16xbf16> to vector<16x16xbf16>
    %cst_101 = arith.constant dense<0.000000e+00> : vector<80x16xf32>
    %113 = tpu.matmul %110, %112, %cst_101 {dimension_numbers = #tpu.dot_dimension_numbers<[1], [0], [0], [1], [0, 0, 1, 1], [], []>} : vector<80x16xbf16>, vector<16x16xbf16>, vector<80x16xf32> -> vector<80x16xf32>
    %114 = arith.addf %108, %113 : vector<80x16xf32>
    %c20 = arith.constant 20 : index
    %c0_102 = arith.constant 0 : index
    %115 = vector.load %arg12[%c20, %c0_102] : memref<104x16xf32, #tpu.memory_space<vmem>>, vector<80x16xf32>
    %116 = arith.truncf %115 : vector<80x16xf32> to vector<80x16xbf16>
    %c6_103 = arith.constant 6 : index
    %c0_104 = arith.constant 0 : index
    %c0_105 = arith.constant 0 : index
    %117 = vector.load %arg7[%c6_103, %c0_104, %c0_105] : memref<9x16x16xbf16, #tpu.memory_space<vmem>>, vector<1x16x16xbf16>
    %118 = vector.shape_cast %117 : vector<1x16x16xbf16> to vector<16x16xbf16>
    %cst_106 = arith.constant dense<0.000000e+00> : vector<80x16xf32>
    %119 = tpu.matmul %116, %118, %cst_106 {dimension_numbers = #tpu.dot_dimension_numbers<[1], [0], [0], [1], [0, 0, 1, 1], [], []>} : vector<80x16xbf16>, vector<16x16xbf16>, vector<80x16xf32> -> vector<80x16xf32>
    %120 = arith.addf %114, %119 : vector<80x16xf32>
    %c21_107 = arith.constant 21 : index
    %c0_108 = arith.constant 0 : index
    %121 = vector.load %arg12[%c21_107, %c0_108] : memref<104x16xf32, #tpu.memory_space<vmem>>, vector<80x16xf32>
    %122 = arith.truncf %121 : vector<80x16xf32> to vector<80x16xbf16>
    %c7_109 = arith.constant 7 : index
    %c0_110 = arith.constant 0 : index
    %c0_111 = arith.constant 0 : index
    %123 = vector.load %arg7[%c7_109, %c0_110, %c0_111] : memref<9x16x16xbf16, #tpu.memory_space<vmem>>, vector<1x16x16xbf16>
    %124 = vector.shape_cast %123 : vector<1x16x16xbf16> to vector<16x16xbf16>
    %cst_112 = arith.constant dense<0.000000e+00> : vector<80x16xf32>
    %125 = tpu.matmul %122, %124, %cst_112 {dimension_numbers = #tpu.dot_dimension_numbers<[1], [0], [0], [1], [0, 0, 1, 1], [], []>} : vector<80x16xbf16>, vector<16x16xbf16>, vector<80x16xf32> -> vector<80x16xf32>
    %126 = arith.addf %120, %125 : vector<80x16xf32>
    %c22 = arith.constant 22 : index
    %c0_113 = arith.constant 0 : index
    %127 = vector.load %arg12[%c22, %c0_113] : memref<104x16xf32, #tpu.memory_space<vmem>>, vector<80x16xf32>
    %128 = arith.truncf %127 : vector<80x16xf32> to vector<80x16xbf16>
    %c8_114 = arith.constant 8 : index
    %c0_115 = arith.constant 0 : index
    %c0_116 = arith.constant 0 : index
    %129 = vector.load %arg7[%c8_114, %c0_115, %c0_116] : memref<9x16x16xbf16, #tpu.memory_space<vmem>>, vector<1x16x16xbf16>
    %130 = vector.shape_cast %129 : vector<1x16x16xbf16> to vector<16x16xbf16>
    %cst_117 = arith.constant dense<0.000000e+00> : vector<80x16xf32>
    %131 = tpu.matmul %128, %130, %cst_117 {dimension_numbers = #tpu.dot_dimension_numbers<[1], [0], [0], [1], [0, 0, 1, 1], [], []>} : vector<80x16xbf16>, vector<16x16xbf16>, vector<80x16xf32> -> vector<80x16xf32>
    %132 = arith.addf %126, %131 : vector<80x16xf32>
    %c0_118 = arith.constant 0 : index
    %c0_119 = arith.constant 0 : index
    %133 = vector.load %arg8[%c0_118, %c0_119] : memref<1x16xf32, #tpu.memory_space<vmem>>, vector<1x16xf32>
    %134 = vector.broadcast %133 : vector<1x16xf32> to vector<80x16xf32>
    %135 = arith.addf %132, %134 : vector<80x16xf32>
    %cst_120 = arith.constant 0.000000e+00 : f32
    %136 = vector.broadcast %cst_120 : f32 to vector<80x16xf32>
    %137 = arith.maximumf %135, %136 : vector<80x16xf32>
    %cst_121 = arith.constant 0.000000e+00 : f32
    %138 = vector.broadcast %cst_121 : f32 to vector<104x16xf32>
    %c0_122 = arith.constant 0 : index
    %c0_123 = arith.constant 0 : index
    %139 = vector.load %arg13[%c0_122, %c0_123] : memref<104x16xf32, #tpu.memory_space<vmem>>, vector<104x16xf32>
    tpu.vector_store %arg13[%c0_122, %c0_123], %138 {strides = array<i32>} : memref<104x16xf32, #tpu.memory_space<vmem>>, vector<104x16xf32>,
    %140 = vector.extract_strided_slice %137 {offsets = [0, 0], sizes = [8, 16], strides = [1, 1]} : vector<80x16xf32> to vector<8x16xf32>
    %c11_124 = arith.constant 11 : index
    %c0_125 = arith.constant 0 : index
    %141 = vector.load %arg13[%c11_124, %c0_125] : memref<104x16xf32, #tpu.memory_space<vmem>>, vector<8x16xf32>
    tpu.vector_store %arg13[%c11_124, %c0_125], %140 {strides = array<i32>} : memref<104x16xf32, #tpu.memory_space<vmem>>, vector<8x16xf32>,
    %142 = vector.extract_strided_slice %137 {offsets = [10, 0], sizes = [8, 16], strides = [1, 1]} : vector<80x16xf32> to vector<8x16xf32>
    %c21_126 = arith.constant 21 : index
    %c0_127 = arith.constant 0 : index
    %143 = vector.load %arg13[%c21_126, %c0_127] : memref<104x16xf32, #tpu.memory_space<vmem>>, vector<8x16xf32>
    tpu.vector_store %arg13[%c21_126, %c0_127], %142 {strides = array<i32>} : memref<104x16xf32, #tpu.memory_space<vmem>>, vector<8x16xf32>,
    %144 = vector.extract_strided_slice %137 {offsets = [20, 0], sizes = [8, 16], strides = [1, 1]} : vector<80x16xf32> to vector<8x16xf32>
    %c31_128 = arith.constant 31 : index
    %c0_129 = arith.constant 0 : index
    %145 = vector.load %arg13[%c31_128, %c0_129] : memref<104x16xf32, #tpu.memory_space<vmem>>, vector<8x16xf32>
    tpu.vector_store %arg13[%c31_128, %c0_129], %144 {strides = array<i32>} : memref<104x16xf32, #tpu.memory_space<vmem>>, vector<8x16xf32>,
    %146 = vector.extract_strided_slice %137 {offsets = [30, 0], sizes = [8, 16], strides = [1, 1]} : vector<80x16xf32> to vector<8x16xf32>
    %c41_130 = arith.constant 41 : index
    %c0_131 = arith.constant 0 : index
    %147 = vector.load %arg13[%c41_130, %c0_131] : memref<104x16xf32, #tpu.memory_space<vmem>>, vector<8x16xf32>
    tpu.vector_store %arg13[%c41_130, %c0_131], %146 {strides = array<i32>} : memref<104x16xf32, #tpu.memory_space<vmem>>, vector<8x16xf32>,
    %148 = vector.extract_strided_slice %137 {offsets = [40, 0], sizes = [8, 16], strides = [1, 1]} : vector<80x16xf32> to vector<8x16xf32>
    %c51_132 = arith.constant 51 : index
    %c0_133 = arith.constant 0 : index
    %149 = vector.load %arg13[%c51_132, %c0_133] : memref<104x16xf32, #tpu.memory_space<vmem>>, vector<8x16xf32>
    tpu.vector_store %arg13[%c51_132, %c0_133], %148 {strides = array<i32>} : memref<104x16xf32, #tpu.memory_space<vmem>>, vector<8x16xf32>,
    %150 = vector.extract_strided_slice %137 {offsets = [50, 0], sizes = [8, 16], strides = [1, 1]} : vector<80x16xf32> to vector<8x16xf32>
    %c61_134 = arith.constant 61 : index
    %c0_135 = arith.constant 0 : index
    %151 = vector.load %arg13[%c61_134, %c0_135] : memref<104x16xf32, #tpu.memory_space<vmem>>, vector<8x16xf32>
    tpu.vector_store %arg13[%c61_134, %c0_135], %150 {strides = array<i32>} : memref<104x16xf32, #tpu.memory_space<vmem>>, vector<8x16xf32>,
    %152 = vector.extract_strided_slice %137 {offsets = [60, 0], sizes = [8, 16], strides = [1, 1]} : vector<80x16xf32> to vector<8x16xf32>
    %c71_136 = arith.constant 71 : index
    %c0_137 = arith.constant 0 : index
    %153 = vector.load %arg13[%c71_136, %c0_137] : memref<104x16xf32, #tpu.memory_space<vmem>>, vector<8x16xf32>
    tpu.vector_store %arg13[%c71_136, %c0_137], %152 {strides = array<i32>} : memref<104x16xf32, #tpu.memory_space<vmem>>, vector<8x16xf32>,
    %154 = vector.extract_strided_slice %137 {offsets = [70, 0], sizes = [8, 16], strides = [1, 1]} : vector<80x16xf32> to vector<8x16xf32>
    %c81_138 = arith.constant 81 : index
    %c0_139 = arith.constant 0 : index
    %155 = vector.load %arg13[%c81_138, %c0_139] : memref<104x16xf32, #tpu.memory_space<vmem>>, vector<8x16xf32>
    tpu.vector_store %arg13[%c81_138, %c0_139], %154 {strides = array<i32>} : memref<104x16xf32, #tpu.memory_space<vmem>>, vector<8x16xf32>,
    %cst_140 = arith.constant 0.000000e+00 : f32
    %156 = vector.broadcast %cst_140 : f32 to vector<80x32xf32>
    %c0_141 = arith.constant 0 : index
    %c0_142 = arith.constant 0 : index
    %157 = vector.load %arg13[%c0_141, %c0_142] : memref<104x16xf32, #tpu.memory_space<vmem>>, vector<80x16xf32>
    %158 = arith.truncf %157 : vector<80x16xf32> to vector<80x16xbf16>
    %c0_143 = arith.constant 0 : index
    %c0_144 = arith.constant 0 : index
    %c0_145 = arith.constant 0 : index
    %159 = vector.load %arg9[%c0_143, %c0_144, %c0_145] : memref<9x16x32xbf16, #tpu.memory_space<vmem>>, vector<1x16x32xbf16>
    %160 = vector.shape_cast %159 : vector<1x16x32xbf16> to vector<16x32xbf16>
    %cst_146 = arith.constant dense<0.000000e+00> : vector<80x32xf32>
    %161 = tpu.matmul %158, %160, %cst_146 {dimension_numbers = #tpu.dot_dimension_numbers<[1], [0], [0], [1], [0, 0, 1, 1], [], []>} : vector<80x16xbf16>, vector<16x32xbf16>, vector<80x32xf32> -> vector<80x32xf32>
    %162 = arith.addf %156, %161 : vector<80x32xf32>
    %c1_147 = arith.constant 1 : index
    %c0_148 = arith.constant 0 : index
    %163 = vector.load %arg13[%c1_147, %c0_148] : memref<104x16xf32, #tpu.memory_space<vmem>>, vector<80x16xf32>
    %164 = arith.truncf %163 : vector<80x16xf32> to vector<80x16xbf16>
    %c1_149 = arith.constant 1 : index
    %c0_150 = arith.constant 0 : index
    %c0_151 = arith.constant 0 : index
    %165 = vector.load %arg9[%c1_149, %c0_150, %c0_151] : memref<9x16x32xbf16, #tpu.memory_space<vmem>>, vector<1x16x32xbf16>
    %166 = vector.shape_cast %165 : vector<1x16x32xbf16> to vector<16x32xbf16>
    %cst_152 = arith.constant dense<0.000000e+00> : vector<80x32xf32>
    %167 = tpu.matmul %164, %166, %cst_152 {dimension_numbers = #tpu.dot_dimension_numbers<[1], [0], [0], [1], [0, 0, 1, 1], [], []>} : vector<80x16xbf16>, vector<16x32xbf16>, vector<80x32xf32> -> vector<80x32xf32>
    %168 = arith.addf %162, %167 : vector<80x32xf32>
    %c2_153 = arith.constant 2 : index
    %c0_154 = arith.constant 0 : index
    %169 = vector.load %arg13[%c2_153, %c0_154] : memref<104x16xf32, #tpu.memory_space<vmem>>, vector<80x16xf32>
    %170 = arith.truncf %169 : vector<80x16xf32> to vector<80x16xbf16>
    %c2_155 = arith.constant 2 : index
    %c0_156 = arith.constant 0 : index
    %c0_157 = arith.constant 0 : index
    %171 = vector.load %arg9[%c2_155, %c0_156, %c0_157] : memref<9x16x32xbf16, #tpu.memory_space<vmem>>, vector<1x16x32xbf16>
    %172 = vector.shape_cast %171 : vector<1x16x32xbf16> to vector<16x32xbf16>
    %cst_158 = arith.constant dense<0.000000e+00> : vector<80x32xf32>
    %173 = tpu.matmul %170, %172, %cst_158 {dimension_numbers = #tpu.dot_dimension_numbers<[1], [0], [0], [1], [0, 0, 1, 1], [], []>} : vector<80x16xbf16>, vector<16x32xbf16>, vector<80x32xf32> -> vector<80x32xf32>
    %174 = arith.addf %168, %173 : vector<80x32xf32>
    %c10_159 = arith.constant 10 : index
    %c0_160 = arith.constant 0 : index
    %175 = vector.load %arg13[%c10_159, %c0_160] : memref<104x16xf32, #tpu.memory_space<vmem>>, vector<80x16xf32>
    %176 = arith.truncf %175 : vector<80x16xf32> to vector<80x16xbf16>
    %c3_161 = arith.constant 3 : index
    %c0_162 = arith.constant 0 : index
    %c0_163 = arith.constant 0 : index
    %177 = vector.load %arg9[%c3_161, %c0_162, %c0_163] : memref<9x16x32xbf16, #tpu.memory_space<vmem>>, vector<1x16x32xbf16>
    %178 = vector.shape_cast %177 : vector<1x16x32xbf16> to vector<16x32xbf16>
    %cst_164 = arith.constant dense<0.000000e+00> : vector<80x32xf32>
    %179 = tpu.matmul %176, %178, %cst_164 {dimension_numbers = #tpu.dot_dimension_numbers<[1], [0], [0], [1], [0, 0, 1, 1], [], []>} : vector<80x16xbf16>, vector<16x32xbf16>, vector<80x32xf32> -> vector<80x32xf32>
    %180 = arith.addf %174, %179 : vector<80x32xf32>
    %c11_165 = arith.constant 11 : index
    %c0_166 = arith.constant 0 : index
    %181 = vector.load %arg13[%c11_165, %c0_166] : memref<104x16xf32, #tpu.memory_space<vmem>>, vector<80x16xf32>
    %182 = arith.truncf %181 : vector<80x16xf32> to vector<80x16xbf16>
    %c4_167 = arith.constant 4 : index
    %c0_168 = arith.constant 0 : index
    %c0_169 = arith.constant 0 : index
    %183 = vector.load %arg9[%c4_167, %c0_168, %c0_169] : memref<9x16x32xbf16, #tpu.memory_space<vmem>>, vector<1x16x32xbf16>
    %184 = vector.shape_cast %183 : vector<1x16x32xbf16> to vector<16x32xbf16>
    %cst_170 = arith.constant dense<0.000000e+00> : vector<80x32xf32>
    %185 = tpu.matmul %182, %184, %cst_170 {dimension_numbers = #tpu.dot_dimension_numbers<[1], [0], [0], [1], [0, 0, 1, 1], [], []>} : vector<80x16xbf16>, vector<16x32xbf16>, vector<80x32xf32> -> vector<80x32xf32>
    %186 = arith.addf %180, %185 : vector<80x32xf32>
    %c12_171 = arith.constant 12 : index
    %c0_172 = arith.constant 0 : index
    %187 = vector.load %arg13[%c12_171, %c0_172] : memref<104x16xf32, #tpu.memory_space<vmem>>, vector<80x16xf32>
    %188 = arith.truncf %187 : vector<80x16xf32> to vector<80x16xbf16>
    %c5_173 = arith.constant 5 : index
    %c0_174 = arith.constant 0 : index
    %c0_175 = arith.constant 0 : index
    %189 = vector.load %arg9[%c5_173, %c0_174, %c0_175] : memref<9x16x32xbf16, #tpu.memory_space<vmem>>, vector<1x16x32xbf16>
    %190 = vector.shape_cast %189 : vector<1x16x32xbf16> to vector<16x32xbf16>
    %cst_176 = arith.constant dense<0.000000e+00> : vector<80x32xf32>
    %191 = tpu.matmul %188, %190, %cst_176 {dimension_numbers = #tpu.dot_dimension_numbers<[1], [0], [0], [1], [0, 0, 1, 1], [], []>} : vector<80x16xbf16>, vector<16x32xbf16>, vector<80x32xf32> -> vector<80x32xf32>
    %192 = arith.addf %186, %191 : vector<80x32xf32>
    %c20_177 = arith.constant 20 : index
    %c0_178 = arith.constant 0 : index
    %193 = vector.load %arg13[%c20_177, %c0_178] : memref<104x16xf32, #tpu.memory_space<vmem>>, vector<80x16xf32>
    %194 = arith.truncf %193 : vector<80x16xf32> to vector<80x16xbf16>
    %c6_179 = arith.constant 6 : index
    %c0_180 = arith.constant 0 : index
    %c0_181 = arith.constant 0 : index
    %195 = vector.load %arg9[%c6_179, %c0_180, %c0_181] : memref<9x16x32xbf16, #tpu.memory_space<vmem>>, vector<1x16x32xbf16>
    %196 = vector.shape_cast %195 : vector<1x16x32xbf16> to vector<16x32xbf16>
    %cst_182 = arith.constant dense<0.000000e+00> : vector<80x32xf32>
    %197 = tpu.matmul %194, %196, %cst_182 {dimension_numbers = #tpu.dot_dimension_numbers<[1], [0], [0], [1], [0, 0, 1, 1], [], []>} : vector<80x16xbf16>, vector<16x32xbf16>, vector<80x32xf32> -> vector<80x32xf32>
    %198 = arith.addf %192, %197 : vector<80x32xf32>
    %c21_183 = arith.constant 21 : index
    %c0_184 = arith.constant 0 : index
    %199 = vector.load %arg13[%c21_183, %c0_184] : memref<104x16xf32, #tpu.memory_space<vmem>>, vector<80x16xf32>
    %200 = arith.truncf %199 : vector<80x16xf32> to vector<80x16xbf16>
    %c7_185 = arith.constant 7 : index
    %c0_186 = arith.constant 0 : index
    %c0_187 = arith.constant 0 : index
    %201 = vector.load %arg9[%c7_185, %c0_186, %c0_187] : memref<9x16x32xbf16, #tpu.memory_space<vmem>>, vector<1x16x32xbf16>
    %202 = vector.shape_cast %201 : vector<1x16x32xbf16> to vector<16x32xbf16>
    %cst_188 = arith.constant dense<0.000000e+00> : vector<80x32xf32>
    %203 = tpu.matmul %200, %202, %cst_188 {dimension_numbers = #tpu.dot_dimension_numbers<[1], [0], [0], [1], [0, 0, 1, 1], [], []>} : vector<80x16xbf16>, vector<16x32xbf16>, vector<80x32xf32> -> vector<80x32xf32>
    %204 = arith.addf %198, %203 : vector<80x32xf32>
    %c22_189 = arith.constant 22 : index
    %c0_190 = arith.constant 0 : index
    %205 = vector.load %arg13[%c22_189, %c0_190] : memref<104x16xf32, #tpu.memory_space<vmem>>, vector<80x16xf32>
    %206 = arith.truncf %205 : vector<80x16xf32> to vector<80x16xbf16>
    %c8_191 = arith.constant 8 : index
    %c0_192 = arith.constant 0 : index
    %c0_193 = arith.constant 0 : index
    %207 = vector.load %arg9[%c8_191, %c0_192, %c0_193] : memref<9x16x32xbf16, #tpu.memory_space<vmem>>, vector<1x16x32xbf16>
    %208 = vector.shape_cast %207 : vector<1x16x32xbf16> to vector<16x32xbf16>
    %cst_194 = arith.constant dense<0.000000e+00> : vector<80x32xf32>
    %209 = tpu.matmul %206, %208, %cst_194 {dimension_numbers = #tpu.dot_dimension_numbers<[1], [0], [0], [1], [0, 0, 1, 1], [], []>} : vector<80x16xbf16>, vector<16x32xbf16>, vector<80x32xf32> -> vector<80x32xf32>
    %210 = arith.addf %204, %209 : vector<80x32xf32>
    %c0_195 = arith.constant 0 : index
    %c0_196 = arith.constant 0 : index
    %211 = vector.load %arg10[%c0_195, %c0_196] : memref<1x32xf32, #tpu.memory_space<vmem>>, vector<1x32xf32>
    %212 = vector.broadcast %211 : vector<1x32xf32> to vector<80x32xf32>
    %213 = arith.addf %210, %212 : vector<80x32xf32>
    %cst_197 = arith.constant 0.000000e+00 : f32
    %214 = vector.broadcast %cst_197 : f32 to vector<80x32xf32>
    %215 = arith.maximumf %213, %214 : vector<80x32xf32>
    %cst_198 = arith.constant 0.000000e+00 : f32
    %216 = vector.broadcast %cst_198 : f32 to vector<104x32xf32>
    %c0_199 = arith.constant 0 : index
    %c0_200 = arith.constant 0 : index
    %217 = vector.load %arg14[%c0_199, %c0_200] : memref<104x32xf32, #tpu.memory_space<vmem>>, vector<104x32xf32>
    tpu.vector_store %arg14[%c0_199, %c0_200], %216 {strides = array<i32>} : memref<104x32xf32, #tpu.memory_space<vmem>>, vector<104x32xf32>,
    %218 = vector.extract_strided_slice %215 {offsets = [0, 0], sizes = [8, 32], strides = [1, 1]} : vector<80x32xf32> to vector<8x32xf32>
    %c11_201 = arith.constant 11 : index
    %c0_202 = arith.constant 0 : index
    %219 = vector.load %arg14[%c11_201, %c0_202] : memref<104x32xf32, #tpu.memory_space<vmem>>, vector<8x32xf32>
    tpu.vector_store %arg14[%c11_201, %c0_202], %218 {strides = array<i32>} : memref<104x32xf32, #tpu.memory_space<vmem>>, vector<8x32xf32>,
    %220 = vector.extract_strided_slice %215 {offsets = [10, 0], sizes = [8, 32], strides = [1, 1]} : vector<80x32xf32> to vector<8x32xf32>
    %c21_203 = arith.constant 21 : index
    %c0_204 = arith.constant 0 : index
    %221 = vector.load %arg14[%c21_203, %c0_204] : memref<104x32xf32, #tpu.memory_space<vmem>>, vector<8x32xf32>
    tpu.vector_store %arg14[%c21_203, %c0_204], %220 {strides = array<i32>} : memref<104x32xf32, #tpu.memory_space<vmem>>, vector<8x32xf32>,
    %222 = vector.extract_strided_slice %215 {offsets = [20, 0], sizes = [8, 32], strides = [1, 1]} : vector<80x32xf32> to vector<8x32xf32>
    %c31_205 = arith.constant 31 : index
    %c0_206 = arith.constant 0 : index
    %223 = vector.load %arg14[%c31_205, %c0_206] : memref<104x32xf32, #tpu.memory_space<vmem>>, vector<8x32xf32>
    tpu.vector_store %arg14[%c31_205, %c0_206], %222 {strides = array<i32>} : memref<104x32xf32, #tpu.memory_space<vmem>>, vector<8x32xf32>,
    %224 = vector.extract_strided_slice %215 {offsets = [30, 0], sizes = [8, 32], strides = [1, 1]} : vector<80x32xf32> to vector<8x32xf32>
    %c41_207 = arith.constant 41 : index
    %c0_208 = arith.constant 0 : index
    %225 = vector.load %arg14[%c41_207, %c0_208] : memref<104x32xf32, #tpu.memory_space<vmem>>, vector<8x32xf32>
    tpu.vector_store %arg14[%c41_207, %c0_208], %224 {strides = array<i32>} : memref<104x32xf32, #tpu.memory_space<vmem>>, vector<8x32xf32>,
    %226 = vector.extract_strided_slice %215 {offsets = [40, 0], sizes = [8, 32], strides = [1, 1]} : vector<80x32xf32> to vector<8x32xf32>
    %c51_209 = arith.constant 51 : index
    %c0_210 = arith.constant 0 : index
    %227 = vector.load %arg14[%c51_209, %c0_210] : memref<104x32xf32, #tpu.memory_space<vmem>>, vector<8x32xf32>
    tpu.vector_store %arg14[%c51_209, %c0_210], %226 {strides = array<i32>} : memref<104x32xf32, #tpu.memory_space<vmem>>, vector<8x32xf32>,
    %228 = vector.extract_strided_slice %215 {offsets = [50, 0], sizes = [8, 32], strides = [1, 1]} : vector<80x32xf32> to vector<8x32xf32>
    %c61_211 = arith.constant 61 : index
    %c0_212 = arith.constant 0 : index
    %229 = vector.load %arg14[%c61_211, %c0_212] : memref<104x32xf32, #tpu.memory_space<vmem>>, vector<8x32xf32>
    tpu.vector_store %arg14[%c61_211, %c0_212], %228 {strides = array<i32>} : memref<104x32xf32, #tpu.memory_space<vmem>>, vector<8x32xf32>,
    %230 = vector.extract_strided_slice %215 {offsets = [60, 0], sizes = [8, 32], strides = [1, 1]} : vector<80x32xf32> to vector<8x32xf32>
    %c71_213 = arith.constant 71 : index
    %c0_214 = arith.constant 0 : index
    %231 = vector.load %arg14[%c71_213, %c0_214] : memref<104x32xf32, #tpu.memory_space<vmem>>, vector<8x32xf32>
    tpu.vector_store %arg14[%c71_213, %c0_214], %230 {strides = array<i32>} : memref<104x32xf32, #tpu.memory_space<vmem>>, vector<8x32xf32>,
    %232 = vector.extract_strided_slice %215 {offsets = [70, 0], sizes = [8, 32], strides = [1, 1]} : vector<80x32xf32> to vector<8x32xf32>
    %c81_215 = arith.constant 81 : index
    %c0_216 = arith.constant 0 : index
    %233 = vector.load %arg14[%c81_215, %c0_216] : memref<104x32xf32, #tpu.memory_space<vmem>>, vector<8x32xf32>
    tpu.vector_store %arg14[%c81_215, %c0_216], %232 {strides = array<i32>} : memref<104x32xf32, #tpu.memory_space<vmem>>, vector<8x32xf32>,
    %c0_217 = arith.constant 0 : index
    %c0_218 = arith.constant 0 : index
    %234 = vector.load %arg14[%c0_217, %c0_218] : memref<104x32xf32, #tpu.memory_space<vmem>>, vector<96x32xf32>
    %c1_219 = arith.constant 1 : index
    %c0_220 = arith.constant 0 : index
    %235 = vector.load %arg14[%c1_219, %c0_220] : memref<104x32xf32, #tpu.memory_space<vmem>>, vector<96x32xf32>
    %236 = arith.maximumf %234, %235 : vector<96x32xf32>
    %c2_221 = arith.constant 2 : index
    %c0_222 = arith.constant 0 : index
    %237 = vector.load %arg14[%c2_221, %c0_222] : memref<104x32xf32, #tpu.memory_space<vmem>>, vector<96x32xf32>
    %238 = arith.maximumf %236, %237 : vector<96x32xf32>
    %239 = vector.extract_strided_slice %238 {offsets = [0, 0], sizes = [72, 32], strides = [1, 1]} : vector<96x32xf32> to vector<72x32xf32>
    %240 = vector.extract_strided_slice %238 {offsets = [10, 0], sizes = [72, 32], strides = [1, 1]} : vector<96x32xf32> to vector<72x32xf32>
    %241 = arith.maximumf %239, %240 : vector<72x32xf32>
    %242 = vector.extract_strided_slice %238 {offsets = [20, 0], sizes = [72, 32], strides = [1, 1]} : vector<96x32xf32> to vector<72x32xf32>
    %243 = arith.maximumf %241, %242 : vector<72x32xf32>
    %c0_223 = arith.constant 0 : index
    %c0_224 = arith.constant 0 : index
    %244 = vector.load %arg15[%c0_223, %c0_224] : memref<72x32xf32, #tpu.memory_space<vmem>>, vector<72x32xf32>
    tpu.vector_store %arg15[%c0_223, %c0_224], %243 {strides = array<i32>} : memref<72x32xf32, #tpu.memory_space<vmem>>, vector<72x32xf32>,
    %c0_225 = arith.constant 0 : index
    %c0_226 = arith.constant 0 : index
    %245 = tpu.strided_load %arg15[%c0_225, %c0_226] {strides = array<i32: 2, 1>} : memref<72x32xf32, #tpu.memory_space<vmem>>, vector<4x32xf32>
    %c0_227 = arith.constant 0 : index
    %c0_228 = arith.constant 0 : index
    %c0_229 = arith.constant 0 : index
    %c0_230 = arith.constant 0 : index
    %246 = vector.load %arg11[%c0_227, %c0_228, %c0_229, %c0_230] : memref<1x4x4x32xf32, #tpu.memory_space<vmem>>, vector<1x1x4x32xf32>
    %247 = vector.shape_cast %246 : vector<1x1x4x32xf32> to vector<4x32xf32>
    %248 = vector.shape_cast %245 : vector<4x32xf32> to vector<1x1x4x32xf32>
    tpu.vector_store %arg11[%c0_227, %c0_228, %c0_229, %c0_230], %248 {strides = array<i32>} : memref<1x4x4x32xf32, #tpu.memory_space<vmem>>, vector<1x1x4x32xf32>,
    %c20_231 = arith.constant 20 : index
    %c0_232 = arith.constant 0 : index
    %249 = tpu.strided_load %arg15[%c20_231, %c0_232] {strides = array<i32: 2, 1>} : memref<72x32xf32, #tpu.memory_space<vmem>>, vector<4x32xf32>
    %c0_233 = arith.constant 0 : index
    %c1_234 = arith.constant 1 : index
    %c0_235 = arith.constant 0 : index
    %c0_236 = arith.constant 0 : index
    %250 = vector.load %arg11[%c0_233, %c1_234, %c0_235, %c0_236] : memref<1x4x4x32xf32, #tpu.memory_space<vmem>>, vector<1x1x4x32xf32>
    %251 = vector.shape_cast %250 : vector<1x1x4x32xf32> to vector<4x32xf32>
    %252 = vector.shape_cast %249 : vector<4x32xf32> to vector<1x1x4x32xf32>
    tpu.vector_store %arg11[%c0_233, %c1_234, %c0_235, %c0_236], %252 {strides = array<i32>} : memref<1x4x4x32xf32, #tpu.memory_space<vmem>>, vector<1x1x4x32xf32>,
    %c40 = arith.constant 40 : index
    %c0_237 = arith.constant 0 : index
    %253 = tpu.strided_load %arg15[%c40, %c0_237] {strides = array<i32: 2, 1>} : memref<72x32xf32, #tpu.memory_space<vmem>>, vector<4x32xf32>
    %c0_238 = arith.constant 0 : index
    %c2_239 = arith.constant 2 : index
    %c0_240 = arith.constant 0 : index
    %c0_241 = arith.constant 0 : index
    %254 = vector.load %arg11[%c0_238, %c2_239, %c0_240, %c0_241] : memref<1x4x4x32xf32, #tpu.memory_space<vmem>>, vector<1x1x4x32xf32>
    %255 = vector.shape_cast %254 : vector<1x1x4x32xf32> to vector<4x32xf32>
    %256 = vector.shape_cast %253 : vector<4x32xf32> to vector<1x1x4x32xf32>
    tpu.vector_store %arg11[%c0_238, %c2_239, %c0_240, %c0_241], %256 {strides = array<i32>} : memref<1x4x4x32xf32, #tpu.memory_space<vmem>>, vector<1x1x4x32xf32>,
    %c60 = arith.constant 60 : index
    %c0_242 = arith.constant 0 : index
    %257 = tpu.strided_load %arg15[%c60, %c0_242] {strides = array<i32: 2, 1>} : memref<72x32xf32, #tpu.memory_space<vmem>>, vector<4x32xf32>
    %c0_243 = arith.constant 0 : index
    %c3_244 = arith.constant 3 : index
    %c0_245 = arith.constant 0 : index
    %c0_246 = arith.constant 0 : index
    %258 = vector.load %arg11[%c0_243, %c3_244, %c0_245, %c0_246] : memref<1x4x4x32xf32, #tpu.memory_space<vmem>>, vector<1x1x4x32xf32>
    %259 = vector.shape_cast %258 : vector<1x1x4x32xf32> to vector<4x32xf32>
    %260 = vector.shape_cast %257 : vector<4x32xf32> to vector<1x1x4x32xf32>
    tpu.vector_store %arg11[%c0_243, %c3_244, %c0_245, %c0_246], %260 {strides = array<i32>} : memref<1x4x4x32xf32, #tpu.memory_space<vmem>>, vector<1x1x4x32xf32>,
    return
  }
  func.func @transform_0(%arg0: i32) -> (i32, i32, i32) {
    %c0_i32 = arith.constant 0 : i32
    %c0_i32_0 = arith.constant 0 : i32
    %c0_i32_1 = arith.constant 0 : i32
    return %arg0, %c0_i32, %c0_i32_0 : i32, i32, i32
  }
  func.func @transform_1(%arg0: i32) -> (i32, i32, i32) {
    %c0_i32 = arith.constant 0 : i32
    %c0_i32_0 = arith.constant 0 : i32
    %c0_i32_1 = arith.constant 0 : i32
    return %arg0, %c0_i32, %c0_i32_0 : i32, i32, i32
  }
  func.func @transform_2(%arg0: i32) -> (i32, i32, i32) {
    %c0_i32 = arith.constant 0 : i32
    %c0_i32_0 = arith.constant 0 : i32
    %c0_i32_1 = arith.constant 0 : i32
    return %arg0, %c0_i32, %c0_i32_0 : i32, i32, i32
  }
  func.func @transform_3(%arg0: i32) -> (i32, i32, i32) {
    %c0_i32 = arith.constant 0 : i32
    %c0_i32_0 = arith.constant 0 : i32
    %c0_i32_1 = arith.constant 0 : i32
    return %arg0, %c0_i32, %c0_i32_0 : i32, i32, i32
  }
  func.func @transform_4(%arg0: i32) -> (i32, i32, i32) {
    %c0_i32 = arith.constant 0 : i32
    %c0_i32_0 = arith.constant 0 : i32
    %c0_i32_1 = arith.constant 0 : i32
    %c0_i32_2 = arith.constant 0 : i32
    return %c0_i32, %c0_i32_0, %c0_i32_1 : i32, i32, i32
  }
  func.func @transform_5(%arg0: i32) -> (i32, i32) {
    %c0_i32 = arith.constant 0 : i32
    %c0_i32_0 = arith.constant 0 : i32
    %c0_i32_1 = arith.constant 0 : i32
    return %c0_i32, %c0_i32_0 : i32, i32
  }
  func.func @transform_6(%arg0: i32) -> (i32, i32, i32) {
    %c0_i32 = arith.constant 0 : i32
    %c0_i32_0 = arith.constant 0 : i32
    %c0_i32_1 = arith.constant 0 : i32
    %c0_i32_2 = arith.constant 0 : i32
    return %c0_i32, %c0_i32_0, %c0_i32_1 : i32, i32, i32
  }
  func.func @transform_7(%arg0: i32) -> (i32, i32) {
    %c0_i32 = arith.constant 0 : i32
    %c0_i32_0 = arith.constant 0 : i32
    %c0_i32_1 = arith.constant 0 : i32
    return %c0_i32, %c0_i32_0 : i32, i32
  }
  func.func @transform_8(%arg0: i32) -> (i32, i32, i32) {
    %c0_i32 = arith.constant 0 : i32
    %c0_i32_0 = arith.constant 0 : i32
    %c0_i32_1 = arith.constant 0 : i32
    %c0_i32_2 = arith.constant 0 : i32
    return %c0_i32, %c0_i32_0, %c0_i32_1 : i32, i32, i32
  }
  func.func @transform_9(%arg0: i32) -> (i32, i32) {
    %c0_i32 = arith.constant 0 : i32
    %c0_i32_0 = arith.constant 0 : i32
    %c0_i32_1 = arith.constant 0 : i32
    return %c0_i32, %c0_i32_0 : i32, i32
  }
  func.func @transform_10(%arg0: i32) -> (i32, i32, i32, i32) {
    %c0_i32 = arith.constant 0 : i32
    %c0_i32_0 = arith.constant 0 : i32
    %c0_i32_1 = arith.constant 0 : i32
    %c0_i32_2 = arith.constant 0 : i32
    return %arg0, %c0_i32, %c0_i32_0, %c0_i32_1 : i32, i32, i32, i32
  }
}

</mosaic_0001>

<llo_original>
// kernel: se_init_block.1
$region0: #{se_init_block.1}
  #allocation0 [shape = 'u32[]', space=smem, size = 0x4, offset = 0x4, fixed_abs, tag = 'smem constant byte address 0x4 - core index']
  #allocation1 [shape = 'u32[144,128]{1,0:T(1,128)}', space=vmem, size = 0x12000, scoped, tag = 'internal scratch']
  #allocation2 [shape = 'f32[104,16]{1,0:T(8,128)}', space=vmem, size = 0xd000, scoped, tag = 'scratch operand']
  #allocation3 [shape = 'f32[104,16]{1,0:T(8,128)}', space=vmem, size = 0xd000, scoped, tag = 'scratch operand']
  #allocation4 [shape = 'f32[104,32]{1,0:T(8,128)}', space=vmem, size = 0xd000, scoped, tag = 'scratch operand']
  #allocation5 [shape = 'f32[72,32]{1,0:T(8,128)}', space=vmem, size = 0x9000, scoped, tag = 'scratch operand']
  %s0 = inlined_call_operand.vmem [shape: bf16[2,88,4], index: 0, kind: input, shape index: {}]
  %s1 = inlined_call_operand.vmem [shape: bf16[2,88,4], index: 1, kind: input, shape index: {}]
  %s2 = inlined_call_operand.vmem [shape: bf16[2,88,4], index: 2, kind: input, shape index: {}]
  %s3 = inlined_call_operand.vmem [shape: bf16[2,88,4], index: 3, kind: input, shape index: {}]
  %s4 = inlined_call_operand.vmem [shape: bf16[9,4,16], index: 4, kind: input, shape index: {}]
  %s5 = inlined_call_operand.vmem [shape: f32[1,16], index: 5, kind: input, shape index: {}]
  %s6 = inlined_call_operand.vmem [shape: bf16[9,16,16], index: 6, kind: input, shape index: {}]
  %s7 = inlined_call_operand.vmem [shape: f32[1,16], index: 7, kind: input, shape index: {}]
  %s8 = inlined_call_operand.vmem [shape: bf16[9,16,32], index: 8, kind: input, shape index: {}]
  %s9 = inlined_call_operand.vmem [shape: f32[1,32], index: 9, kind: input, shape index: {}]
  %s10 = inlined_call_operand.hbm [shape: f32[2,4,4,32], index: 10, kind: output, shape index: {}]
  %s11 = sld [smem:[#allocation0]]
  $region73: #{se_init_block.1} parent=0
    _
  %s13 = ssub.s32 1, %s11
  %s14 = scalar_select 0, %s13, %s11
  $region1: #{se_init_block.1} parent=0
    #allocation6 [shape = 'u8[16384]{0}', space=vmem, size = 0x4000, scoped, tag = 'output window, operand 0']
    #allocation7 [shape = 's32[2]{0}', space=sflag, size = 0x8, scoped, tag = 'scoped memory for se_init_block.1']
    %15 = vsyncpa [#allocation7], 0
    %s16 = scalar_lea.sflag [#allocation7], 1
    %17 = vsyncpa %s16, 0
    loop: start=0, step=1, limit=4
    $region2: #{se_init_block.1} parent=1 // loop_pre_header
      _
    $region3: #{se_init_block.1} parent=1 // loop_header
      %s19 = sphi 0, %s23
      %p20 = scmp.ge.s32.totalorder %s19, 4
      %s29 = sphi 0, %s31
      %s32 = sphi 0, %s29
      %s33 = sphi 0, %s32
      %s49 = sphi 0, %s33
      %s55 = sphi 0, %s57
      %s58 = sphi 0, %s55
      %s59 = sphi 0, %s58
      %s75 = sphi 0, %s59
      %s81 = sphi 0, %s83
      %s84 = sphi 0, %s81
      %s85 = sphi 0, %s84
      %s101 = sphi 0, %s85
      %s107 = sphi 0, %s109
      %s110 = sphi 0, %s107
      %s111 = sphi 0, %s110
      %s127 = sphi 0, %s111
      %s131 = sphi 0, %s131
      %s133 = sphi 0, %s131
      %s134 = sphi 0, %s133
      %s148 = sphi 0, %s134
      %s152 = sphi 0, %s152
      %s154 = sphi 0, %s152
      %s155 = sphi 0, %s154
      %s169 = sphi 0, %s155
      %s173 = sphi 0, %s173
      %s175 = sphi 0, %s173
      %s176 = sphi 0, %s175
      %s190 = sphi 0, %s176
      %s194 = sphi 0, %s194
      %s196 = sphi 0, %s194
      %s197 = sphi 0, %s196
      %s211 = sphi 0, %s197
      %s215 = sphi 0, %s215
      %s217 = sphi 0, %s215
      %s218 = sphi 0, %s217
      %s232 = sphi 0, %s218
      %s236 = sphi 0, %s236
      %s238 = sphi 0, %s236
      %s239 = sphi 0, %s238
      %s253 = sphi 0, %s239
      %s259 = sphi 0, %s261
      %s262 = sphi 0, %s259
      %s263 = sphi 0, %s262
      %s279 = sphi 0, %s263
    $region4: #{se_init_block.1} parent=1 // loop_header_branch
      %22 = sbr.rel (%p20) target = $region8
    $region5: #{se_init_block.1} parent=1 // loop_body
      %s24 = ssub.s32 %s19, 1
      %s25 = ssub.s32 %s19, 2
      %s26 = sadd.s32 %s19, 1
      %s27 = ssub.s32 %s19, %s26
      %p28 = scmp.eq.s32.totalorder %s27, 0
      %s30 = sadd.s32 %s29, 1
      %s31 = scalar_select %p28, %s29, %s30
      %p34 = pneg %p28
      %p35 = scmp.eq.s32.totalorder %s19, 1
      %p36 = por %p34, %p35
      %p37 = scmp.ne.s32.totalorder %s29, %s32
      %p38 = scmp.eq.s32.totalorder %s19, 0
      %p39 = por %p37, %p38
      %p40 = scmp.ne.s32.totalorder %s29, %s32
      %p41 = scmp.eq.s32.totalorder %s24, 1
      %p42 = por %p40, %p41
      %p43 = scmp.ne.s32.totalorder %s32, %s33
      %p44 = scmp.eq.s32.totalorder %s24, 0
      %p45 = por %p43, %p44
      %p46 = scmp.ne.s32.totalorder %s32, %s33
      %p47 = scmp.eq.s32.totalorder %s25, 1
      %p48 = por %p46, %p47
      %p50 = scmp.ne.s32.totalorder %s33, %s49
      %p51 = scmp.eq.s32.totalorder %s25, 0
      %p52 = por %p50, %p51
      %s53 = ssub.s32 %s19, %s26
      %p54 = scmp.eq.s32.totalorder %s53, 0
      %s56 = sadd.s32 %s55, 1
      %s57 = scalar_select %p54, %s55, %s56
      %p60 = pneg %p54
      %p61 = scmp.eq.s32.totalorder %s19, 1
      %p62 = por %p60, %p61
      %p63 = scmp.ne.s32.totalorder %s55, %s58
      %p64 = scmp.eq.s32.totalorder %s19, 0
      %p65 = por %p63, %p64
      %p66 = scmp.ne.s32.totalorder %s55, %s58
      %p67 = scmp.eq.s32.totalorder %s24, 1
      %p68 = por %p66, %p67
      %p69 = scmp.ne.s32.totalorder %s58, %s59
      %p70 = scmp.eq.s32.totalorder %s24, 0
      %p71 = por %p69, %p70
      %p72 = scmp.ne.s32.totalorder %s58, %s59
      %p73 = scmp.eq.s32.totalorder %s25, 1
      %p74 = por %p72, %p73
      %p76 = scmp.ne.s32.totalorder %s59, %s75
      %p77 = scmp.eq.s32.totalorder %s25, 0
      %p78 = por %p76, %p77
      %s79 = ssub.s32 %s19, %s26
      %p80 = scmp.eq.s32.totalorder %s79, 0
      %s82 = sadd.s32 %s81, 1
      %s83 = scalar_select %p80, %s81, %s82
      %p86 = pneg %p80
      %p87 = scmp.eq.s32.totalorder %s19, 1
      %p88 = por %p86, %p87
      %p89 = scmp.ne.s32.totalorder %s81, %s84
      %p90 = scmp.eq.s32.totalorder %s19, 0
      %p91 = por %p89, %p90
      %p92 = scmp.ne.s32.totalorder %s81, %s84
      %p93 = scmp.eq.s32.totalorder %s24, 1
      %p94 = por %p92, %p93
      %p95 = scmp.ne.s32.totalorder %s84, %s85
      %p96 = scmp.eq.s32.totalorder %s24, 0
      %p97 = por %p95, %p96
      %p98 = scmp.ne.s32.totalorder %s84, %s85
      %p99 = scmp.eq.s32.totalorder %s25, 1
      %p100 = por %p98, %p99
      %p102 = scmp.ne.s32.totalorder %s85, %s101
      %p103 = scmp.eq.s32.totalorder %s25, 0
      %p104 = por %p102, %p103
      %s105 = ssub.s32 %s19, %s26
      %p106 = scmp.eq.s32.totalorder %s105, 0
      %s108 = sadd.s32 %s107, 1
      %s109 = scalar_select %p106, %s107, %s108
      %p112 = pneg %p106
      %p113 = scmp.eq.s32.totalorder %s19, 1
      %p114 = por %p112, %p113
      %p115 = scmp.ne.s32.totalorder %s107, %s110
      %p116 = scmp.eq.s32.totalorder %s19, 0
      %p117 = por %p115, %p116
      %p118 = scmp.ne.s32.totalorder %s107, %s110
      %p119 = scmp.eq.s32.totalorder %s24, 1
      %p120 = por %p118, %p119
      %p121 = scmp.ne.s32.totalorder %s110, %s111
      %p122 = scmp.eq.s32.totalorder %s24, 0
      %p123 = por %p121, %p122
      %p124 = scmp.ne.s32.totalorder %s110, %s111
      %p125 = scmp.eq.s32.totalorder %s25, 1
      %p126 = por %p124, %p125
      %p128 = scmp.ne.s32.totalorder %s111, %s127
      %p129 = scmp.eq.s32.totalorder %s25, 0
      %p130 = por %p128, %p129
      %s132 = sadd.s32 %s131, 1
      %p135 = scmp.eq.s32.totalorder %s19, 1
      %p136 = scmp.ne.s32.totalorder %s131, %s133
      %p137 = scmp.eq.s32.totalorder %s19, 0
      %p138 = por %p136, %p137
      %p139 = scmp.ne.s32.totalorder %s131, %s133
      %p140 = scmp.eq.s32.totalorder %s24, 1
      %p141 = por %p139, %p140
      %p142 = scmp.ne.s32.totalorder %s133, %s134
      %p143 = scmp.eq.s32.totalorder %s24, 0
      %p144 = por %p142, %p143
      %p145 = scmp.ne.s32.totalorder %s133, %s134
      %p146 = scmp.eq.s32.totalorder %s25, 1
      %p147 = por %p145, %p146
      %p149 = scmp.ne.s32.totalorder %s134, %s148
      %p150 = scmp.eq.s32.totalorder %s25, 0
      %p151 = por %p149, %p150
      %s153 = sadd.s32 %s152, 1
      %p156 = scmp.eq.s32.totalorder %s19, 1
      %p157 = scmp.ne.s32.totalorder %s152, %s154
      %p158 = scmp.eq.s32.totalorder %s19, 0
      %p159 = por %p157, %p158
      %p160 = scmp.ne.s32.totalorder %s152, %s154
      %p161 = scmp.eq.s32.totalorder %s24, 1
      %p162 = por %p160, %p161
      %p163 = scmp.ne.s32.totalorder %s154, %s155
      %p164 = scmp.eq.s32.totalorder %s24, 0
      %p165 = por %p163, %p164
      %p166 = scmp.ne.s32.totalorder %s154, %s155
      %p167 = scmp.eq.s32.totalorder %s25, 1
      %p168 = por %p166, %p167
      %p170 = scmp.ne.s32.totalorder %s155, %s169
      %p171 = scmp.eq.s32.totalorder %s25, 0
      %p172 = por %p170, %p171
      %s174 = sadd.s32 %s173, 1
      %p177 = scmp.eq.s32.totalorder %s19, 1
      %p178 = scmp.ne.s32.totalorder %s173, %s175
      %p179 = scmp.eq.s32.totalorder %s19, 0
      %p180 = por %p178, %p179
      %p181 = scmp.ne.s32.totalorder %s173, %s175
      %p182 = scmp.eq.s32.totalorder %s24, 1
      %p183 = por %p181, %p182
      %p184 = scmp.ne.s32.totalorder %s175, %s176
      %p185 = scmp.eq.s32.totalorder %s24, 0
      %p186 = por %p184, %p185
      %p187 = scmp.ne.s32.totalorder %s175, %s176
      %p188 = scmp.eq.s32.totalorder %s25, 1
      %p189 = por %p187, %p188
      %p191 = scmp.ne.s32.totalorder %s176, %s190
      %p192 = scmp.eq.s32.totalorder %s25, 0
      %p193 = por %p191, %p192
      %s195 = sadd.s32 %s194, 1
      %p198 = scmp.eq.s32.totalorder %s19, 1
      %p199 = scmp.ne.s32.totalorder %s194, %s196
      %p200 = scmp.eq.s32.totalorder %s19, 0
      %p201 = por %p199, %p200
      %p202 = scmp.ne.s32.totalorder %s194, %s196
      %p203 = scmp.eq.s32.totalorder %s24, 1
      %p204 = por %p202, %p203
      %p205 = scmp.ne.s32.totalorder %s196, %s197
      %p206 = scmp.eq.s32.totalorder %s24, 0
      %p207 = por %p205, %p206
      %p208 = scmp.ne.s32.totalorder %s196, %s197
      %p209 = scmp.eq.s32.totalorder %s25, 1
      %p210 = por %p208, %p209
      %p212 = scmp.ne.s32.totalorder %s197, %s211
      %p213 = scmp.eq.s32.totalorder %s25, 0
      %p214 = por %p212, %p213
      %s216 = sadd.s32 %s215, 1
      %p219 = scmp.eq.s32.totalorder %s19, 1
      %p220 = scmp.ne.s32.totalorder %s215, %s217
      %p221 = scmp.eq.s32.totalorder %s19, 0
      %p222 = por %p220, %p221
      %p223 = scmp.ne.s32.totalorder %s215, %s217
      %p224 = scmp.eq.s32.totalorder %s24, 1
      %p225 = por %p223, %p224
      %p226 = scmp.ne.s32.totalorder %s217, %s218
      %p227 = scmp.eq.s32.totalorder %s24, 0
      %p228 = por %p226, %p227
      %p229 = scmp.ne.s32.totalorder %s217, %s218
      %p230 = scmp.eq.s32.totalorder %s25, 1
      %p231 = por %p229, %p230
      %p233 = scmp.ne.s32.totalorder %s218, %s232
      %p234 = scmp.eq.s32.totalorder %s25, 0
      %p235 = por %p233, %p234
      %s237 = sadd.s32 %s236, 1
      %p240 = scmp.eq.s32.totalorder %s19, 1
      %p241 = scmp.ne.s32.totalorder %s236, %s238
      %p242 = scmp.eq.s32.totalorder %s19, 0
      %p243 = por %p241, %p242
      %p244 = scmp.ne.s32.totalorder %s236, %s238
      %p245 = scmp.eq.s32.totalorder %s24, 1
      %p246 = por %p244, %p245
      %p247 = scmp.ne.s32.totalorder %s238, %s239
      %p248 = scmp.eq.s32.totalorder %s24, 0
      %p249 = por %p247, %p248
      %p250 = scmp.ne.s32.totalorder %s238, %s239
      %p251 = scmp.eq.s32.totalorder %s25, 1
      %p252 = por %p250, %p251
      %p254 = scmp.ne.s32.totalorder %s239, %s253
      %p255 = scmp.eq.s32.totalorder %s25, 0
      %p256 = por %p254, %p255
      %s257 = ssub.s32 %s19, %s26
      %p258 = scmp.eq.s32.totalorder %s257, 0
      %s260 = sadd.s32 %s259, 1
      %s261 = scalar_select %p258, %s259, %s260
      %p264 = pneg %p258
      %p265 = scmp.eq.s32.totalorder %s19, 1
      %p266 = por %p264, %p265
      %p267 = scmp.ne.s32.totalorder %s259, %s262
      %p268 = scmp.eq.s32.totalorder %s19, 0
      %p269 = por %p267, %p268
      %p270 = scmp.ne.s32.totalorder %s259, %s262
      %p271 = scmp.eq.s32.totalorder %s24, 1
      %p272 = por %p270, %p271
      %p273 = scmp.ne.s32.totalorder %s262, %s263
      %p274 = scmp.eq.s32.totalorder %s24, 0
      %p275 = por %p273, %p274
      %p276 = scmp.ne.s32.totalorder %s262, %s263
      %p277 = scmp.eq.s32.totalorder %s25, 1
      %p278 = por %p276, %p277
      %p280 = scmp.ne.s32.totalorder %s263, %s279
      %p281 = scmp.eq.s32.totalorder %s25, 0
      %p282 = por %p280, %p281
      %p283 = scmp.le.s32.totalorder 1, %s19
      %p284 = scmp.lt.s32.totalorder %s19, 3
      %p285 = pnand %p283, %p284
      %p286 = pneg %p285
      // Predicated region
      $region9: #{se_init_block.1} parent=5 // pred_check
        _
      $region10: #{se_init_block.1} parent=5 // pred_check_branch
        %288 = sbr.rel (%p285) target = $region12
      $region11: #{se_init_block.1} parent=5 // pred_region
        %s289 = ssub.s32 %s19, 1
        // Predicated region
        $region13: #{se_init_block.1} parent=11 // pred_check
          %p290 = pneg %p144
        $region14: #{se_init_block.1} parent=11 // pred_check_branch
          %292 = sbr.rel (%p290) target = $region16
        $region15: #{se_init_block.1} parent=11 // pred_region
          _
        $region16: #{se_init_block.1} parent=11 // pred_fallthru
          _
        // Predicated region
        $region17: #{se_init_block.1} parent=11 // pred_check
          %p293 = pneg %p165
        $region18: #{se_init_block.1} parent=11 // pred_check_branch
          %295 = sbr.rel (%p293) target = $region20
        $region19: #{se_init_block.1} parent=11 // pred_region
          _
        $region20: #{se_init_block.1} parent=11 // pred_fallthru
          _
        // Predicated region
        $region21: #{se_init_block.1} parent=11 // pred_check
          %p296 = pneg %p186
        $region22: #{se_init_block.1} parent=11 // pred_check_branch
          %298 = sbr.rel (%p296) target = $region24
        $region23: #{se_init_block.1} parent=11 // pred_region
          _
        $region24: #{se_init_block.1} parent=11 // pred_fallthru
          _
        // Predicated region
        $region25: #{se_init_block.1} parent=11 // pred_check
          %p299 = pneg %p207
        $region26: #{se_init_block.1} parent=11 // pred_check_branch
          %301 = sbr.rel (%p299) target = $region28
        $region27: #{se_init_block.1} parent=11 // pred_region
          _
        $region28: #{se_init_block.1} parent=11 // pred_fallthru
          _
        // Predicated region
        $region29: #{se_init_block.1} parent=11 // pred_check
          %p302 = pneg %p228
        $region30: #{se_init_block.1} parent=11 // pred_check_branch
          %304 = sbr.rel (%p302) target = $region32
        $region31: #{se_init_block.1} parent=11 // pred_region
          _
        $region32: #{se_init_block.1} parent=11 // pred_fallthru
          _
        // Predicated region
        $region33: #{se_init_block.1} parent=11 // pred_check
          %p305 = pneg %p249
        $region34: #{se_init_block.1} parent=11 // pred_check_branch
          %307 = sbr.rel (%p305) target = $region36
        $region35: #{se_init_block.1} parent=11 // pred_region
          _
        $region36: #{se_init_block.1} parent=11 // pred_fallthru
          _
      $region12: #{se_init_block.1} parent=5 // pred_fallthru
        _
      %p308 = scmp.lt.s32.totalorder %s19, 2
      // Predicated region
      $region37: #{se_init_block.1} parent=5 // pred_check
        %p309 = pneg %p308
      $region38: #{se_init_block.1} parent=5 // pred_check_branch
        %311 = sbr.rel (%p309) target = $region40
      $region39: #{se_init_block.1} parent=5 // pred_region
        // Predicated region
        $region41: #{se_init_block.1} parent=39 // pred_check
          %p312 = pneg %p39
        $region42: #{se_init_block.1} parent=39 // pred_check_branch
          %314 = sbr.rel (%p312) target = $region44
        $region43: #{se_init_block.1} parent=39 // pred_region
          %p315 = scmp.lt.s32.totalorder %s19, 1
          %s316 = scalar_select %p315, %s19, 1
          %s317 = smul.addr %s316, 11
          %s318 = smul.addr %s317, 4
          %s319 = scalar_lea.vmem %s0, %s318
        $region44: #{se_init_block.1} parent=39 // pred_fallthru
          _
        // Predicated region
        $region45: #{se_init_block.1} parent=39 // pred_check
          %p320 = pneg %p65
        $region46: #{se_init_block.1} parent=39 // pred_check_branch
          %322 = sbr.rel (%p320) target = $region48
        $region47: #{se_init_block.1} parent=39 // pred_region
          %p323 = scmp.lt.s32.totalorder %s19, 1
          %s324 = scalar_select %p323, %s19, 1
          %s325 = smul.addr %s324, 11
          %s326 = smul.addr %s325, 4
          %s327 = scalar_lea.vmem %s1, %s326
        $region48: #{se_init_block.1} parent=39 // pred_fallthru
          _
        // Predicated region
        $region49: #{se_init_block.1} parent=39 // pred_check
          %p328 = pneg %p91
        $region50: #{se_init_block.1} parent=39 // pred_check_branch
          %330 = sbr.rel (%p328) target = $region52
        $region51: #{se_init_block.1} parent=39 // pred_region
          %p331 = scmp.lt.s32.totalorder %s19, 1
          %s332 = scalar_select %p331, %s19, 1
          %s333 = smul.addr %s332, 11
          %s334 = smul.addr %s333, 4
          %s335 = scalar_lea.vmem %s2, %s334
        $region52: #{se_init_block.1} parent=39 // pred_fallthru
          _
        // Predicated region
        $region53: #{se_init_block.1} parent=39 // pred_check
          %p336 = pneg %p117
        $region54: #{se_init_block.1} parent=39 // pred_check_branch
          %338 = sbr.rel (%p336) target = $region56
        $region55: #{se_init_block.1} parent=39 // pred_region
          %p339 = scmp.lt.s32.totalorder %s19, 1
          %s340 = scalar_select %p339, %s19, 1
          %s341 = smul.addr %s340, 11
          %s342 = smul.addr %s341, 4
          %s343 = scalar_lea.vmem %s3, %s342
        $region56: #{se_init_block.1} parent=39 // pred_fallthru
          _
      $region40: #{se_init_block.1} parent=5 // pred_fallthru
        _
      %p344 = scmp.le.s32.totalorder 1, %s19
      %p345 = scmp.lt.s32.totalorder %s19, 3
      %p346 = pnand %p344, %p345
      %p347 = pneg %p346
      // Predicated region
      $region57: #{se_init_block.1} parent=5 // pred_check
        _
      $region58: #{se_init_block.1} parent=5 // pred_check_branch
        %349 = sbr.rel (%p346) target = $region60
      $region59: #{se_init_block.1} parent=5 // pred_region
        %s350 = ssub.s32 %s19, 1
        %p351 = scmp.lt.s32.totalorder %s24, 1
        %s352 = scalar_select %p351, %s24, 1
        %s353 = smul.addr %s352, 11
        %s354 = smul.addr %s353, 4
        %s355 = scalar_lea.vmem %s0, %s354
        %p356 = pneg %p45
        %p357 = pneg %p42
        %p358 = scmp.lt.s32.totalorder %s24, 1
        %s359 = scalar_select %p358, %s24, 1
        %s360 = smul.addr %s359, 11
        %s361 = smul.addr %s360, 4
        %s362 = scalar_lea.vmem %s1, %s361
        %p363 = pneg %p71
        %p364 = pneg %p68
        %p365 = scmp.lt.s32.totalorder %s24, 1
        %s366 = scalar_select %p365, %s24, 1
        %s367 = smul.addr %s366, 11
        %s368 = smul.addr %s367, 4
        %s369 = scalar_lea.vmem %s2, %s368
        %p370 = pneg %p97
        %p371 = pneg %p94
        %p372 = scmp.lt.s32.totalorder %s24, 1
        %s373 = scalar_select %p372, %s24, 1
        %s374 = smul.addr %s373, 11
        %s375 = smul.addr %s374, 4
        %s376 = scalar_lea.vmem %s3, %s375
        %p377 = pneg %p123
        %p378 = pneg %p120
        %p379 = pneg %p144
        %p380 = pneg %p141
        %p381 = pneg %p165
        %p382 = pneg %p162
        %p383 = pneg %p186
        %p384 = pneg %p183
        %p385 = pneg %p207
        %p386 = pneg %p204
        %p387 = pneg %p228
        %p388 = pneg %p225
        %p389 = pneg %p249
        %p390 = pneg %p246
        %p391 = pneg %p275
        %p392 = pneg %p272
        %s393 = sand.u32 %s262, 1
        %s394 = scalar_lea.sflag [#allocation7], %s393
        %s395 = sand.u32 %s262, 1
        %s396 = smul.addr %s395, 16
        %s397 = scalar_lea.vmem [#allocation6], %s396
        %p398 = scmp.lt.s32.totalorder %s24, 1
        %s399 = scalar_select %p398, %s24, 1
        %s400 = smul.addr %s399, 11
        %s401 = smul.addr %s400, 4
        %s402 = scalar_lea.vmem %s0, %s401
        %p403 = scmp.lt.s32.totalorder %s24, 1
        %s404 = scalar_select %p403, %s24, 1
        %s405 = smul.addr %s404, 11
        %s406 = smul.addr %s405, 4
        %s407 = scalar_lea.vmem %s1, %s406
        %p408 = scmp.lt.s32.totalorder %s24, 1
        %s409 = scalar_select %p408, %s24, 1
        %s410 = smul.addr %s409, 11
        %s411 = smul.addr %s410, 4
        %s412 = scalar_lea.vmem %s2, %s411
        %p413 = scmp.lt.s32.totalorder %s24, 1
        %s414 = scalar_select %p413, %s24, 1
        %s415 = smul.addr %s414, 11
        %s416 = smul.addr %s415, 4
        %s417 = scalar_lea.vmem %s3, %s416
        %v419 = vld [vmem:[%s402] sm:$0xf]
        %v420 = vld [vmem:[%s402 + $0x4] sm:$0xf]
        %v421 = vld [vmem:[%s402 + $0x8] sm:$0xf]
        %v422 = vld [vmem:[%s402 + $0xc] sm:$0xf]
        %v423 = vld [vmem:[%s402 + $0x10] sm:$0xf]
        %v424 = vld [vmem:[%s402 + $0x14] sm:$0xf]
        %v425 = vld [vmem:[%s402 + $0x18] sm:$0xf]
        %v426 = vld [vmem:[%s402 + $0x1c] sm:$0xf]
        %v427 = vld [vmem:[%s402 + $0x20] sm:$0xf]
        %v428 = vld [vmem:[%s4] sm:$0x3]
        %v429 = vld [vmem:[%s407] sm:$0xf]
        %v430 = vld [vmem:[%s407 + $0x4] sm:$0xf]
        %v431 = vld [vmem:[%s407 + $0x8] sm:$0xf]
        %v432 = vld [vmem:[%s407 + $0xc] sm:$0xf]
        %v433 = vld [vmem:[%s407 + $0x10] sm:$0xf]
        %v434 = vld [vmem:[%s407 + $0x14] sm:$0xf]
        %v435 = vld [vmem:[%s407 + $0x18] sm:$0xf]
        %v436 = vld [vmem:[%s407 + $0x1c] sm:$0xf]
        %v437 = vld [vmem:[%s407 + $0x20] sm:$0xf]
        %s438 = scalar_lea.vmem %s4, 2
        %v439 = vld [vmem:[%s438] sm:$0x3]
        %v449 = vunpack.c.l.b16 %v429
        %v450 = vunpack.c.l.b16 %v430
        %v451 = vunpack.c.l.b16 %v431
        %v452 = vunpack.c.l.b16 %v432
        %v453 = vunpack.c.l.b16 %v433
        %v454 = vunpack.c.l.b16 %v434
        %v455 = vunpack.c.l.b16 %v435
        %v456 = vunpack.c.l.b16 %v436
        %v457 = vunpack.c.l.b16 %v437
        %v458 = vpack.c.b16 %v450, %v449
        %v459 = vpack.c.b16 %v452, %v451
        %v460 = vpack.c.b16 %v454, %v453
        %v461 = vpack.c.b16 %v456, %v455
        %v462 = vpack.c.b16 %v457, %v457
        %vm463 = vcmask 31744
        %v465 = vsel %vm463, %v458, 0
        %v468 = vsel %vm463, %v459, 0
        %v471 = vsel %vm463, %v460, 0
        %v474 = vsel %vm463, %v461, 0
        %v477 = vsel %vm463, %v462, 0
        %vm479 = vcmask 1041408
        %v481 = vsel %vm479, %v439, 0
        %483 = vmatprep.subr.bf16.mxu0 0
        %484 = vmatpush1.bf16.msra.mxu0 0
        %485 = vmatprep.subr.bf16.mxu0 0
        %486 = vmatpush1.bf16.msra.mxu0 0
        %487 = vmatprep.subr.bf16.mxu0 0
        %488 = vmatpush1.bf16.msra.mxu0 0
        %489 = vmatprep.subr.bf16.mxu0 0
        %490 = vmatpush1.bf16.msra.mxu0 0
        %491 = vmatprep.subr.bf16.mxu0 0
        %492 = vmatpush1.bf16.msra.mxu0 0
        %493 = vmatprep.subr.bf16.mxu0 0
        %494 = vmatpush1.bf16.msra.mxu0 0
        %495 = vmatprep.subr.bf16.mxu0 0
        %496 = vmatpush1.bf16.msra.mxu0 0
        %497 = vmatprep.subr.bf16.mxu0 0
        %498 = vmatpush1.bf16.msra.mxu0 %v481
        %499 = vmatprep.subr.bf16.mxu0 0
        %500 = vmatpush2.bf16.msra.mxu0 0
        %501 = vmatprep.subr.bf16.mxu0 0
        %502 = vmatpush2.bf16.msra.mxu0 0
        %503 = vmatprep.subr.bf16.mxu0 0
        %504 = vmatpush2.bf16.msra.mxu0 0
        %505 = vmatprep.subr.bf16.mxu0 0
        %506 = vmatpush2.bf16.msra.mxu0 0
        %507 = vmatprep.subr.bf16.mxu0 0
        %508 = vmatpush2.bf16.msra.mxu0 0
        %509 = vmatprep.subr.bf16.mxu0 0
        %510 = vmatpush2.bf16.msra.mxu0 0
        %511 = vmatprep.subr.bf16.mxu0 0
        %512 = vmatpush2.bf16.msra.mxu0 0
        %513 = vmatprep.subr.bf16.mxu0 0
        %514 = vmatpush2.bf16.msra.mxu0 0
        %515 = vmatprep.mubr.bf16.mxu0 0
        %516 = vmatmul.mubr.bf16.gmra.mxu0 %v465
        %v517 = vpop.f32.mrf.mxu0
        %v518 = vadd.f32 0.0, %v517
        %v519 = vpop.f32.mrf.mxu0
        %v520 = vpop.f32.mrf.mxu0
        %v521 = vadd.f32 0.0, %v520
        %v522 = vpop.f32.mrf.mxu0
        %523 = vmatprep.mubr.bf16.mxu0 0
        %524 = vmatmul.mubr.bf16.gmra.mxu0 %v468
        %v525 = vpop.f32.mrf.mxu0
        %v526 = vadd.f32 0.0, %v525
        %v527 = vpop.f32.mrf.mxu0
        %v528 = vpop.f32.mrf.mxu0
        %v529 = vadd.f32 0.0, %v528
        %v530 = vpop.f32.mrf.mxu0
        %531 = vmatprep.mubr.bf16.mxu0 0
        %532 = vmatmul.mubr.bf16.gmra.mxu0 %v471
        %v533 = vpop.f32.mrf.mxu0
        %v534 = vadd.f32 0.0, %v533
        %v535 = vpop.f32.mrf.mxu0
        %v536 = vpop.f32.mrf.mxu0
        %v537 = vadd.f32 0.0, %v536
        %v538 = vpop.f32.mrf.mxu0
        %539 = vmatprep.mubr.bf16.mxu0 0
        %540 = vmatmul.mubr.bf16.gmra.mxu0 %v474
        %v541 = vpop.f32.mrf.mxu0
        %v542 = vadd.f32 0.0, %v541
        %v543 = vpop.f32.mrf.mxu0
        %v544 = vpop.f32.mrf.mxu0
        %v545 = vadd.f32 0.0, %v544
        %v546 = vpop.f32.mrf.mxu0
        %547 = vmatprep.mubr.bf16.mxu0 0
        %548 = vmatmul.mubr.bf16.gmra.mxu0 %v477
        %v549 = vpop.f32.mrf.mxu0
        %v550 = vadd.f32 0.0, %v549
        %v551 = vpop.f32.mrf.mxu0
        %v552 = vpop.f32.mrf.mxu0
        %v553 = vpop.f32.mrf.mxu0
        %554 = vdwg.mxu0
        %v564 = vunpack.c.l.b16 %v419
        %v565 = vunpack.c.l.b16 %v420
        %v566 = vunpack.c.l.b16 %v421
        %v567 = vunpack.c.l.b16 %v422
        %v568 = vunpack.c.l.b16 %v423
        %v569 = vunpack.c.l.b16 %v424
        %v570 = vunpack.c.l.b16 %v425
        %v571 = vunpack.c.l.b16 %v426
        %v572 = vunpack.c.l.b16 %v427
        %v573 = vpack.c.b16 %v565, %v564
        %v574 = vpack.c.b16 %v567, %v566
        %v575 = vpack.c.b16 %v569, %v568
        %v576 = vpack.c.b16 %v571, %v570
        %v577 = vpack.c.b16 %v572, %v572
        %v579 = vsel %vm463, %v573, 0
        %v582 = vsel %vm463, %v574, 0
        %v585 = vsel %vm463, %v575, 0
        %v588 = vsel %vm463, %v576, 0
        %v591 = vsel %vm463, %v577, 0
        %v594 = vsel %vm479, %v428, 0
        %596 = vmatprep.subr.bf16.mxu0 0
        %597 = vmatpush1.bf16.msra.mxu0 0
        %598 = vmatprep.subr.bf16.mxu0 0
        %599 = vmatpush1.bf16.msra.mxu0 0
        %600 = vmatprep.subr.bf16.mxu0 0
        %601 = vmatpush1.bf16.msra.mxu0 0
        %602 = vmatprep.subr.bf16.mxu0 0
        %603 = vmatpush1.bf16.msra.mxu0 0
        %604 = vmatprep.subr.bf16.mxu0 0
        %605 = vmatpush1.bf16.msra.mxu0 0
        %606 = vmatprep.subr.bf16.mxu0 0
        %607 = vmatpush1.bf16.msra.mxu0 0
        %608 = vmatprep.subr.bf16.mxu0 0
        %609 = vmatpush1.bf16.msra.mxu0 0
        %610 = vmatprep.subr.bf16.mxu0 0
        %611 = vmatpush1.bf16.msra.mxu0 %v594
        %612 = vmatprep.subr.bf16.mxu0 0
        %613 = vmatpush2.bf16.msra.mxu0 0
        %614 = vmatprep.subr.bf16.mxu0 0
        %615 = vmatpush2.bf16.msra.mxu0 0
        %616 = vmatprep.subr.bf16.mxu0 0
        %617 = vmatpush2.bf16.msra.mxu0 0
        %618 = vmatprep.subr.bf16.mxu0 0
        %619 = vmatpush2.bf16.msra.mxu0 0
        %620 = vmatprep.subr.bf16.mxu0 0
        %621 = vmatpush2.bf16.msra.mxu0 0
        %622 = vmatprep.subr.bf16.mxu0 0
        %623 = vmatpush2.bf16.msra.mxu0 0
        %624 = vmatprep.subr.bf16.mxu0 0
        %625 = vmatpush2.bf16.msra.mxu0 0
        %626 = vmatprep.subr.bf16.mxu0 0
        %627 = vmatpush2.bf16.msra.mxu0 0
        %628 = vmatprep.mubr.bf16.mxu0 0
        %629 = vmatmul.mubr.bf16.gmra.mxu0 %v579
        %v630 = vpop.f32.mrf.mxu0
        %v631 = vadd.f32 %v518, %v630
        %v632 = vpop.f32.mrf.mxu0
        %v633 = vpop.f32.mrf.mxu0
        %v634 = vadd.f32 %v521, %v633
        %v635 = vpop.f32.mrf.mxu0
        %636 = vmatprep.mubr.bf16.mxu0 0
        %637 = vmatmul.mubr.bf16.gmra.mxu0 %v582
        %v638 = vpop.f32.mrf.mxu0
        %v639 = vadd.f32 %v526, %v638
        %v640 = vpop.f32.mrf.mxu0
        %v641 = vpop.f32.mrf.mxu0
        %v642 = vadd.f32 %v529, %v641
        %v643 = vpop.f32.mrf.mxu0
        %644 = vmatprep.mubr.bf16.mxu0 0
        %645 = vmatmul.mubr.bf16.gmra.mxu0 %v585
        %v646 = vpop.f32.mrf.mxu0
        %v647 = vadd.f32 %v534, %v646
        %v648 = vpop.f32.mrf.mxu0
        %v649 = vpop.f32.mrf.mxu0
        %v650 = vadd.f32 %v537, %v649
        %v651 = vpop.f32.mrf.mxu0
        %652 = vmatprep.mubr.bf16.mxu0 0
        %653 = vmatmul.mubr.bf16.gmra.mxu0 %v588
        %v654 = vpop.f32.mrf.mxu0
        %v655 = vadd.f32 %v542, %v654
        %v656 = vpop.f32.mrf.mxu0
        %v657 = vpop.f32.mrf.mxu0
        %v658 = vadd.f32 %v545, %v657
        %v659 = vpop.f32.mrf.mxu0
        %660 = vmatprep.mubr.bf16.mxu0 0
        %661 = vmatmul.mubr.bf16.gmra.mxu0 %v591
        %v662 = vpop.f32.mrf.mxu0
        %v663 = vadd.f32 %v550, %v662
        %v664 = vpop.f32.mrf.mxu0
        %v665 = vpop.f32.mrf.mxu0
        %v666 = vpop.f32.mrf.mxu0
        %667 = vdwg.mxu0
        %v668 = vld [vmem:[%s402] sm:$0xf]
        %v669 = vld [vmem:[%s402 + $0x4] sm:$0xf]
        %v670 = vld [vmem:[%s402 + $0x8] sm:$0xf]
        %v671 = vld [vmem:[%s402 + $0xc] sm:$0xf]
        %v672 = vld [vmem:[%s402 + $0x10] sm:$0xf]
        %v673 = vld [vmem:[%s402 + $0x14] sm:$0xf]
        %v674 = vld [vmem:[%s402 + $0x18] sm:$0xf]
        %v675 = vld [vmem:[%s402 + $0x1c] sm:$0xf]
        %v676 = vld [vmem:[%s402 + $0x20] sm:$0xf]
        %v677 = vld [vmem:[%s402 + $0x24] sm:$0x1]
        %s678 = scalar_lea.vmem %s4, 4
        %v679 = vld [vmem:[%s678] sm:$0x3]
        %v690 = vunpack.c.l.b16 %v668
        %v691 = vunpack.c.l.b16 %v669
        %v692 = vunpack.c.l.b16 %v670
        %v693 = vunpack.c.l.b16 %v671
        %v694 = vunpack.c.l.b16 %v672
        %v695 = vunpack.c.l.b16 %v673
        %v696 = vunpack.c.l.b16 %v674
        %v697 = vunpack.c.l.b16 %v675
        %v698 = vunpack.c.l.b16 %v676
        %v699 = vunpack.c.l.b16 %v677
        %v700 = vpack.c.b16 %v691, %v690
        %v701 = vpack.c.b16 %v693, %v692
        %v702 = vpack.c.b16 %v695, %v694
        %v703 = vpack.c.b16 %v697, %v696
        %v704 = vpack.c.b16 %v699, %v698
        %vm705 = vsmask.f32 7424
        %v707 = vshrl.u32 %v700, 16
        %v709 = vshll.u32 %v700, 16
        %v711 = vrot.slane %v709, 1
        %v712 = vor.u32 %v707, %v711
        %v714 = vshll.u32 %v701, 16
        %v716 = vrot.slane %v714, 1
        %v717 = vsel %vm705, %v712, %v716
        %v718 = vshrl.u32 %v701, 16
        %v720 = vor.u32 %v718, %v716
        %v722 = vshll.u32 %v702, 16
        %v724 = vrot.slane %v722, 1
        %v725 = vsel %vm705, %v720, %v724
        %v726 = vshrl.u32 %v702, 16
        %v728 = vor.u32 %v726, %v724
        %v730 = vshll.u32 %v703, 16
        %v732 = vrot.slane %v730, 1
        %v733 = vsel %vm705, %v728, %v732
        %v734 = vshrl.u32 %v703, 16
        %v736 = vor.u32 %v734, %v732
        %v738 = vshll.u32 %v704, 16
        %v740 = vrot.slane %v738, 1
        %v741 = vsel %vm705, %v736, %v740
        %v742 = vshrl.u32 %v704, 16
        %v744 = vor.u32 %v742, %v740
        %v746 = vsel %vm463, %v717, 0
        %v749 = vsel %vm463, %v725, 0
        %v752 = vsel %vm463, %v733, 0
        %v755 = vsel %vm463, %v741, 0
        %v758 = vsel %vm463, %v744, 0
        %v761 = vsel %vm479, %v679, 0
        %763 = vmatprep.subr.bf16.mxu0 0
        %764 = vmatpush1.bf16.msra.mxu0 0
        %765 = vmatprep.subr.bf16.mxu0 0
        %766 = vmatpush1.bf16.msra.mxu0 0
        %767 = vmatprep.subr.bf16.mxu0 0
        %768 = vmatpush1.bf16.msra.mxu0 0
        %769 = vmatprep.subr.bf16.mxu0 0
        %770 = vmatpush1.bf16.msra.mxu0 0
        %771 = vmatprep.subr.bf16.mxu0 0
        %772 = vmatpush1.bf16.msra.mxu0 0
        %773 = vmatprep.subr.bf16.mxu0 0
        %774 = vmatpush1.bf16.msra.mxu0 0
        %775 = vmatprep.subr.bf16.mxu0 0
        %776 = vmatpush1.bf16.msra.mxu0 0
        %777 = vmatprep.subr.bf16.mxu0 0
        %778 = vmatpush1.bf16.msra.mxu0 %v761
        %779 = vmatprep.subr.bf16.mxu0 0
        %780 = vmatpush2.bf16.msra.mxu0 0
        %781 = vmatprep.subr.bf16.mxu0 0
        %782 = vmatpush2.bf16.msra.mxu0 0
        %783 = vmatprep.subr.bf16.mxu0 0
        %784 = vmatpush2.bf16.msra.mxu0 0
        %785 = vmatprep.subr.bf16.mxu0 0
        %786 = vmatpush2.bf16.msra.mxu0 0
        %787 = vmatprep.subr.bf16.mxu0 0
        %788 = vmatpush2.bf16.msra.mxu0 0
        %789 = vmatprep.subr.bf16.mxu0 0
        %790 = vmatpush2.bf16.msra.mxu0 0
        %791 = vmatprep.subr.bf16.mxu0 0
        %792 = vmatpush2.bf16.msra.mxu0 0
        %793 = vmatprep.subr.bf16.mxu0 0
        %794 = vmatpush2.bf16.msra.mxu0 0
        %795 = vmatprep.mubr.bf16.mxu0 0
        %796 = vmatmul.mubr.bf16.gmra.mxu0 %v746
        %v797 = vpop.f32.mrf.mxu0
        %v798 = vadd.f32 0.0, %v797
        %v799 = vpop.f32.mrf.mxu0
        %v800 = vpop.f32.mrf.mxu0
        %v801 = vadd.f32 0.0, %v800
        %v802 = vpop.f32.mrf.mxu0
        %803 = vmatprep.mubr.bf16.mxu0 0
        %804 = vmatmul.mubr.bf16.gmra.mxu0 %v749
        %v805 = vpop.f32.mrf.mxu0
        %v806 = vadd.f32 0.0, %v805
        %v807 = vpop.f32.mrf.mxu0
        %v808 = vpop.f32.mrf.mxu0
        %v809 = vadd.f32 0.0, %v808
        %v810 = vpop.f32.mrf.mxu0
        %811 = vmatprep.mubr.bf16.mxu0 0
        %812 = vmatmul.mubr.bf16.gmra.mxu0 %v752
        %v813 = vpop.f32.mrf.mxu0
        %v814 = vadd.f32 0.0, %v813
        %v815 = vpop.f32.mrf.mxu0
        %v816 = vpop.f32.mrf.mxu0
        %v817 = vadd.f32 0.0, %v816
        %v818 = vpop.f32.mrf.mxu0
        %819 = vmatprep.mubr.bf16.mxu0 0
        %820 = vmatmul.mubr.bf16.gmra.mxu0 %v755
        %v821 = vpop.f32.mrf.mxu0
        %v822 = vadd.f32 0.0, %v821
        %v823 = vpop.f32.mrf.mxu0
        %v824 = vpop.f32.mrf.mxu0
        %v825 = vadd.f32 0.0, %v824
        %v826 = vpop.f32.mrf.mxu0
        %827 = vmatprep.mubr.bf16.mxu0 0
        %828 = vmatmul.mubr.bf16.gmra.mxu0 %v758
        %v829 = vpop.f32.mrf.mxu0
        %v830 = vadd.f32 0.0, %v829
        %v831 = vpop.f32.mrf.mxu0
        %v832 = vpop.f32.mrf.mxu0
        %v833 = vpop.f32.mrf.mxu0
        %834 = vdwg.mxu0
        %v835 = vadd.f32 %v631, %v798
        %v836 = vadd.f32 %v634, %v801
        %v837 = vadd.f32 %v639, %v806
        %v838 = vadd.f32 %v642, %v809
        %v839 = vadd.f32 %v647, %v814
        %v840 = vadd.f32 %v650, %v817
        %v841 = vadd.f32 %v655, %v822
        %v842 = vadd.f32 %v658, %v825
        %v843 = vadd.f32 %v663, %v830
        %v844 = vld [vmem:[%s412] sm:$0xf]
        %v845 = vld [vmem:[%s412 + $0x4] sm:$0xf]
        %v846 = vld [vmem:[%s412 + $0x8] sm:$0xf]
        %v847 = vld [vmem:[%s412 + $0xc] sm:$0xf]
        %v848 = vld [vmem:[%s412 + $0x10] sm:$0xf]
        %v849 = vld [vmem:[%s412 + $0x14] sm:$0xf]
        %v850 = vld [vmem:[%s412 + $0x18] sm:$0xf]
        %v851 = vld [vmem:[%s412 + $0x1c] sm:$0xf]
        %v852 = vld [vmem:[%s412 + $0x20] sm:$0xf]
        %s853 = scalar_lea.vmem %s4, 6
        %v854 = vld [vmem:[%s853] sm:$0x3]
        %v864 = vunpack.c.l.b16 %v844
        %v865 = vunpack.c.l.b16 %v845
        %v866 = vunpack.c.l.b16 %v846
        %v867 = vunpack.c.l.b16 %v847
        %v868 = vunpack.c.l.b16 %v848
        %v869 = vunpack.c.l.b16 %v849
        %v870 = vunpack.c.l.b16 %v850
        %v871 = vunpack.c.l.b16 %v851
        %v872 = vunpack.c.l.b16 %v852
        %v873 = vpack.c.b16 %v865, %v864
        %v874 = vpack.c.b16 %v867, %v866
        %v875 = vpack.c.b16 %v869, %v868
        %v876 = vpack.c.b16 %v871, %v870
        %v877 = vpack.c.b16 %v872, %v872
        %v879 = vsel %vm463, %v873, 0
        %v882 = vsel %vm463, %v874, 0
        %v885 = vsel %vm463, %v875, 0
        %v888 = vsel %vm463, %v876, 0
        %v891 = vsel %vm463, %v877, 0
        %v894 = vsel %vm479, %v854, 0
        %896 = vmatprep.subr.bf16.mxu0 0
        %897 = vmatpush1.bf16.msra.mxu0 0
        %898 = vmatprep.subr.bf16.mxu0 0
        %899 = vmatpush1.bf16.msra.mxu0 0
        %900 = vmatprep.subr.bf16.mxu0 0
        %901 = vmatpush1.bf16.msra.mxu0 0
        %902 = vmatprep.subr.bf16.mxu0 0
        %903 = vmatpush1.bf16.msra.mxu0 0
        %904 = vmatprep.subr.bf16.mxu0 0
        %905 = vmatpush1.bf16.msra.mxu0 0
        %906 = vmatprep.subr.bf16.mxu0 0
        %907 = vmatpush1.bf16.msra.mxu0 0
        %908 = vmatprep.subr.bf16.mxu0 0
        %909 = vmatpush1.bf16.msra.mxu0 0
        %910 = vmatprep.subr.bf16.mxu0 0
        %911 = vmatpush1.bf16.msra.mxu0 %v894
        %912 = vmatprep.subr.bf16.mxu0 0
        %913 = vmatpush2.bf16.msra.mxu0 0
        %914 = vmatprep.subr.bf16.mxu0 0
        %915 = vmatpush2.bf16.msra.mxu0 0
        %916 = vmatprep.subr.bf16.mxu0 0
        %917 = vmatpush2.bf16.msra.mxu0 0
        %918 = vmatprep.subr.bf16.mxu0 0
        %919 = vmatpush2.bf16.msra.mxu0 0
        %920 = vmatprep.subr.bf16.mxu0 0
        %921 = vmatpush2.bf16.msra.mxu0 0
        %922 = vmatprep.subr.bf16.mxu0 0
        %923 = vmatpush2.bf16.msra.mxu0 0
        %924 = vmatprep.subr.bf16.mxu0 0
        %925 = vmatpush2.bf16.msra.mxu0 0
        %926 = vmatprep.subr.bf16.mxu0 0
        %927 = vmatpush2.bf16.msra.mxu0 0
        %928 = vmatprep.mubr.bf16.mxu0 0
        %929 = vmatmul.mubr.bf16.gmra.mxu0 %v879
        %v930 = vpop.f32.mrf.mxu0
        %v931 = vadd.f32 0.0, %v930
        %v932 = vpop.f32.mrf.mxu0
        %v933 = vpop.f32.mrf.mxu0
        %v934 = vadd.f32 0.0, %v933
        %v935 = vpop.f32.mrf.mxu0
        %936 = vmatprep.mubr.bf16.mxu0 0
        %937 = vmatmul.mubr.bf16.gmra.mxu0 %v882
        %v938 = vpop.f32.mrf.mxu0
        %v939 = vadd.f32 0.0, %v938
        %v940 = vpop.f32.mrf.mxu0
        %v941 = vpop.f32.mrf.mxu0
        %v942 = vadd.f32 0.0, %v941
        %v943 = vpop.f32.mrf.mxu0
        %944 = vmatprep.mubr.bf16.mxu0 0
        %945 = vmatmul.mubr.bf16.gmra.mxu0 %v885
        %v946 = vpop.f32.mrf.mxu0
        %v947 = vadd.f32 0.0, %v946
        %v948 = vpop.f32.mrf.mxu0
        %v949 = vpop.f32.mrf.mxu0
        %v950 = vadd.f32 0.0, %v949
        %v951 = vpop.f32.mrf.mxu0
        %952 = vmatprep.mubr.bf16.mxu0 0
        %953 = vmatmul.mubr.bf16.gmra.mxu0 %v888
        %v954 = vpop.f32.mrf.mxu0
        %v955 = vadd.f32 0.0, %v954
        %v956 = vpop.f32.mrf.mxu0
        %v957 = vpop.f32.mrf.mxu0
        %v958 = vadd.f32 0.0, %v957
        %v959 = vpop.f32.mrf.mxu0
        %960 = vmatprep.mubr.bf16.mxu0 0
        %961 = vmatmul.mubr.bf16.gmra.mxu0 %v891
        %v962 = vpop.f32.mrf.mxu0
        %v963 = vadd.f32 0.0, %v962
        %v964 = vpop.f32.mrf.mxu0
        %v965 = vpop.f32.mrf.mxu0
        %v966 = vpop.f32.mrf.mxu0
        %967 = vdwg.mxu0
        %v968 = vadd.f32 %v835, %v931
        %v969 = vadd.f32 %v836, %v934
        %v970 = vadd.f32 %v837, %v939
        %v971 = vadd.f32 %v838, %v942
        %v972 = vadd.f32 %v839, %v947
        %v973 = vadd.f32 %v840, %v950
        %v974 = vadd.f32 %v841, %v955
        %v975 = vadd.f32 %v842, %v958
        %v976 = vadd.f32 %v843, %v963
        %v977 = vld [vmem:[%s417] sm:$0xf]
        %v978 = vld [vmem:[%s417 + $0x4] sm:$0xf]
        %v979 = vld [vmem:[%s417 + $0x8] sm:$0xf]
        %v980 = vld [vmem:[%s417 + $0xc] sm:$0xf]
        %v981 = vld [vmem:[%s417 + $0x10] sm:$0xf]
        %v982 = vld [vmem:[%s417 + $0x14] sm:$0xf]
        %v983 = vld [vmem:[%s417 + $0x18] sm:$0xf]
        %v984 = vld [vmem:[%s417 + $0x1c] sm:$0xf]
        %v985 = vld [vmem:[%s417 + $0x20] sm:$0xf]
        %s986 = scalar_lea.vmem %s4, 8
        %v987 = vld [vmem:[%s986] sm:$0x3]
        %v997 = vunpack.c.l.b16 %v977
        %v998 = vunpack.c.l.b16 %v978
        %v999 = vunpack.c.l.b16 %v979
        %v1000 = vunpack.c.l.b16 %v980
        %v1001 = vunpack.c.l.b16 %v981
        %v1002 = vunpack.c.l.b16 %v982
        %v1003 = vunpack.c.l.b16 %v983
        %v1004 = vunpack.c.l.b16 %v984
        %v1005 = vunpack.c.l.b16 %v985
        %v1006 = vpack.c.b16 %v998, %v997
        %v1007 = vpack.c.b16 %v1000, %v999
        %v1008 = vpack.c.b16 %v1002, %v1001
        %v1009 = vpack.c.b16 %v1004, %v1003
        %v1010 = vpack.c.b16 %v1005, %v1005
        %v1012 = vsel %vm463, %v1006, 0
        %v1015 = vsel %vm463, %v1007, 0
        %v1018 = vsel %vm463, %v1008, 0
        %v1021 = vsel %vm463, %v1009, 0
        %v1024 = vsel %vm463, %v1010, 0
        %v1027 = vsel %vm479, %v987, 0
        %1029 = vmatprep.subr.bf16.mxu0 0
        %1030 = vmatpush1.bf16.msra.mxu0 0
        %1031 = vmatprep.subr.bf16.mxu0 0
        %1032 = vmatpush1.bf16.msra.mxu0 0
        %1033 = vmatprep.subr.bf16.mxu0 0
        %1034 = vmatpush1.bf16.msra.mxu0 0
        %1035 = vmatprep.subr.bf16.mxu0 0
        %1036 = vmatpush1.bf16.msra.mxu0 0
        %1037 = vmatprep.subr.bf16.mxu0 0
        %1038 = vmatpush1.bf16.msra.mxu0 0
        %1039 = vmatprep.subr.bf16.mxu0 0
        %1040 = vmatpush1.bf16.msra.mxu0 0
        %1041 = vmatprep.subr.bf16.mxu0 0
        %1042 = vmatpush1.bf16.msra.mxu0 0
        %1043 = vmatprep.subr.bf16.mxu0 0
        %1044 = vmatpush1.bf16.msra.mxu0 %v1027
        %1045 = vmatprep.subr.bf16.mxu0 0
        %1046 = vmatpush2.bf16.msra.mxu0 0
        %1047 = vmatprep.subr.bf16.mxu0 0
        %1048 = vmatpush2.bf16.msra.mxu0 0
        %1049 = vmatprep.subr.bf16.mxu0 0
        %1050 = vmatpush2.bf16.msra.mxu0 0
        %1051 = vmatprep.subr.bf16.mxu0 0
        %1052 = vmatpush2.bf16.msra.mxu0 0
        %1053 = vmatprep.subr.bf16.mxu0 0
        %1054 = vmatpush2.bf16.msra.mxu0 0
        %1055 = vmatprep.subr.bf16.mxu0 0
        %1056 = vmatpush2.bf16.msra.mxu0 0
        %1057 = vmatprep.subr.bf16.mxu0 0
        %1058 = vmatpush2.bf16.msra.mxu0 0
        %1059 = vmatprep.subr.bf16.mxu0 0
        %1060 = vmatpush2.bf16.msra.mxu0 0
        %1061 = vmatprep.mubr.bf16.mxu0 0
        %1062 = vmatmul.mubr.bf16.gmra.mxu0 %v1012
        %v1063 = vpop.f32.mrf.mxu0
        %v1064 = vadd.f32 0.0, %v1063
        %v1065 = vpop.f32.mrf.mxu0
        %v1066 = vpop.f32.mrf.mxu0
        %v1067 = vadd.f32 0.0, %v1066
        %v1068 = vpop.f32.mrf.mxu0
        %1069 = vmatprep.mubr.bf16.mxu0 0
        %1070 = vmatmul.mubr.bf16.gmra.mxu0 %v1015
        %v1071 = vpop.f32.mrf.mxu0
        %v1072 = vadd.f32 0.0, %v1071
        %v1073 = vpop.f32.mrf.mxu0
        %v1074 = vpop.f32.mrf.mxu0
        %v1075 = vadd.f32 0.0, %v1074
        %v1076 = vpop.f32.mrf.mxu0
        %1077 = vmatprep.mubr.bf16.mxu0 0
        %1078 = vmatmul.mubr.bf16.gmra.mxu0 %v1018
        %v1079 = vpop.f32.mrf.mxu0
        %v1080 = vadd.f32 0.0, %v1079
        %v1081 = vpop.f32.mrf.mxu0
        %v1082 = vpop.f32.mrf.mxu0
        %v1083 = vadd.f32 0.0, %v1082
        %v1084 = vpop.f32.mrf.mxu0
        %1085 = vmatprep.mubr.bf16.mxu0 0
        %1086 = vmatmul.mubr.bf16.gmra.mxu0 %v1021
        %v1087 = vpop.f32.mrf.mxu0
        %v1088 = vadd.f32 0.0, %v1087
        %v1089 = vpop.f32.mrf.mxu0
        %v1090 = vpop.f32.mrf.mxu0
        %v1091 = vadd.f32 0.0, %v1090
        %v1092 = vpop.f32.mrf.mxu0
        %1093 = vmatprep.mubr.bf16.mxu0 0
        %1094 = vmatmul.mubr.bf16.gmra.mxu0 %v1024
        %v1095 = vpop.f32.mrf.mxu0
        %v1096 = vadd.f32 0.0, %v1095
        %v1097 = vpop.f32.mrf.mxu0
        %v1098 = vpop.f32.mrf.mxu0
        %v1099 = vpop.f32.mrf.mxu0
        %1100 = vdwg.mxu0
        %v1101 = vadd.f32 %v968, %v1064
        %v1102 = vadd.f32 %v969, %v1067
        %v1103 = vadd.f32 %v970, %v1072
        %v1104 = vadd.f32 %v971, %v1075
        %v1105 = vadd.f32 %v972, %v1080
        %v1106 = vadd.f32 %v973, %v1083
        %v1107 = vadd.f32 %v974, %v1088
        %v1108 = vadd.f32 %v975, %v1091
        %v1109 = vadd.f32 %v976, %v1096
        %v1110 = vld [vmem:[%s412] sm:$0xf]
        %v1111 = vld [vmem:[%s412 + $0x4] sm:$0xf]
        %v1112 = vld [vmem:[%s412 + $0x8] sm:$0xf]
        %v1113 = vld [vmem:[%s412 + $0xc] sm:$0xf]
        %v1114 = vld [vmem:[%s412 + $0x10] sm:$0xf]
        %v1115 = vld [vmem:[%s412 + $0x14] sm:$0xf]
        %v1116 = vld [vmem:[%s412 + $0x18] sm:$0xf]
        %v1117 = vld [vmem:[%s412 + $0x1c] sm:$0xf]
        %v1118 = vld [vmem:[%s412 + $0x20] sm:$0xf]
        %v1119 = vld [vmem:[%s412 + $0x24] sm:$0x1]
        %s1120 = scalar_lea.vmem %s4, 10
        %v1121 = vld [vmem:[%s1120] sm:$0x3]
        %v1132 = vunpack.c.l.b16 %v1110
        %v1133 = vunpack.c.l.b16 %v1111
        %v1134 = vunpack.c.l.b16 %v1112
        %v1135 = vunpack.c.l.b16 %v1113
        %v1136 = vunpack.c.l.b16 %v1114
        %v1137 = vunpack.c.l.b16 %v1115
        %v1138 = vunpack.c.l.b16 %v1116
        %v1139 = vunpack.c.l.b16 %v1117
        %v1140 = vunpack.c.l.b16 %v1118
        %v1141 = vunpack.c.l.b16 %v1119
        %v1142 = vpack.c.b16 %v1133, %v1132
        %v1143 = vpack.c.b16 %v1135, %v1134
        %v1144 = vpack.c.b16 %v1137, %v1136
        %v1145 = vpack.c.b16 %v1139, %v1138
        %v1146 = vpack.c.b16 %v1141, %v1140
        %v1148 = vshrl.u32 %v1142, 16
        %v1150 = vshll.u32 %v1142, 16
        %v1152 = vrot.slane %v1150, 1
        %v1153 = vor.u32 %v1148, %v1152
        %v1155 = vshll.u32 %v1143, 16
        %v1157 = vrot.slane %v1155, 1
        %v1158 = vsel %vm705, %v1153, %v1157
        %v1159 = vshrl.u32 %v1143, 16
        %v1161 = vor.u32 %v1159, %v1157
        %v1163 = vshll.u32 %v1144, 16
        %v1165 = vrot.slane %v1163, 1
        %v1166 = vsel %vm705, %v1161, %v1165
        %v1167 = vshrl.u32 %v1144, 16
        %v1169 = vor.u32 %v1167, %v1165
        %v1171 = vshll.u32 %v1145, 16
        %v1173 = vrot.slane %v1171, 1
        %v1174 = vsel %vm705, %v1169, %v1173
        %v1175 = vshrl.u32 %v1145, 16
        %v1177 = vor.u32 %v1175, %v1173
        %v1179 = vshll.u32 %v1146, 16
        %v1181 = vrot.slane %v1179, 1
        %v1182 = vsel %vm705, %v1177, %v1181
        %v1183 = vshrl.u32 %v1146, 16
        %v1185 = vor.u32 %v1183, %v1181
        %v1187 = vsel %vm463, %v1158, 0
        %v1190 = vsel %vm463, %v1166, 0
        %v1193 = vsel %vm463, %v1174, 0
        %v1196 = vsel %vm463, %v1182, 0
        %v1199 = vsel %vm463, %v1185, 0
        %v1202 = vsel %vm479, %v1121, 0
        %1204 = vmatprep.subr.bf16.mxu0 0
        %1205 = vmatpush1.bf16.msra.mxu0 0
        %1206 = vmatprep.subr.bf16.mxu0 0
        %1207 = vmatpush1.bf16.msra.mxu0 0
        %1208 = vmatprep.subr.bf16.mxu0 0
        %1209 = vmatpush1.bf16.msra.mxu0 0
        %1210 = vmatprep.subr.bf16.mxu0 0
        %1211 = vmatpush1.bf16.msra.mxu0 0
        %1212 = vmatprep.subr.bf16.mxu0 0
        %1213 = vmatpush1.bf16.msra.mxu0 0
        %1214 = vmatprep.subr.bf16.mxu0 0
        %1215 = vmatpush1.bf16.msra.mxu0 0
        %1216 = vmatprep.subr.bf16.mxu0 0
        %1217 = vmatpush1.bf16.msra.mxu0 0
        %1218 = vmatprep.subr.bf16.mxu0 0
        %1219 = vmatpush1.bf16.msra.mxu0 %v1202
        %1220 = vmatprep.subr.bf16.mxu0 0
        %1221 = vmatpush2.bf16.msra.mxu0 0
        %1222 = vmatprep.subr.bf16.mxu0 0
        %1223 = vmatpush2.bf16.msra.mxu0 0
        %1224 = vmatprep.subr.bf16.mxu0 0
        %1225 = vmatpush2.bf16.msra.mxu0 0
        %1226 = vmatprep.subr.bf16.mxu0 0
        %1227 = vmatpush2.bf16.msra.mxu0 0
        %1228 = vmatprep.subr.bf16.mxu0 0
        %1229 = vmatpush2.bf16.msra.mxu0 0
        %1230 = vmatprep.subr.bf16.mxu0 0
        %1231 = vmatpush2.bf16.msra.mxu0 0
        %1232 = vmatprep.subr.bf16.mxu0 0
        %1233 = vmatpush2.bf16.msra.mxu0 0
        %1234 = vmatprep.subr.bf16.mxu0 0
        %1235 = vmatpush2.bf16.msra.mxu0 0
        %1236 = vmatprep.mubr.bf16.mxu0 0
        %1237 = vmatmul.mubr.bf16.gmra.mxu0 %v1187
        %v1238 = vpop.f32.mrf.mxu0
        %v1239 = vadd.f32 0.0, %v1238
        %v1240 = vpop.f32.mrf.mxu0
        %v1241 = vpop.f32.mrf.mxu0
        %v1242 = vadd.f32 0.0, %v1241
        %v1243 = vpop.f32.mrf.mxu0
        %1244 = vmatprep.mubr.bf16.mxu0 0
        %1245 = vmatmul.mubr.bf16.gmra.mxu0 %v1190
        %v1246 = vpop.f32.mrf.mxu0
        %v1247 = vadd.f32 0.0, %v1246
        %v1248 = vpop.f32.mrf.mxu0
        %v1249 = vpop.f32.mrf.mxu0
        %v1250 = vadd.f32 0.0, %v1249
        %v1251 = vpop.f32.mrf.mxu0
        %1252 = vmatprep.mubr.bf16.mxu0 0
        %1253 = vmatmul.mubr.bf16.gmra.mxu0 %v1193
        %v1254 = vpop.f32.mrf.mxu0
        %v1255 = vadd.f32 0.0, %v1254
        %v1256 = vpop.f32.mrf.mxu0
        %v1257 = vpop.f32.mrf.mxu0
        %v1258 = vadd.f32 0.0, %v1257
        %v1259 = vpop.f32.mrf.mxu0
        %1260 = vmatprep.mubr.bf16.mxu0 0
        %1261 = vmatmul.mubr.bf16.gmra.mxu0 %v1196
        %v1262 = vpop.f32.mrf.mxu0
        %v1263 = vadd.f32 0.0, %v1262
        %v1264 = vpop.f32.mrf.mxu0
        %v1265 = vpop.f32.mrf.mxu0
        %v1266 = vadd.f32 0.0, %v1265
        %v1267 = vpop.f32.mrf.mxu0
        %1268 = vmatprep.mubr.bf16.mxu0 0
        %1269 = vmatmul.mubr.bf16.gmra.mxu0 %v1199
        %v1270 = vpop.f32.mrf.mxu0
        %v1271 = vadd.f32 0.0, %v1270
        %v1272 = vpop.f32.mrf.mxu0
        %v1273 = vpop.f32.mrf.mxu0
        %v1274 = vpop.f32.mrf.mxu0
        %1275 = vdwg.mxu0
        %v1276 = vadd.f32 %v1101, %v1239
        %v1277 = vadd.f32 %v1102, %v1242
        %v1278 = vadd.f32 %v1103, %v1247
        %v1279 = vadd.f32 %v1104, %v1250
        %v1280 = vadd.f32 %v1105, %v1255
        %v1281 = vadd.f32 %v1106, %v1258
        %v1282 = vadd.f32 %v1107, %v1263
        %v1283 = vadd.f32 %v1108, %v1266
        %v1284 = vadd.f32 %v1109, %v1271
        %v1285 = vld [vmem:[%s402 + $0x4] sm:$0xf]
        %v1286 = vld [vmem:[%s402 + $0x8] sm:$0xf]
        %v1287 = vld [vmem:[%s402 + $0xc] sm:$0xf]
        %v1288 = vld [vmem:[%s402 + $0x10] sm:$0xf]
        %v1289 = vld [vmem:[%s402 + $0x14] sm:$0xf]
        %v1290 = vld [vmem:[%s402 + $0x18] sm:$0xf]
        %v1291 = vld [vmem:[%s402 + $0x1c] sm:$0xf]
        %v1292 = vld [vmem:[%s402 + $0x20] sm:$0xf]
        %v1293 = vld [vmem:[%s402 + $0x24] sm:$0xf]
        %v1294 = vld [vmem:[%s402 + $0x28] sm:$0x1]
        %s1295 = scalar_lea.vmem %s4, 12
        %v1296 = vld [vmem:[%s1295] sm:$0x3]
        %v1307 = vunpack.c.l.b16 %v1285
        %v1308 = vunpack.c.l.b16 %v1286
        %v1309 = vunpack.c.l.b16 %v1287
        %v1310 = vunpack.c.l.b16 %v1288
        %v1311 = vunpack.c.l.b16 %v1289
        %v1312 = vunpack.c.l.b16 %v1290
        %v1313 = vunpack.c.l.b16 %v1291
        %v1314 = vunpack.c.l.b16 %v1292
        %v1315 = vunpack.c.l.b16 %v1293
        %v1316 = vunpack.c.l.b16 %v1294
        %v1317 = vpack.c.b16 %v1308, %v1307
        %v1318 = vpack.c.b16 %v1310, %v1309
        %v1319 = vpack.c.b16 %v1312, %v1311
        %v1320 = vpack.c.b16 %v1314, %v1313
        %v1321 = vpack.c.b16 %v1316, %v1315
        %v1323 = vshrl.u32 %v1317, 16
        %v1325 = vshll.u32 %v1317, 16
        %v1327 = vrot.slane %v1325, 1
        %v1328 = vor.u32 %v1323, %v1327
        %v1330 = vshll.u32 %v1318, 16
        %v1332 = vrot.slane %v1330, 1
        %v1333 = vsel %vm705, %v1328, %v1332
        %v1334 = vshrl.u32 %v1318, 16
        %v1336 = vor.u32 %v1334, %v1332
        %v1338 = vshll.u32 %v1319, 16
        %v1340 = vrot.slane %v1338, 1
        %v1341 = vsel %vm705, %v1336, %v1340
        %v1342 = vshrl.u32 %v1319, 16
        %v1344 = vor.u32 %v1342, %v1340
        %v1346 = vshll.u32 %v1320, 16
        %v1348 = vrot.slane %v1346, 1
        %v1349 = vsel %vm705, %v1344, %v1348
        %v1350 = vshrl.u32 %v1320, 16
        %v1352 = vor.u32 %v1350, %v1348
        %v1354 = vshll.u32 %v1321, 16
        %v1356 = vrot.slane %v1354, 1
        %v1357 = vsel %vm705, %v1352, %v1356
        %v1358 = vshrl.u32 %v1321, 16
        %v1360 = vor.u32 %v1358, %v1356
        %v1362 = vsel %vm463, %v1333, 0
        %v1365 = vsel %vm463, %v1341, 0
        %v1368 = vsel %vm463, %v1349, 0
        %v1371 = vsel %vm463, %v1357, 0
        %v1374 = vsel %vm463, %v1360, 0
        %v1377 = vsel %vm479, %v1296, 0
        %1379 = vmatprep.subr.bf16.mxu0 0
        %1380 = vmatpush1.bf16.msra.mxu0 0
        %1381 = vmatprep.subr.bf16.mxu0 0
        %1382 = vmatpush1.bf16.msra.mxu0 0
        %1383 = vmatprep.subr.bf16.mxu0 0
        %1384 = vmatpush1.bf16.msra.mxu0 0
        %1385 = vmatprep.subr.bf16.mxu0 0
        %1386 = vmatpush1.bf16.msra.mxu0 0
        %1387 = vmatprep.subr.bf16.mxu0 0
        %1388 = vmatpush1.bf16.msra.mxu0 0
        %1389 = vmatprep.subr.bf16.mxu0 0
        %1390 = vmatpush1.bf16.msra.mxu0 0
        %1391 = vmatprep.subr.bf16.mxu0 0
        %1392 = vmatpush1.bf16.msra.mxu0 0
        %1393 = vmatprep.subr.bf16.mxu0 0
        %1394 = vmatpush1.bf16.msra.mxu0 %v1377
        %1395 = vmatprep.subr.bf16.mxu0 0
        %1396 = vmatpush2.bf16.msra.mxu0 0
        %1397 = vmatprep.subr.bf16.mxu0 0
        %1398 = vmatpush2.bf16.msra.mxu0 0
        %1399 = vmatprep.subr.bf16.mxu0 0
        %1400 = vmatpush2.bf16.msra.mxu0 0
        %1401 = vmatprep.subr.bf16.mxu0 0
        %1402 = vmatpush2.bf16.msra.mxu0 0
        %1403 = vmatprep.subr.bf16.mxu0 0
        %1404 = vmatpush2.bf16.msra.mxu0 0
        %1405 = vmatprep.subr.bf16.mxu0 0
        %1406 = vmatpush2.bf16.msra.mxu0 0
        %1407 = vmatprep.subr.bf16.mxu0 0
        %1408 = vmatpush2.bf16.msra.mxu0 0
        %1409 = vmatprep.subr.bf16.mxu0 0
        %1410 = vmatpush2.bf16.msra.mxu0 0
        %1411 = vmatprep.mubr.bf16.mxu0 0
        %1412 = vmatmul.mubr.bf16.gmra.mxu0 %v1362
        %v1413 = vpop.f32.mrf.mxu0
        %v1414 = vadd.f32 0.0, %v1413
        %v1415 = vpop.f32.mrf.mxu0
        %v1416 = vpop.f32.mrf.mxu0
        %v1417 = vadd.f32 0.0, %v1416
        %v1418 = vpop.f32.mrf.mxu0
        %1419 = vmatprep.mubr.bf16.mxu0 0
        %1420 = vmatmul.mubr.bf16.gmra.mxu0 %v1365
        %v1421 = vpop.f32.mrf.mxu0
        %v1422 = vadd.f32 0.0, %v1421
        %v1423 = vpop.f32.mrf.mxu0
        %v1424 = vpop.f32.mrf.mxu0
        %v1425 = vadd.f32 0.0, %v1424
        %v1426 = vpop.f32.mrf.mxu0
        %1427 = vmatprep.mubr.bf16.mxu0 0
        %1428 = vmatmul.mubr.bf16.gmra.mxu0 %v1368
        %v1429 = vpop.f32.mrf.mxu0
        %v1430 = vadd.f32 0.0, %v1429
        %v1431 = vpop.f32.mrf.mxu0
        %v1432 = vpop.f32.mrf.mxu0
        %v1433 = vadd.f32 0.0, %v1432
        %v1434 = vpop.f32.mrf.mxu0
        %1435 = vmatprep.mubr.bf16.mxu0 0
        %1436 = vmatmul.mubr.bf16.gmra.mxu0 %v1371
        %v1437 = vpop.f32.mrf.mxu0
        %v1438 = vadd.f32 0.0, %v1437
        %v1439 = vpop.f32.mrf.mxu0
        %v1440 = vpop.f32.mrf.mxu0
        %v1441 = vadd.f32 0.0, %v1440
        %v1442 = vpop.f32.mrf.mxu0
        %1443 = vmatprep.mubr.bf16.mxu0 0
        %1444 = vmatmul.mubr.bf16.gmra.mxu0 %v1374
        %v1445 = vpop.f32.mrf.mxu0
        %v1446 = vadd.f32 0.0, %v1445
        %v1447 = vpop.f32.mrf.mxu0
        %v1448 = vpop.f32.mrf.mxu0
        %v1449 = vpop.f32.mrf.mxu0
        %1450 = vdwg.mxu0
        %v1451 = vadd.f32 %v1276, %v1414
        %v1452 = vadd.f32 %v1277, %v1417
        %v1453 = vadd.f32 %v1278, %v1422
        %v1454 = vadd.f32 %v1279, %v1425
        %v1455 = vadd.f32 %v1280, %v1430
        %v1456 = vadd.f32 %v1281, %v1433
        %v1457 = vadd.f32 %v1282, %v1438
        %v1458 = vadd.f32 %v1283, %v1441
        %v1459 = vadd.f32 %v1284, %v1446
        %v1460 = vld [vmem:[%s407 + $0x4] sm:$0xf]
        %v1461 = vld [vmem:[%s407 + $0x8] sm:$0xf]
        %v1462 = vld [vmem:[%s407 + $0xc] sm:$0xf]
        %v1463 = vld [vmem:[%s407 + $0x10] sm:$0xf]
        %v1464 = vld [vmem:[%s407 + $0x14] sm:$0xf]
        %v1465 = vld [vmem:[%s407 + $0x18] sm:$0xf]
        %v1466 = vld [vmem:[%s407 + $0x1c] sm:$0xf]
        %v1467 = vld [vmem:[%s407 + $0x20] sm:$0xf]
        %v1468 = vld [vmem:[%s407 + $0x24] sm:$0xf]
        %v1469 = vld [vmem:[%s407 + $0x28] sm:$0x1]
        %s1470 = scalar_lea.vmem %s4, 14
        %v1471 = vld [vmem:[%s1470] sm:$0x3]
        %v1482 = vunpack.c.l.b16 %v1460
        %v1483 = vunpack.c.l.b16 %v1461
        %v1484 = vunpack.c.l.b16 %v1462
        %v1485 = vunpack.c.l.b16 %v1463
        %v1486 = vunpack.c.l.b16 %v1464
        %v1487 = vunpack.c.l.b16 %v1465
        %v1488 = vunpack.c.l.b16 %v1466
        %v1489 = vunpack.c.l.b16 %v1467
        %v1490 = vunpack.c.l.b16 %v1468
        %v1491 = vunpack.c.l.b16 %v1469
        %v1492 = vpack.c.b16 %v1483, %v1482
        %v1493 = vpack.c.b16 %v1485, %v1484
        %v1494 = vpack.c.b16 %v1487, %v1486
        %v1495 = vpack.c.b16 %v1489, %v1488
        %v1496 = vpack.c.b16 %v1491, %v1490
        %v1498 = vshrl.u32 %v1492, 16
        %v1500 = vshll.u32 %v1492, 16
        %v1502 = vrot.slane %v1500, 1
        %v1503 = vor.u32 %v1498, %v1502
        %v1505 = vshll.u32 %v1493, 16
        %v1507 = vrot.slane %v1505, 1
        %v1508 = vsel %vm705, %v1503, %v1507
        %v1509 = vshrl.u32 %v1493, 16
        %v1511 = vor.u32 %v1509, %v1507
        %v1513 = vshll.u32 %v1494, 16
        %v1515 = vrot.slane %v1513, 1
        %v1516 = vsel %vm705, %v1511, %v1515
        %v1517 = vshrl.u32 %v1494, 16
        %v1519 = vor.u32 %v1517, %v1515
        %v1521 = vshll.u32 %v1495, 16
        %v1523 = vrot.slane %v1521, 1
        %v1524 = vsel %vm705, %v1519, %v1523
        %v1525 = vshrl.u32 %v1495, 16
        %v1527 = vor.u32 %v1525, %v1523
        %v1529 = vshll.u32 %v1496, 16
        %v1531 = vrot.slane %v1529, 1
        %v1532 = vsel %vm705, %v1527, %v1531
        %v1533 = vshrl.u32 %v1496, 16
        %v1535 = vor.u32 %v1533, %v1531
        %v1537 = vsel %vm463, %v1508, 0
        %v1540 = vsel %vm463, %v1516, 0
        %v1543 = vsel %vm463, %v1524, 0
        %v1546 = vsel %vm463, %v1532, 0
        %v1549 = vsel %vm463, %v1535, 0
        %v1552 = vsel %vm479, %v1471, 0
        %1554 = vmatprep.subr.bf16.mxu0 0
        %1555 = vmatpush1.bf16.msra.mxu0 0
        %1556 = vmatprep.subr.bf16.mxu0 0
        %1557 = vmatpush1.bf16.msra.mxu0 0
        %1558 = vmatprep.subr.bf16.mxu0 0
        %1559 = vmatpush1.bf16.msra.mxu0 0
        %1560 = vmatprep.subr.bf16.mxu0 0
        %1561 = vmatpush1.bf16.msra.mxu0 0
        %1562 = vmatprep.subr.bf16.mxu0 0
        %1563 = vmatpush1.bf16.msra.mxu0 0
        %1564 = vmatprep.subr.bf16.mxu0 0
        %1565 = vmatpush1.bf16.msra.mxu0 0
        %1566 = vmatprep.subr.bf16.mxu0 0
        %1567 = vmatpush1.bf16.msra.mxu0 0
        %1568 = vmatprep.subr.bf16.mxu0 0
        %1569 = vmatpush1.bf16.msra.mxu0 %v1552
        %1570 = vmatprep.subr.bf16.mxu0 0
        %1571 = vmatpush2.bf16.msra.mxu0 0
        %1572 = vmatprep.subr.bf16.mxu0 0
        %1573 = vmatpush2.bf16.msra.mxu0 0
        %1574 = vmatprep.subr.bf16.mxu0 0
        %1575 = vmatpush2.bf16.msra.mxu0 0
        %1576 = vmatprep.subr.bf16.mxu0 0
        %1577 = vmatpush2.bf16.msra.mxu0 0
        %1578 = vmatprep.subr.bf16.mxu0 0
        %1579 = vmatpush2.bf16.msra.mxu0 0
        %1580 = vmatprep.subr.bf16.mxu0 0
        %1581 = vmatpush2.bf16.msra.mxu0 0
        %1582 = vmatprep.subr.bf16.mxu0 0
        %1583 = vmatpush2.bf16.msra.mxu0 0
        %1584 = vmatprep.subr.bf16.mxu0 0
        %1585 = vmatpush2.bf16.msra.mxu0 0
        %1586 = vmatprep.mubr.bf16.mxu0 0
        %1587 = vmatmul.mubr.bf16.gmra.mxu0 %v1537
        %v1588 = vpop.f32.mrf.mxu0
        %v1589 = vadd.f32 0.0, %v1588
        %v1590 = vpop.f32.mrf.mxu0
        %v1591 = vpop.f32.mrf.mxu0
        %v1592 = vadd.f32 0.0, %v1591
        %v1593 = vpop.f32.mrf.mxu0
        %1594 = vmatprep.mubr.bf16.mxu0 0
        %1595 = vmatmul.mubr.bf16.gmra.mxu0 %v1540
        %v1596 = vpop.f32.mrf.mxu0
        %v1597 = vadd.f32 0.0, %v1596
        %v1598 = vpop.f32.mrf.mxu0
        %v1599 = vpop.f32.mrf.mxu0
        %v1600 = vadd.f32 0.0, %v1599
        %v1601 = vpop.f32.mrf.mxu0
        %1602 = vmatprep.mubr.bf16.mxu0 0
        %1603 = vmatmul.mubr.bf16.gmra.mxu0 %v1543
        %v1604 = vpop.f32.mrf.mxu0
        %v1605 = vadd.f32 0.0, %v1604
        %v1606 = vpop.f32.mrf.mxu0
        %v1607 = vpop.f32.mrf.mxu0
        %v1608 = vadd.f32 0.0, %v1607
        %v1609 = vpop.f32.mrf.mxu0
        %1610 = vmatprep.mubr.bf16.mxu0 0
        %1611 = vmatmul.mubr.bf16.gmra.mxu0 %v1546
        %v1612 = vpop.f32.mrf.mxu0
        %v1613 = vadd.f32 0.0, %v1612
        %v1614 = vpop.f32.mrf.mxu0
        %v1615 = vpop.f32.mrf.mxu0
        %v1616 = vadd.f32 0.0, %v1615
        %v1617 = vpop.f32.mrf.mxu0
        %1618 = vmatprep.mubr.bf16.mxu0 0
        %1619 = vmatmul.mubr.bf16.gmra.mxu0 %v1549
        %v1620 = vpop.f32.mrf.mxu0
        %v1621 = vadd.f32 0.0, %v1620
        %v1622 = vpop.f32.mrf.mxu0
        %v1623 = vpop.f32.mrf.mxu0
        %v1624 = vpop.f32.mrf.mxu0
        %1625 = vdwg.mxu0
        %v1626 = vadd.f32 %v1451, %v1589
        %v1627 = vadd.f32 %v1452, %v1592
        %v1628 = vadd.f32 %v1453, %v1597
        %v1629 = vadd.f32 %v1454, %v1600
        %v1630 = vadd.f32 %v1455, %v1605
        %v1631 = vadd.f32 %v1456, %v1608
        %v1632 = vadd.f32 %v1457, %v1613
        %v1633 = vadd.f32 %v1458, %v1616
        %v1634 = vadd.f32 %v1459, %v1621
        %v1635 = vld [vmem:[%s402 + $0x4] sm:$0xe]
        %s1636 = scalar_lea.vmem %s4, 16
        %v1637 = vld [vmem:[%s1636] sm:$0x3]
        %v1639 = vunpack.c.l.b16 %v1635
        %v1640 = vpack.c.b16 %v1308, %v1639
        %vm1641 = vcmask 1046528
        %v1642 = vrot.slane %v1640, 1
        %v1643 = vrot.slane %v1318, 1
        %v1644 = vsel %vm1641, %v1642, %v1643
        %v1645 = vrot.slane %v1319, 1
        %v1646 = vsel %vm1641, %v1643, %v1645
        %v1647 = vrot.slane %v1320, 1
        %v1648 = vsel %vm1641, %v1645, %v1647
        %v1649 = vrot.slane %v1321, 1
        %v1650 = vsel %vm1641, %v1647, %v1649
        %v1652 = vsel %vm463, %v1644, 0
        %v1655 = vsel %vm463, %v1646, 0
        %v1658 = vsel %vm463, %v1648, 0
        %v1661 = vsel %vm463, %v1650, 0
        %v1664 = vsel %vm463, %v1649, 0
        %v1667 = vsel %vm479, %v1637, 0
        %1669 = vmatprep.subr.bf16.mxu0 0
        %1670 = vmatpush1.bf16.msra.mxu0 0
        %1671 = vmatprep.subr.bf16.mxu0 0
        %1672 = vmatpush1.bf16.msra.mxu0 0
        %1673 = vmatprep.subr.bf16.mxu0 0
        %1674 = vmatpush1.bf16.msra.mxu0 0
        %1675 = vmatprep.subr.bf16.mxu0 0
        %1676 = vmatpush1.bf16.msra.mxu0 0
        %1677 = vmatprep.subr.bf16.mxu0 0
        %1678 = vmatpush1.bf16.msra.mxu0 0
        %1679 = vmatprep.subr.bf16.mxu0 0
        %1680 = vmatpush1.bf16.msra.mxu0 0
        %1681 = vmatprep.subr.bf16.mxu0 0
        %1682 = vmatpush1.bf16.msra.mxu0 0
        %1683 = vmatprep.subr.bf16.mxu0 0
        %1684 = vmatpush1.bf16.msra.mxu0 %v1667
        %1685 = vmatprep.subr.bf16.mxu0 0
        %1686 = vmatpush2.bf16.msra.mxu0 0
        %1687 = vmatprep.subr.bf16.mxu0 0
        %1688 = vmatpush2.bf16.msra.mxu0 0
        %1689 = vmatprep.subr.bf16.mxu0 0
        %1690 = vmatpush2.bf16.msra.mxu0 0
        %1691 = vmatprep.subr.bf16.mxu0 0
        %1692 = vmatpush2.bf16.msra.mxu0 0
        %1693 = vmatprep.subr.bf16.mxu0 0
        %1694 = vmatpush2.bf16.msra.mxu0 0
        %1695 = vmatprep.subr.bf16.mxu0 0
        %1696 = vmatpush2.bf16.msra.mxu0 0
        %1697 = vmatprep.subr.bf16.mxu0 0
        %1698 = vmatpush2.bf16.msra.mxu0 0
        %1699 = vmatprep.subr.bf16.mxu0 0
        %1700 = vmatpush2.bf16.msra.mxu0 0
        %1701 = vmatprep.mubr.bf16.mxu0 0
        %1702 = vmatmul.mubr.bf16.gmra.mxu0 %v1652
        %v1703 = vpop.f32.mrf.mxu0
        %v1704 = vadd.f32 0.0, %v1703
        %v1705 = vpop.f32.mrf.mxu0
        %v1706 = vpop.f32.mrf.mxu0
        %v1707 = vadd.f32 0.0, %v1706
        %v1708 = vpop.f32.mrf.mxu0
        %1709 = vmatprep.mubr.bf16.mxu0 0
        %1710 = vmatmul.mubr.bf16.gmra.mxu0 %v1655
        %v1711 = vpop.f32.mrf.mxu0
        %v1712 = vadd.f32 0.0, %v1711
        %v1713 = vpop.f32.mrf.mxu0
        %v1714 = vpop.f32.mrf.mxu0
        %v1715 = vadd.f32 0.0, %v1714
        %v1716 = vpop.f32.mrf.mxu0
        %1717 = vmatprep.mubr.bf16.mxu0 0
        %1718 = vmatmul.mubr.bf16.gmra.mxu0 %v1658
        %v1719 = vpop.f32.mrf.mxu0
        %v1720 = vadd.f32 0.0, %v1719
        %v1721 = vpop.f32.mrf.mxu0
        %v1722 = vpop.f32.mrf.mxu0
        %v1723 = vadd.f32 0.0, %v1722
        %v1724 = vpop.f32.mrf.mxu0
        %1725 = vmatprep.mubr.bf16.mxu0 0
        %1726 = vmatmul.mubr.bf16.gmra.mxu0 %v1661
        %v1727 = vpop.f32.mrf.mxu0
        %v1728 = vadd.f32 0.0, %v1727
        %v1729 = vpop.f32.mrf.mxu0
        %v1730 = vpop.f32.mrf.mxu0
        %v1731 = vadd.f32 0.0, %v1730
        %v1732 = vpop.f32.mrf.mxu0
        %1733 = vmatprep.mubr.bf16.mxu0 0
        %1734 = vmatmul.mubr.bf16.gmra.mxu0 %v1664
        %v1735 = vpop.f32.mrf.mxu0
        %v1736 = vadd.f32 0.0, %v1735
        %v1737 = vpop.f32.mrf.mxu0
        %v1738 = vpop.f32.mrf.mxu0
        %v1739 = vpop.f32.mrf.mxu0
        %1740 = vdwg.mxu0
        %v1741 = vadd.f32 %v1626, %v1704
        %v1742 = vadd.f32 %v1627, %v1707
        %v1743 = vadd.f32 %v1628, %v1712
        %v1744 = vadd.f32 %v1629, %v1715
        %v1745 = vadd.f32 %v1630, %v1720
        %v1746 = vadd.f32 %v1631, %v1723
        %v1747 = vadd.f32 %v1632, %v1728
        %v1748 = vadd.f32 %v1633, %v1731
        %v1749 = vadd.f32 %v1634, %v1736
        %v1750 = vld [vmem:[%s5] sm:$0x1]
        %v1752 = vlaneseq
        %v1753 = vshrl.u32 %v1752, 7
        %v1754 = vsub.s32 0, %v1753
        %v1755 = vrot.slane %v1750, %v1754
        %v1757 = vadd.f32 %v1741, %v1755
        %v1758 = vadd.f32 %v1742, %v1755
        %v1759 = vadd.f32 %v1743, %v1755
        %v1760 = vadd.f32 %v1744, %v1755
        %v1761 = vadd.f32 %v1745, %v1755
        %v1762 = vadd.f32 %v1746, %v1755
        %v1763 = vadd.f32 %v1747, %v1755
        %v1764 = vadd.f32 %v1748, %v1755
        %v1765 = vadd.f32 %v1749, %v1755
        %v1766 = vmax.f32 %v1757, 0.0
        %v1767 = vmax.f32 %v1758, 0.0
        %v1768 = vmax.f32 %v1759, 0.0
        %v1769 = vmax.f32 %v1760, 0.0
        %v1770 = vmax.f32 %v1761, 0.0
        %v1771 = vmax.f32 %v1762, 0.0
        %v1772 = vmax.f32 %v1763, 0.0
        %v1773 = vmax.f32 %v1764, 0.0
        %v1774 = vmax.f32 %v1765, 0.0
        %vm1775 = vcmask 130048
        %1776 = vst.msk [vmem:[#allocation2] sm:$0xff] %vm1775, 0.0
        %1777 = vst.msk [vmem:[#allocation2 + $0x8] sm:$0xff] %vm1775, 0.0
        %1778 = vst.msk [vmem:[#allocation2 + $0x10] sm:$0xff] %vm1775, 0.0
        %1779 = vst.msk [vmem:[#allocation2 + $0x18] sm:$0xff] %vm1775, 0.0
        %1780 = vst.msk [vmem:[#allocation2 + $0x20] sm:$0xff] %vm1775, 0.0
        %1781 = vst.msk [vmem:[#allocation2 + $0x28] sm:$0xff] %vm1775, 0.0
        %1782 = vst.msk [vmem:[#allocation2 + $0x30] sm:$0xff] %vm1775, 0.0
        %1783 = vst.msk [vmem:[#allocation2 + $0x38] sm:$0xff] %vm1775, 0.0
        %1784 = vst.msk [vmem:[#allocation2 + $0x40] sm:$0xff] %vm1775, 0.0
        %1785 = vst.msk [vmem:[#allocation2 + $0x48] sm:$0xff] %vm1775, 0.0
        %1786 = vst.msk [vmem:[#allocation2 + $0x50] sm:$0xff] %vm1775, 0.0
        %1787 = vst.msk [vmem:[#allocation2 + $0x58] sm:$0xff] %vm1775, 0.0
        %1788 = vst.msk [vmem:[#allocation2 + $0x60] sm:$0xff] %vm1775, 0.0
        %1789 = vst.msk [vmem:[#allocation2 + $0xb] sm:$0xff] %vm1775, %v1766
        %vm1790 = vcmask 130049
        %1791 = vst.msk [vmem:[#allocation2 + $0x14] sm:$0xfe] %vm1790, %v1767
        %vm1792 = vcmask 122880
        %1793 = vst.msk [vmem:[#allocation2 + $0x1c] sm:$0x1] %vm1792, %v1768
        %vm1794 = vcmask 130050
        %1795 = vst.msk [vmem:[#allocation2 + $0x1d] sm:$0xfc] %vm1794, %v1768
        %vm1796 = vcmask 123904
        %1797 = vst.msk [vmem:[#allocation2 + $0x25] sm:$0x3] %vm1796, %v1769
        %vm1798 = vcmask 130051
        %1799 = vst.msk [vmem:[#allocation2 + $0x26] sm:$0xf8] %vm1798, %v1769
        %vm1800 = vcmask 124928
        %1801 = vst.msk [vmem:[#allocation2 + $0x2e] sm:$0x7] %vm1800, %v1770
        %vm1802 = vcmask 130052
        %1803 = vst.msk [vmem:[#allocation2 + $0x2f] sm:$0xf0] %vm1802, %v1770
        %vm1804 = vcmask 125952
        %1805 = vst.msk [vmem:[#allocation2 + $0x37] sm:$0xf] %vm1804, %v1771
        %vm1806 = vcmask 130053
        %1807 = vst.msk [vmem:[#allocation2 + $0x38] sm:$0xe0] %vm1806, %v1771
        %vm1808 = vcmask 126976
        %1809 = vst.msk [vmem:[#allocation2 + $0x40] sm:$0x1f] %vm1808, %v1772
        %vm1810 = vcmask 130054
        %1811 = vst.msk [vmem:[#allocation2 + $0x41] sm:$0xc0] %vm1810, %v1772
        %vm1812 = vcmask 128000
        %1813 = vst.msk [vmem:[#allocation2 + $0x49] sm:$0x3f] %vm1812, %v1773
        %vm1814 = vcmask 130055
        %1815 = vst.msk [vmem:[#allocation2 + $0x4a] sm:$0x80] %vm1814, %v1773
        %vm1816 = vcmask 129024
        %1817 = vst.msk [vmem:[#allocation2 + $0x52] sm:$0x7f] %vm1816, %v1774
        %v1818 = vld [vmem:[#allocation2] sm:$0xff]
        %v1819 = vld [vmem:[#allocation2 + $0x8] sm:$0xff]
        %v1820 = vld [vmem:[#allocation2 + $0x10] sm:$0xff]
        %v1821 = vld [vmem:[#allocation2 + $0x18] sm:$0xff]
        %v1822 = vld [vmem:[#allocation2 + $0x20] sm:$0xff]
        %v1823 = vld [vmem:[#allocation2 + $0x28] sm:$0xff]
        %v1824 = vld [vmem:[#allocation2 + $0x30] sm:$0xff]
        %v1825 = vld [vmem:[#allocation2 + $0x38] sm:$0xff]
        %v1826 = vld [vmem:[#allocation2 + $0x40] sm:$0xff]
        %v1827 = vld [vmem:[#allocation2 + $0x48] sm:$0xff]
        %v1828 = vpack.c.bf16 %v1819, %v1818
        %v1829 = vpack.c.bf16 %v1821, %v1820
        %v1830 = vpack.c.bf16 %v1823, %v1822
        %v1831 = vpack.c.bf16 %v1825, %v1824
        %v1832 = vpack.c.bf16 %v1827, %v1826
        %v1833 = vld [vmem:[%s6] sm:$0xf]
        %v1834 = vld [vmem:[%s6 + $0x4] sm:$0xf]
        %v1835 = vld [vmem:[#allocation2 + $0x1] sm:$0xff]
        %v1836 = vld [vmem:[#allocation2 + $0x9] sm:$0xff]
        %v1837 = vld [vmem:[#allocation2 + $0x11] sm:$0xff]
        %v1838 = vld [vmem:[#allocation2 + $0x19] sm:$0xff]
        %v1839 = vld [vmem:[#allocation2 + $0x21] sm:$0xff]
        %v1840 = vld [vmem:[#allocation2 + $0x29] sm:$0xff]
        %v1841 = vld [vmem:[#allocation2 + $0x31] sm:$0xff]
        %v1842 = vld [vmem:[#allocation2 + $0x39] sm:$0xff]
        %v1843 = vld [vmem:[#allocation2 + $0x41] sm:$0xff]
        %v1844 = vld [vmem:[#allocation2 + $0x49] sm:$0xff]
        %v1845 = vpack.c.bf16 %v1836, %v1835
        %v1846 = vpack.c.bf16 %v1838, %v1837
        %v1847 = vpack.c.bf16 %v1840, %v1839
        %v1848 = vpack.c.bf16 %v1842, %v1841
        %v1849 = vpack.c.bf16 %v1844, %v1843
        %s1850 = scalar_lea.vmem %s6, 8
        %v1851 = vld [vmem:[%s1850] sm:$0xf]
        %v1852 = vld [vmem:[%s1850 + $0x4] sm:$0xf]
        %v1855 = vunpack.c.l.b16 %v1851
        %v1856 = vunpack.c.l.b16 %v1852
        %v1857 = vpack.c.b16 %v1856, %v1855
        %v1860 = vsel %vm1775, %v1845, 0
        %v1863 = vsel %vm1775, %v1846, 0
        %v1866 = vsel %vm1775, %v1847, 0
        %v1869 = vsel %vm1775, %v1848, 0
        %v1872 = vsel %vm1775, %v1849, 0
        %1874 = vmatprep.subr.bf16.mxu0 0
        %1875 = vmatpush1.bf16.msra.mxu0 0
        %1876 = vmatprep.subr.bf16.mxu0 0
        %1877 = vmatpush1.bf16.msra.mxu0 0
        %1878 = vmatprep.subr.bf16.mxu0 0
        %1879 = vmatpush1.bf16.msra.mxu0 0
        %1880 = vmatprep.subr.bf16.mxu0 0
        %1881 = vmatpush1.bf16.msra.mxu0 0
        %1882 = vmatprep.subr.bf16.mxu0 0
        %1883 = vmatpush1.bf16.msra.mxu0 0
        %1884 = vmatprep.subr.bf16.mxu0 0
        %1885 = vmatpush1.bf16.msra.mxu0 0
        %1886 = vmatprep.subr.bf16.mxu0 0
        %1887 = vmatpush1.bf16.msra.mxu0 0
        %1888 = vmatprep.subr.bf16.mxu0 0
        %1889 = vmatpush1.bf16.msra.mxu0 %v1857
        %1890 = vmatprep.subr.bf16.mxu0 0
        %1891 = vmatpush2.bf16.msra.mxu0 0
        %1892 = vmatprep.subr.bf16.mxu0 0
        %1893 = vmatpush2.bf16.msra.mxu0 0
        %1894 = vmatprep.subr.bf16.mxu0 0
        %1895 = vmatpush2.bf16.msra.mxu0 0
        %1896 = vmatprep.subr.bf16.mxu0 0
        %1897 = vmatpush2.bf16.msra.mxu0 0
        %1898 = vmatprep.subr.bf16.mxu0 0
        %1899 = vmatpush2.bf16.msra.mxu0 0
        %1900 = vmatprep.subr.bf16.mxu0 0
        %1901 = vmatpush2.bf16.msra.mxu0 0
        %1902 = vmatprep.subr.bf16.mxu0 0
        %1903 = vmatpush2.bf16.msra.mxu0 0
        %1904 = vmatprep.subr.bf16.mxu0 0
        %1905 = vmatpush2.bf16.msra.mxu0 0
        %1906 = vmatprep.mubr.bf16.mxu0 0
        %1907 = vmatmul.mubr.bf16.gmra.mxu0 %v1860
        %v1908 = vpop.f32.mrf.mxu0
        %v1909 = vadd.f32 0.0, %v1908
        %v1910 = vpop.f32.mrf.mxu0
        %v1911 = vpop.f32.mrf.mxu0
        %v1912 = vadd.f32 0.0, %v1911
        %v1913 = vpop.f32.mrf.mxu0
        %1914 = vmatprep.mubr.bf16.mxu0 0
        %1915 = vmatmul.mubr.bf16.gmra.mxu0 %v1863
        %v1916 = vpop.f32.mrf.mxu0
        %v1917 = vadd.f32 0.0, %v1916
        %v1918 = vpop.f32.mrf.mxu0
        %v1919 = vpop.f32.mrf.mxu0
        %v1920 = vadd.f32 0.0, %v1919
        %v1921 = vpop.f32.mrf.mxu0
        %1922 = vmatprep.mubr.bf16.mxu0 0
        %1923 = vmatmul.mubr.bf16.gmra.mxu0 %v1866
        %v1924 = vpop.f32.mrf.mxu0
        %v1925 = vadd.f32 0.0, %v1924
        %v1926 = vpop.f32.mrf.mxu0
        %v1927 = vpop.f32.mrf.mxu0
        %v1928 = vadd.f32 0.0, %v1927
        %v1929 = vpop.f32.mrf.mxu0
        %1930 = vmatprep.mubr.bf16.mxu0 0
        %1931 = vmatmul.mubr.bf16.gmra.mxu0 %v1869
        %v1932 = vpop.f32.mrf.mxu0
        %v1933 = vadd.f32 0.0, %v1932
        %v1934 = vpop.f32.mrf.mxu0
        %v1935 = vpop.f32.mrf.mxu0
        %v1936 = vadd.f32 0.0, %v1935
        %v1937 = vpop.f32.mrf.mxu0
        %1938 = vmatprep.mubr.bf16.mxu0 0
        %1939 = vmatmul.mubr.bf16.gmra.mxu0 %v1872
        %v1940 = vpop.f32.mrf.mxu0
        %v1941 = vadd.f32 0.0, %v1940
        %v1942 = vpop.f32.mrf.mxu0
        %v1943 = vpop.f32.mrf.mxu0
        %v1944 = vadd.f32 0.0, %v1943
        %v1945 = vpop.f32.mrf.mxu0
        %1946 = vdwg.mxu0
        %v1949 = vunpack.c.l.b16 %v1833
        %v1950 = vunpack.c.l.b16 %v1834
        %v1951 = vpack.c.b16 %v1950, %v1949
        %v1954 = vsel %vm1775, %v1828, 0
        %v1957 = vsel %vm1775, %v1829, 0
        %v1960 = vsel %vm1775, %v1830, 0
        %v1963 = vsel %vm1775, %v1831, 0
        %v1966 = vsel %vm1775, %v1832, 0
        %1968 = vmatprep.subr.bf16.mxu0 0
        %1969 = vmatpush1.bf16.msra.mxu0 0
        %1970 = vmatprep.subr.bf16.mxu0 0
        %1971 = vmatpush1.bf16.msra.mxu0 0
        %1972 = vmatprep.subr.bf16.mxu0 0
        %1973 = vmatpush1.bf16.msra.mxu0 0
        %1974 = vmatprep.subr.bf16.mxu0 0
        %1975 = vmatpush1.bf16.msra.mxu0 0
        %1976 = vmatprep.subr.bf16.mxu0 0
        %1977 = vmatpush1.bf16.msra.mxu0 0
        %1978 = vmatprep.subr.bf16.mxu0 0
        %1979 = vmatpush1.bf16.msra.mxu0 0
        %1980 = vmatprep.subr.bf16.mxu0 0
        %1981 = vmatpush1.bf16.msra.mxu0 0
        %1982 = vmatprep.subr.bf16.mxu0 0
        %1983 = vmatpush1.bf16.msra.mxu0 %v1951
        %1984 = vmatprep.subr.bf16.mxu0 0
        %1985 = vmatpush2.bf16.msra.mxu0 0
        %1986 = vmatprep.subr.bf16.mxu0 0
        %1987 = vmatpush2.bf16.msra.mxu0 0
        %1988 = vmatprep.subr.bf16.mxu0 0
        %1989 = vmatpush2.bf16.msra.mxu0 0
        %1990 = vmatprep.subr.bf16.mxu0 0
        %1991 = vmatpush2.bf16.msra.mxu0 0
        %1992 = vmatprep.subr.bf16.mxu0 0
        %1993 = vmatpush2.bf16.msra.mxu0 0
        %1994 = vmatprep.subr.bf16.mxu0 0
        %1995 = vmatpush2.bf16.msra.mxu0 0
        %1996 = vmatprep.subr.bf16.mxu0 0
        %1997 = vmatpush2.bf16.msra.mxu0 0
        %1998 = vmatprep.subr.bf16.mxu0 0
        %1999 = vmatpush2.bf16.msra.mxu0 0
        %2000 = vmatprep.mubr.bf16.mxu0 0
        %2001 = vmatmul.mubr.bf16.gmra.mxu0 %v1954
        %v2002 = vpop.f32.mrf.mxu0
        %v2003 = vadd.f32 %v1909, %v2002
        %v2004 = vpop.f32.mrf.mxu0
        %v2005 = vpop.f32.mrf.mxu0
        %v2006 = vadd.f32 %v1912, %v2005
        %v2007 = vpop.f32.mrf.mxu0
        %2008 = vmatprep.mubr.bf16.mxu0 0
        %2009 = vmatmul.mubr.bf16.gmra.mxu0 %v1957
        %v2010 = vpop.f32.mrf.mxu0
        %v2011 = vadd.f32 %v1917, %v2010
        %v2012 = vpop.f32.mrf.mxu0
        %v2013 = vpop.f32.mrf.mxu0
        %v2014 = vadd.f32 %v1920, %v2013
        %v2015 = vpop.f32.mrf.mxu0
        %2016 = vmatprep.mubr.bf16.mxu0 0
        %2017 = vmatmul.mubr.bf16.gmra.mxu0 %v1960
        %v2018 = vpop.f32.mrf.mxu0
        %v2019 = vadd.f32 %v1925, %v2018
        %v2020 = vpop.f32.mrf.mxu0
        %v2021 = vpop.f32.mrf.mxu0
        %v2022 = vadd.f32 %v1928, %v2021
        %v2023 = vpop.f32.mrf.mxu0
        %2024 = vmatprep.mubr.bf16.mxu0 0
        %2025 = vmatmul.mubr.bf16.gmra.mxu0 %v1963
        %v2026 = vpop.f32.mrf.mxu0
        %v2027 = vadd.f32 %v1933, %v2026
        %v2028 = vpop.f32.mrf.mxu0
        %v2029 = vpop.f32.mrf.mxu0
        %v2030 = vadd.f32 %v1936, %v2029
        %v2031 = vpop.f32.mrf.mxu0
        %2032 = vmatprep.mubr.bf16.mxu0 0
        %2033 = vmatmul.mubr.bf16.gmra.mxu0 %v1966
        %v2034 = vpop.f32.mrf.mxu0
        %v2035 = vadd.f32 %v1941, %v2034
        %v2036 = vpop.f32.mrf.mxu0
        %v2037 = vpop.f32.mrf.mxu0
        %v2038 = vadd.f32 %v1944, %v2037
        %v2039 = vpop.f32.mrf.mxu0
        %2040 = vdwg.mxu0
        %v2041 = vld [vmem:[#allocation2 + $0x2] sm:$0xff]
        %v2042 = vld [vmem:[#allocation2 + $0xa] sm:$0xff]
        %v2043 = vld [vmem:[#allocation2 + $0x12] sm:$0xff]
        %v2044 = vld [vmem:[#allocation2 + $0x1a] sm:$0xff]
        %v2045 = vld [vmem:[#allocation2 + $0x22] sm:$0xff]
        %v2046 = vld [vmem:[#allocation2 + $0x2a] sm:$0xff]
        %v2047 = vld [vmem:[#allocation2 + $0x32] sm:$0xff]
        %v2048 = vld [vmem:[#allocation2 + $0x3a] sm:$0xff]
        %v2049 = vld [vmem:[#allocation2 + $0x42] sm:$0xff]
        %v2050 = vld [vmem:[#allocation2 + $0x4a] sm:$0xff]
        %v2051 = vpack.c.bf16 %v2042, %v2041
        %v2052 = vpack.c.bf16 %v2044, %v2043
        %v2053 = vpack.c.bf16 %v2046, %v2045
        %v2054 = vpack.c.bf16 %v2048, %v2047
        %v2055 = vpack.c.bf16 %v2050, %v2049
        %s2056 = scalar_lea.vmem %s6, 16
        %v2057 = vld [vmem:[%s2056] sm:$0xf]
        %v2058 = vld [vmem:[%s2056 + $0x4] sm:$0xf]
        %v2061 = vunpack.c.l.b16 %v2057
        %v2062 = vunpack.c.l.b16 %v2058
        %v2063 = vpack.c.b16 %v2062, %v2061
        %v2066 = vsel %vm1775, %v2051, 0
        %v2069 = vsel %vm1775, %v2052, 0
        %v2072 = vsel %vm1775, %v2053, 0
        %v2075 = vsel %vm1775, %v2054, 0
        %v2078 = vsel %vm1775, %v2055, 0
        %2080 = vmatprep.subr.bf16.mxu0 0
        %2081 = vmatpush1.bf16.msra.mxu0 0
        %2082 = vmatprep.subr.bf16.mxu0 0
        %2083 = vmatpush1.bf16.msra.mxu0 0
        %2084 = vmatprep.subr.bf16.mxu0 0
        %2085 = vmatpush1.bf16.msra.mxu0 0
        %2086 = vmatprep.subr.bf16.mxu0 0
        %2087 = vmatpush1.bf16.msra.mxu0 0
        %2088 = vmatprep.subr.bf16.mxu0 0
        %2089 = vmatpush1.bf16.msra.mxu0 0
        %2090 = vmatprep.subr.bf16.mxu0 0
        %2091 = vmatpush1.bf16.msra.mxu0 0
        %2092 = vmatprep.subr.bf16.mxu0 0
        %2093 = vmatpush1.bf16.msra.mxu0 0
        %2094 = vmatprep.subr.bf16.mxu0 0
        %2095 = vmatpush1.bf16.msra.mxu0 %v2063
        %2096 = vmatprep.subr.bf16.mxu0 0
        %2097 = vmatpush2.bf16.msra.mxu0 0
        %2098 = vmatprep.subr.bf16.mxu0 0
        %2099 = vmatpush2.bf16.msra.mxu0 0
        %2100 = vmatprep.subr.bf16.mxu0 0
        %2101 = vmatpush2.bf16.msra.mxu0 0
        %2102 = vmatprep.subr.bf16.mxu0 0
        %2103 = vmatpush2.bf16.msra.mxu0 0
        %2104 = vmatprep.subr.bf16.mxu0 0
        %2105 = vmatpush2.bf16.msra.mxu0 0
        %2106 = vmatprep.subr.bf16.mxu0 0
        %2107 = vmatpush2.bf16.msra.mxu0 0
        %2108 = vmatprep.subr.bf16.mxu0 0
        %2109 = vmatpush2.bf16.msra.mxu0 0
        %2110 = vmatprep.subr.bf16.mxu0 0
        %2111 = vmatpush2.bf16.msra.mxu0 0
        %2112 = vmatprep.mubr.bf16.mxu0 0
        %2113 = vmatmul.mubr.bf16.gmra.mxu0 %v2066
        %v2114 = vpop.f32.mrf.mxu0
        %v2115 = vadd.f32 0.0, %v2114
        %v2116 = vpop.f32.mrf.mxu0
        %v2117 = vpop.f32.mrf.mxu0
        %v2118 = vadd.f32 0.0, %v2117
        %v2119 = vpop.f32.mrf.mxu0
        %2120 = vmatprep.mubr.bf16.mxu0 0
        %2121 = vmatmul.mubr.bf16.gmra.mxu0 %v2069
        %v2122 = vpop.f32.mrf.mxu0
        %v2123 = vadd.f32 0.0, %v2122
        %v2124 = vpop.f32.mrf.mxu0
        %v2125 = vpop.f32.mrf.mxu0
        %v2126 = vadd.f32 0.0, %v2125
        %v2127 = vpop.f32.mrf.mxu0
        %2128 = vmatprep.mubr.bf16.mxu0 0
        %2129 = vmatmul.mubr.bf16.gmra.mxu0 %v2072
        %v2130 = vpop.f32.mrf.mxu0
        %v2131 = vadd.f32 0.0, %v2130
        %v2132 = vpop.f32.mrf.mxu0
        %v2133 = vpop.f32.mrf.mxu0
        %v2134 = vadd.f32 0.0, %v2133
        %v2135 = vpop.f32.mrf.mxu0
        %2136 = vmatprep.mubr.bf16.mxu0 0
        %2137 = vmatmul.mubr.bf16.gmra.mxu0 %v2075
        %v2138 = vpop.f32.mrf.mxu0
        %v2139 = vadd.f32 0.0, %v2138
        %v2140 = vpop.f32.mrf.mxu0
        %v2141 = vpop.f32.mrf.mxu0
        %v2142 = vadd.f32 0.0, %v2141
        %v2143 = vpop.f32.mrf.mxu0
        %2144 = vmatprep.mubr.bf16.mxu0 0
        %2145 = vmatmul.mubr.bf16.gmra.mxu0 %v2078
        %v2146 = vpop.f32.mrf.mxu0
        %v2147 = vadd.f32 0.0, %v2146
        %v2148 = vpop.f32.mrf.mxu0
        %v2149 = vpop.f32.mrf.mxu0
        %v2150 = vadd.f32 0.0, %v2149
        %v2151 = vpop.f32.mrf.mxu0
        %2152 = vdwg.mxu0
        %v2153 = vadd.f32 %v2003, %v2115
        %v2154 = vadd.f32 %v2006, %v2118
        %v2155 = vadd.f32 %v2011, %v2123
        %v2156 = vadd.f32 %v2014, %v2126
        %v2157 = vadd.f32 %v2019, %v2131
        %v2158 = vadd.f32 %v2022, %v2134
        %v2159 = vadd.f32 %v2027, %v2139
        %v2160 = vadd.f32 %v2030, %v2142
        %v2161 = vadd.f32 %v2035, %v2147
        %v2162 = vadd.f32 %v2038, %v2150
        %v2163 = vld [vmem:[#allocation2 + $0xa] sm:$0xff]
        %v2164 = vld [vmem:[#allocation2 + $0x12] sm:$0xff]
        %v2165 = vld [vmem:[#allocation2 + $0x1a] sm:$0xff]
        %v2166 = vld [vmem:[#allocation2 + $0x22] sm:$0xff]
        %v2167 = vld [vmem:[#allocation2 + $0x2a] sm:$0xff]
        %v2168 = vld [vmem:[#allocation2 + $0x32] sm:$0xff]
        %v2169 = vld [vmem:[#allocation2 + $0x3a] sm:$0xff]
        %v2170 = vld [vmem:[#allocation2 + $0x42] sm:$0xff]
        %v2171 = vld [vmem:[#allocation2 + $0x4a] sm:$0xff]
        %v2172 = vld [vmem:[#allocation2 + $0x52] sm:$0xff]
        %v2173 = vpack.c.bf16 %v2164, %v2163
        %v2174 = vpack.c.bf16 %v2166, %v2165
        %v2175 = vpack.c.bf16 %v2168, %v2167
        %v2176 = vpack.c.bf16 %v2170, %v2169
        %v2177 = vpack.c.bf16 %v2172, %v2171
        %s2178 = scalar_lea.vmem %s6, 24
        %v2179 = vld [vmem:[%s2178] sm:$0xf]
        %v2180 = vld [vmem:[%s2178 + $0x4] sm:$0xf]
        %v2183 = vunpack.c.l.b16 %v2179
        %v2184 = vunpack.c.l.b16 %v2180
        %v2185 = vpack.c.b16 %v2184, %v2183
        %v2188 = vsel %vm1775, %v2173, 0
        %v2191 = vsel %vm1775, %v2174, 0
        %v2194 = vsel %vm1775, %v2175, 0
        %v2197 = vsel %vm1775, %v2176, 0
        %v2200 = vsel %vm1775, %v2177, 0
        %2202 = vmatprep.subr.bf16.mxu0 0
        %2203 = vmatpush1.bf16.msra.mxu0 0
        %2204 = vmatprep.subr.bf16.mxu0 0
        %2205 = vmatpush1.bf16.msra.mxu0 0
        %2206 = vmatprep.subr.bf16.mxu0 0
        %2207 = vmatpush1.bf16.msra.mxu0 0
        %2208 = vmatprep.subr.bf16.mxu0 0
        %2209 = vmatpush1.bf16.msra.mxu0 0
        %2210 = vmatprep.subr.bf16.mxu0 0
        %2211 = vmatpush1.bf16.msra.mxu0 0
        %2212 = vmatprep.subr.bf16.mxu0 0
        %2213 = vmatpush1.bf16.msra.mxu0 0
        %2214 = vmatprep.subr.bf16.mxu0 0
        %2215 = vmatpush1.bf16.msra.mxu0 0
        %2216 = vmatprep.subr.bf16.mxu0 0
        %2217 = vmatpush1.bf16.msra.mxu0 %v2185
        %2218 = vmatprep.subr.bf16.mxu0 0
        %2219 = vmatpush2.bf16.msra.mxu0 0
        %2220 = vmatprep.subr.bf16.mxu0 0
        %2221 = vmatpush2.bf16.msra.mxu0 0
        %2222 = vmatprep.subr.bf16.mxu0 0
        %2223 = vmatpush2.bf16.msra.mxu0 0
        %2224 = vmatprep.subr.bf16.mxu0 0
        %2225 = vmatpush2.bf16.msra.mxu0 0
        %2226 = vmatprep.subr.bf16.mxu0 0
        %2227 = vmatpush2.bf16.msra.mxu0 0
        %2228 = vmatprep.subr.bf16.mxu0 0
        %2229 = vmatpush2.bf16.msra.mxu0 0
        %2230 = vmatprep.subr.bf16.mxu0 0
        %2231 = vmatpush2.bf16.msra.mxu0 0
        %2232 = vmatprep.subr.bf16.mxu0 0
        %2233 = vmatpush2.bf16.msra.mxu0 0
        %2234 = vmatprep.mubr.bf16.mxu0 0
        %2235 = vmatmul.mubr.bf16.gmra.mxu0 %v2188
        %v2236 = vpop.f32.mrf.mxu0
        %v2237 = vadd.f32 0.0, %v2236
        %v2238 = vpop.f32.mrf.mxu0
        %v2239 = vpop.f32.mrf.mxu0
        %v2240 = vadd.f32 0.0, %v2239
        %v2241 = vpop.f32.mrf.mxu0
        %2242 = vmatprep.mubr.bf16.mxu0 0
        %2243 = vmatmul.mubr.bf16.gmra.mxu0 %v2191
        %v2244 = vpop.f32.mrf.mxu0
        %v2245 = vadd.f32 0.0, %v2244
        %v2246 = vpop.f32.mrf.mxu0
        %v2247 = vpop.f32.mrf.mxu0
        %v2248 = vadd.f32 0.0, %v2247
        %v2249 = vpop.f32.mrf.mxu0
        %2250 = vmatprep.mubr.bf16.mxu0 0
        %2251 = vmatmul.mubr.bf16.gmra.mxu0 %v2194
        %v2252 = vpop.f32.mrf.mxu0
        %v2253 = vadd.f32 0.0, %v2252
        %v2254 = vpop.f32.mrf.mxu0
        %v2255 = vpop.f32.mrf.mxu0
        %v2256 = vadd.f32 0.0, %v2255
        %v2257 = vpop.f32.mrf.mxu0
        %2258 = vmatprep.mubr.bf16.mxu0 0
        %2259 = vmatmul.mubr.bf16.gmra.mxu0 %v2197
        %v2260 = vpop.f32.mrf.mxu0
        %v2261 = vadd.f32 0.0, %v2260
        %v2262 = vpop.f32.mrf.mxu0
        %v2263 = vpop.f32.mrf.mxu0
        %v2264 = vadd.f32 0.0, %v2263
        %v2265 = vpop.f32.mrf.mxu0
        %2266 = vmatprep.mubr.bf16.mxu0 0
        %2267 = vmatmul.mubr.bf16.gmra.mxu0 %v2200
        %v2268 = vpop.f32.mrf.mxu0
        %v2269 = vadd.f32 0.0, %v2268
        %v2270 = vpop.f32.mrf.mxu0
        %v2271 = vpop.f32.mrf.mxu0
        %v2272 = vadd.f32 0.0, %v2271
        %v2273 = vpop.f32.mrf.mxu0
        %2274 = vdwg.mxu0
        %v2275 = vadd.f32 %v2153, %v2237
        %v2276 = vadd.f32 %v2154, %v2240
        %v2277 = vadd.f32 %v2155, %v2245
        %v2278 = vadd.f32 %v2156, %v2248
        %v2279 = vadd.f32 %v2157, %v2253
        %v2280 = vadd.f32 %v2158, %v2256
        %v2281 = vadd.f32 %v2159, %v2261
        %v2282 = vadd.f32 %v2160, %v2264
        %v2283 = vadd.f32 %v2161, %v2269
        %v2284 = vadd.f32 %v2162, %v2272
        %v2285 = vld [vmem:[#allocation2 + $0xb] sm:$0xff]
        %v2286 = vld [vmem:[#allocation2 + $0x13] sm:$0xff]
        %v2287 = vld [vmem:[#allocation2 + $0x1b] sm:$0xff]
        %v2288 = vld [vmem:[#allocation2 + $0x23] sm:$0xff]
        %v2289 = vld [vmem:[#allocation2 + $0x2b] sm:$0xff]
        %v2290 = vld [vmem:[#allocation2 + $0x33] sm:$0xff]
        %v2291 = vld [vmem:[#allocation2 + $0x3b] sm:$0xff]
        %v2292 = vld [vmem:[#allocation2 + $0x43] sm:$0xff]
        %v2293 = vld [vmem:[#allocation2 + $0x4b] sm:$0xff]
        %v2294 = vld [vmem:[#allocation2 + $0x53] sm:$0xff]
        %v2295 = vpack.c.bf16 %v2286, %v2285
        %v2296 = vpack.c.bf16 %v2288, %v2287
        %v2297 = vpack.c.bf16 %v2290, %v2289
        %v2298 = vpack.c.bf16 %v2292, %v2291
        %v2299 = vpack.c.bf16 %v2294, %v2293
        %s2300 = scalar_lea.vmem %s6, 32
        %v2301 = vld [vmem:[%s2300] sm:$0xf]
        %v2302 = vld [vmem:[%s2300 + $0x4] sm:$0xf]
        %v2305 = vunpack.c.l.b16 %v2301
        %v2306 = vunpack.c.l.b16 %v2302
        %v2307 = vpack.c.b16 %v2306, %v2305
        %v2310 = vsel %vm1775, %v2295, 0
        %v2313 = vsel %vm1775, %v2296, 0
        %v2316 = vsel %vm1775, %v2297, 0
        %v2319 = vsel %vm1775, %v2298, 0
        %v2322 = vsel %vm1775, %v2299, 0
        %2324 = vmatprep.subr.bf16.mxu0 0
        %2325 = vmatpush1.bf16.msra.mxu0 0
        %2326 = vmatprep.subr.bf16.mxu0 0
        %2327 = vmatpush1.bf16.msra.mxu0 0
        %2328 = vmatprep.subr.bf16.mxu0 0
        %2329 = vmatpush1.bf16.msra.mxu0 0
        %2330 = vmatprep.subr.bf16.mxu0 0
        %2331 = vmatpush1.bf16.msra.mxu0 0
        %2332 = vmatprep.subr.bf16.mxu0 0
        %2333 = vmatpush1.bf16.msra.mxu0 0
        %2334 = vmatprep.subr.bf16.mxu0 0
        %2335 = vmatpush1.bf16.msra.mxu0 0
        %2336 = vmatprep.subr.bf16.mxu0 0
        %2337 = vmatpush1.bf16.msra.mxu0 0
        %2338 = vmatprep.subr.bf16.mxu0 0
        %2339 = vmatpush1.bf16.msra.mxu0 %v2307
        %2340 = vmatprep.subr.bf16.mxu0 0
        %2341 = vmatpush2.bf16.msra.mxu0 0
        %2342 = vmatprep.subr.bf16.mxu0 0
        %2343 = vmatpush2.bf16.msra.mxu0 0
        %2344 = vmatprep.subr.bf16.mxu0 0
        %2345 = vmatpush2.bf16.msra.mxu0 0
        %2346 = vmatprep.subr.bf16.mxu0 0
        %2347 = vmatpush2.bf16.msra.mxu0 0
        %2348 = vmatprep.subr.bf16.mxu0 0
        %2349 = vmatpush2.bf16.msra.mxu0 0
        %2350 = vmatprep.subr.bf16.mxu0 0
        %2351 = vmatpush2.bf16.msra.mxu0 0
        %2352 = vmatprep.subr.bf16.mxu0 0
        %2353 = vmatpush2.bf16.msra.mxu0 0
        %2354 = vmatprep.subr.bf16.mxu0 0
        %2355 = vmatpush2.bf16.msra.mxu0 0
        %2356 = vmatprep.mubr.bf16.mxu0 0
        %2357 = vmatmul.mubr.bf16.gmra.mxu0 %v2310
        %v2358 = vpop.f32.mrf.mxu0
        %v2359 = vadd.f32 0.0, %v2358
        %v2360 = vpop.f32.mrf.mxu0
        %v2361 = vpop.f32.mrf.mxu0
        %v2362 = vadd.f32 0.0, %v2361
        %v2363 = vpop.f32.mrf.mxu0
        %2364 = vmatprep.mubr.bf16.mxu0 0
        %2365 = vmatmul.mubr.bf16.gmra.mxu0 %v2313
        %v2366 = vpop.f32.mrf.mxu0
        %v2367 = vadd.f32 0.0, %v2366
        %v2368 = vpop.f32.mrf.mxu0
        %v2369 = vpop.f32.mrf.mxu0
        %v2370 = vadd.f32 0.0, %v2369
        %v2371 = vpop.f32.mrf.mxu0
        %2372 = vmatprep.mubr.bf16.mxu0 0
        %2373 = vmatmul.mubr.bf16.gmra.mxu0 %v2316
        %v2374 = vpop.f32.mrf.mxu0
        %v2375 = vadd.f32 0.0, %v2374
        %v2376 = vpop.f32.mrf.mxu0
        %v2377 = vpop.f32.mrf.mxu0
        %v2378 = vadd.f32 0.0, %v2377
        %v2379 = vpop.f32.mrf.mxu0
        %2380 = vmatprep.mubr.bf16.mxu0 0
        %2381 = vmatmul.mubr.bf16.gmra.mxu0 %v2319
        %v2382 = vpop.f32.mrf.mxu0
        %v2383 = vadd.f32 0.0, %v2382
        %v2384 = vpop.f32.mrf.mxu0
        %v2385 = vpop.f32.mrf.mxu0
        %v2386 = vadd.f32 0.0, %v2385
        %v2387 = vpop.f32.mrf.mxu0
        %2388 = vmatprep.mubr.bf16.mxu0 0
        %2389 = vmatmul.mubr.bf16.gmra.mxu0 %v2322
        %v2390 = vpop.f32.mrf.mxu0
        %v2391 = vadd.f32 0.0, %v2390
        %v2392 = vpop.f32.mrf.mxu0
        %v2393 = vpop.f32.mrf.mxu0
        %v2394 = vadd.f32 0.0, %v2393
        %v2395 = vpop.f32.mrf.mxu0
        %2396 = vdwg.mxu0
        %v2397 = vadd.f32 %v2275, %v2359
        %v2398 = vadd.f32 %v2276, %v2362
        %v2399 = vadd.f32 %v2277, %v2367
        %v2400 = vadd.f32 %v2278, %v2370
        %v2401 = vadd.f32 %v2279, %v2375
        %v2402 = vadd.f32 %v2280, %v2378
        %v2403 = vadd.f32 %v2281, %v2383
        %v2404 = vadd.f32 %v2282, %v2386
        %v2405 = vadd.f32 %v2283, %v2391
        %v2406 = vadd.f32 %v2284, %v2394
        %v2407 = vld [vmem:[#allocation2 + $0xc] sm:$0xff]
        %v2408 = vld [vmem:[#allocation2 + $0x14] sm:$0xff]
        %v2409 = vld [vmem:[#allocation2 + $0x1c] sm:$0xff]
        %v2410 = vld [vmem:[#allocation2 + $0x24] sm:$0xff]
        %v2411 = vld [vmem:[#allocation2 + $0x2c] sm:$0xff]
        %v2412 = vld [vmem:[#allocation2 + $0x34] sm:$0xff]
        %v2413 = vld [vmem:[#allocation2 + $0x3c] sm:$0xff]
        %v2414 = vld [vmem:[#allocation2 + $0x44] sm:$0xff]
        %v2415 = vld [vmem:[#allocation2 + $0x4c] sm:$0xff]
        %v2416 = vld [vmem:[#allocation2 + $0x54] sm:$0xff]
        %v2417 = vpack.c.bf16 %v2408, %v2407
        %v2418 = vpack.c.bf16 %v2410, %v2409
        %v2419 = vpack.c.bf16 %v2412, %v2411
        %v2420 = vpack.c.bf16 %v2414, %v2413
        %v2421 = vpack.c.bf16 %v2416, %v2415
        %s2422 = scalar_lea.vmem %s6, 40
        %v2423 = vld [vmem:[%s2422] sm:$0xf]
        %v2424 = vld [vmem:[%s2422 + $0x4] sm:$0xf]
        %v2427 = vunpack.c.l.b16 %v2423
        %v2428 = vunpack.c.l.b16 %v2424
        %v2429 = vpack.c.b16 %v2428, %v2427
        %v2432 = vsel %vm1775, %v2417, 0
        %v2435 = vsel %vm1775, %v2418, 0
        %v2438 = vsel %vm1775, %v2419, 0
        %v2441 = vsel %vm1775, %v2420, 0
        %v2444 = vsel %vm1775, %v2421, 0
        %2446 = vmatprep.subr.bf16.mxu0 0
        %2447 = vmatpush1.bf16.msra.mxu0 0
        %2448 = vmatprep.subr.bf16.mxu0 0
        %2449 = vmatpush1.bf16.msra.mxu0 0
        %2450 = vmatprep.subr.bf16.mxu0 0
        %2451 = vmatpush1.bf16.msra.mxu0 0
        %2452 = vmatprep.subr.bf16.mxu0 0
        %2453 = vmatpush1.bf16.msra.mxu0 0
        %2454 = vmatprep.subr.bf16.mxu0 0
        %2455 = vmatpush1.bf16.msra.mxu0 0
        %2456 = vmatprep.subr.bf16.mxu0 0
        %2457 = vmatpush1.bf16.msra.mxu0 0
        %2458 = vmatprep.subr.bf16.mxu0 0
        %2459 = vmatpush1.bf16.msra.mxu0 0
        %2460 = vmatprep.subr.bf16.mxu0 0
        %2461 = vmatpush1.bf16.msra.mxu0 %v2429
        %2462 = vmatprep.subr.bf16.mxu0 0
        %2463 = vmatpush2.bf16.msra.mxu0 0
        %2464 = vmatprep.subr.bf16.mxu0 0
        %2465 = vmatpush2.bf16.msra.mxu0 0
        %2466 = vmatprep.subr.bf16.mxu0 0
        %2467 = vmatpush2.bf16.msra.mxu0 0
        %2468 = vmatprep.subr.bf16.mxu0 0
        %2469 = vmatpush2.bf16.msra.mxu0 0
        %2470 = vmatprep.subr.bf16.mxu0 0
        %2471 = vmatpush2.bf16.msra.mxu0 0
        %2472 = vmatprep.subr.bf16.mxu0 0
        %2473 = vmatpush2.bf16.msra.mxu0 0
        %2474 = vmatprep.subr.bf16.mxu0 0
        %2475 = vmatpush2.bf16.msra.mxu0 0
        %2476 = vmatprep.subr.bf16.mxu0 0
        %2477 = vmatpush2.bf16.msra.mxu0 0
        %2478 = vmatprep.mubr.bf16.mxu0 0
        %2479 = vmatmul.mubr.bf16.gmra.mxu0 %v2432
        %v2480 = vpop.f32.mrf.mxu0
        %v2481 = vadd.f32 0.0, %v2480
        %v2482 = vpop.f32.mrf.mxu0
        %v2483 = vpop.f32.mrf.mxu0
        %v2484 = vadd.f32 0.0, %v2483
        %v2485 = vpop.f32.mrf.mxu0
        %2486 = vmatprep.mubr.bf16.mxu0 0
        %2487 = vmatmul.mubr.bf16.gmra.mxu0 %v2435
        %v2488 = vpop.f32.mrf.mxu0
        %v2489 = vadd.f32 0.0, %v2488
        %v2490 = vpop.f32.mrf.mxu0
        %v2491 = vpop.f32.mrf.mxu0
        %v2492 = vadd.f32 0.0, %v2491
        %v2493 = vpop.f32.mrf.mxu0
        %2494 = vmatprep.mubr.bf16.mxu0 0
        %2495 = vmatmul.mubr.bf16.gmra.mxu0 %v2438
        %v2496 = vpop.f32.mrf.mxu0
        %v2497 = vadd.f32 0.0, %v2496
        %v2498 = vpop.f32.mrf.mxu0
        %v2499 = vpop.f32.mrf.mxu0
        %v2500 = vadd.f32 0.0, %v2499
        %v2501 = vpop.f32.mrf.mxu0
        %2502 = vmatprep.mubr.bf16.mxu0 0
        %2503 = vmatmul.mubr.bf16.gmra.mxu0 %v2441
        %v2504 = vpop.f32.mrf.mxu0
        %v2505 = vadd.f32 0.0, %v2504
        %v2506 = vpop.f32.mrf.mxu0
        %v2507 = vpop.f32.mrf.mxu0
        %v2508 = vadd.f32 0.0, %v2507
        %v2509 = vpop.f32.mrf.mxu0
        %2510 = vmatprep.mubr.bf16.mxu0 0
        %2511 = vmatmul.mubr.bf16.gmra.mxu0 %v2444
        %v2512 = vpop.f32.mrf.mxu0
        %v2513 = vadd.f32 0.0, %v2512
        %v2514 = vpop.f32.mrf.mxu0
        %v2515 = vpop.f32.mrf.mxu0
        %v2516 = vadd.f32 0.0, %v2515
        %v2517 = vpop.f32.mrf.mxu0
        %2518 = vdwg.mxu0
        %v2519 = vadd.f32 %v2397, %v2481
        %v2520 = vadd.f32 %v2398, %v2484
        %v2521 = vadd.f32 %v2399, %v2489
        %v2522 = vadd.f32 %v2400, %v2492
        %v2523 = vadd.f32 %v2401, %v2497
        %v2524 = vadd.f32 %v2402, %v2500
        %v2525 = vadd.f32 %v2403, %v2505
        %v2526 = vadd.f32 %v2404, %v2508
        %v2527 = vadd.f32 %v2405, %v2513
        %v2528 = vadd.f32 %v2406, %v2516
        %v2529 = vld [vmem:[#allocation2 + $0x14] sm:$0xff]
        %v2530 = vld [vmem:[#allocation2 + $0x1c] sm:$0xff]
        %v2531 = vld [vmem:[#allocation2 + $0x24] sm:$0xff]
        %v2532 = vld [vmem:[#allocation2 + $0x2c] sm:$0xff]
        %v2533 = vld [vmem:[#allocation2 + $0x34] sm:$0xff]
        %v2534 = vld [vmem:[#allocation2 + $0x3c] sm:$0xff]
        %v2535 = vld [vmem:[#allocation2 + $0x44] sm:$0xff]
        %v2536 = vld [vmem:[#allocation2 + $0x4c] sm:$0xff]
        %v2537 = vld [vmem:[#allocation2 + $0x54] sm:$0xff]
        %v2538 = vld [vmem:[#allocation2 + $0x5c] sm:$0xff]
        %v2539 = vpack.c.bf16 %v2530, %v2529
        %v2540 = vpack.c.bf16 %v2532, %v2531
        %v2541 = vpack.c.bf16 %v2534, %v2533
        %v2542 = vpack.c.bf16 %v2536, %v2535
        %v2543 = vpack.c.bf16 %v2538, %v2537
        %s2544 = scalar_lea.vmem %s6, 48
        %v2545 = vld [vmem:[%s2544] sm:$0xf]
        %v2546 = vld [vmem:[%s2544 + $0x4] sm:$0xf]
        %v2549 = vunpack.c.l.b16 %v2545
        %v2550 = vunpack.c.l.b16 %v2546
        %v2551 = vpack.c.b16 %v2550, %v2549
        %v2554 = vsel %vm1775, %v2539, 0
        %v2557 = vsel %vm1775, %v2540, 0
        %v2560 = vsel %vm1775, %v2541, 0
        %v2563 = vsel %vm1775, %v2542, 0
        %v2566 = vsel %vm1775, %v2543, 0
        %2568 = vmatprep.subr.bf16.mxu0 0
        %2569 = vmatpush1.bf16.msra.mxu0 0
        %2570 = vmatprep.subr.bf16.mxu0 0
        %2571 = vmatpush1.bf16.msra.mxu0 0
        %2572 = vmatprep.subr.bf16.mxu0 0
        %2573 = vmatpush1.bf16.msra.mxu0 0
        %2574 = vmatprep.subr.bf16.mxu0 0
        %2575 = vmatpush1.bf16.msra.mxu0 0
        %2576 = vmatprep.subr.bf16.mxu0 0
        %2577 = vmatpush1.bf16.msra.mxu0 0
        %2578 = vmatprep.subr.bf16.mxu0 0
        %2579 = vmatpush1.bf16.msra.mxu0 0
        %2580 = vmatprep.subr.bf16.mxu0 0
        %2581 = vmatpush1.bf16.msra.mxu0 0
        %2582 = vmatprep.subr.bf16.mxu0 0
        %2583 = vmatpush1.bf16.msra.mxu0 %v2551
        %2584 = vmatprep.subr.bf16.mxu0 0
        %2585 = vmatpush2.bf16.msra.mxu0 0
        %2586 = vmatprep.subr.bf16.mxu0 0
        %2587 = vmatpush2.bf16.msra.mxu0 0
        %2588 = vmatprep.subr.bf16.mxu0 0
        %2589 = vmatpush2.bf16.msra.mxu0 0
        %2590 = vmatprep.subr.bf16.mxu0 0
        %2591 = vmatpush2.bf16.msra.mxu0 0
        %2592 = vmatprep.subr.bf16.mxu0 0
        %2593 = vmatpush2.bf16.msra.mxu0 0
        %2594 = vmatprep.subr.bf16.mxu0 0
        %2595 = vmatpush2.bf16.msra.mxu0 0
        %2596 = vmatprep.subr.bf16.mxu0 0
        %2597 = vmatpush2.bf16.msra.mxu0 0
        %2598 = vmatprep.subr.bf16.mxu0 0
        %2599 = vmatpush2.bf16.msra.mxu0 0
        %2600 = vmatprep.mubr.bf16.mxu0 0
        %2601 = vmatmul.mubr.bf16.gmra.mxu0 %v2554
        %v2602 = vpop.f32.mrf.mxu0
        %v2603 = vadd.f32 0.0, %v2602
        %v2604 = vpop.f32.mrf.mxu0
        %v2605 = vpop.f32.mrf.mxu0
        %v2606 = vadd.f32 0.0, %v2605
        %v2607 = vpop.f32.mrf.mxu0
        %2608 = vmatprep.mubr.bf16.mxu0 0
        %2609 = vmatmul.mubr.bf16.gmra.mxu0 %v2557
        %v2610 = vpop.f32.mrf.mxu0
        %v2611 = vadd.f32 0.0, %v2610
        %v2612 = vpop.f32.mrf.mxu0
        %v2613 = vpop.f32.mrf.mxu0
        %v2614 = vadd.f32 0.0, %v2613
        %v2615 = vpop.f32.mrf.mxu0
        %2616 = vmatprep.mubr.bf16.mxu0 0
        %2617 = vmatmul.mubr.bf16.gmra.mxu0 %v2560
        %v2618 = vpop.f32.mrf.mxu0
        %v2619 = vadd.f32 0.0, %v2618
        %v2620 = vpop.f32.mrf.mxu0
        %v2621 = vpop.f32.mrf.mxu0
        %v2622 = vadd.f32 0.0, %v2621
        %v2623 = vpop.f32.mrf.mxu0
        %2624 = vmatprep.mubr.bf16.mxu0 0
        %2625 = vmatmul.mubr.bf16.gmra.mxu0 %v2563
        %v2626 = vpop.f32.mrf.mxu0
        %v2627 = vadd.f32 0.0, %v2626
        %v2628 = vpop.f32.mrf.mxu0
        %v2629 = vpop.f32.mrf.mxu0
        %v2630 = vadd.f32 0.0, %v2629
        %v2631 = vpop.f32.mrf.mxu0
        %2632 = vmatprep.mubr.bf16.mxu0 0
        %2633 = vmatmul.mubr.bf16.gmra.mxu0 %v2566
        %v2634 = vpop.f32.mrf.mxu0
        %v2635 = vadd.f32 0.0, %v2634
        %v2636 = vpop.f32.mrf.mxu0
        %v2637 = vpop.f32.mrf.mxu0
        %v2638 = vadd.f32 0.0, %v2637
        %v2639 = vpop.f32.mrf.mxu0
        %2640 = vdwg.mxu0
        %v2641 = vadd.f32 %v2519, %v2603
        %v2642 = vadd.f32 %v2520, %v2606
        %v2643 = vadd.f32 %v2521, %v2611
        %v2644 = vadd.f32 %v2522, %v2614
        %v2645 = vadd.f32 %v2523, %v2619
        %v2646 = vadd.f32 %v2524, %v2622
        %v2647 = vadd.f32 %v2525, %v2627
        %v2648 = vadd.f32 %v2526, %v2630
        %v2649 = vadd.f32 %v2527, %v2635
        %v2650 = vadd.f32 %v2528, %v2638
        %v2651 = vld [vmem:[#allocation2 + $0x15] sm:$0xff]
        %v2652 = vld [vmem:[#allocation2 + $0x1d] sm:$0xff]
        %v2653 = vld [vmem:[#allocation2 + $0x25] sm:$0xff]
        %v2654 = vld [vmem:[#allocation2 + $0x2d] sm:$0xff]
        %v2655 = vld [vmem:[#allocation2 + $0x35] sm:$0xff]
        %v2656 = vld [vmem:[#allocation2 + $0x3d] sm:$0xff]
        %v2657 = vld [vmem:[#allocation2 + $0x45] sm:$0xff]
        %v2658 = vld [vmem:[#allocation2 + $0x4d] sm:$0xff]
        %v2659 = vld [vmem:[#allocation2 + $0x55] sm:$0xff]
        %v2660 = vld [vmem:[#allocation2 + $0x5d] sm:$0xff]
        %v2661 = vpack.c.bf16 %v2652, %v2651
        %v2662 = vpack.c.bf16 %v2654, %v2653
        %v2663 = vpack.c.bf16 %v2656, %v2655
        %v2664 = vpack.c.bf16 %v2658, %v2657
        %v2665 = vpack.c.bf16 %v2660, %v2659
        %s2666 = scalar_lea.vmem %s6, 56
        %v2667 = vld [vmem:[%s2666] sm:$0xf]
        %v2668 = vld [vmem:[%s2666 + $0x4] sm:$0xf]
        %v2671 = vunpack.c.l.b16 %v2667
        %v2672 = vunpack.c.l.b16 %v2668
        %v2673 = vpack.c.b16 %v2672, %v2671
        %v2676 = vsel %vm1775, %v2661, 0
        %v2679 = vsel %vm1775, %v2662, 0
        %v2682 = vsel %vm1775, %v2663, 0
        %v2685 = vsel %vm1775, %v2664, 0
        %v2688 = vsel %vm1775, %v2665, 0
        %2690 = vmatprep.subr.bf16.mxu0 0
        %2691 = vmatpush1.bf16.msra.mxu0 0
        %2692 = vmatprep.subr.bf16.mxu0 0
        %2693 = vmatpush1.bf16.msra.mxu0 0
        %2694 = vmatprep.subr.bf16.mxu0 0
        %2695 = vmatpush1.bf16.msra.mxu0 0
        %2696 = vmatprep.subr.bf16.mxu0 0
        %2697 = vmatpush1.bf16.msra.mxu0 0
        %2698 = vmatprep.subr.bf16.mxu0 0
        %2699 = vmatpush1.bf16.msra.mxu0 0
        %2700 = vmatprep.subr.bf16.mxu0 0
        %2701 = vmatpush1.bf16.msra.mxu0 0
        %2702 = vmatprep.subr.bf16.mxu0 0
        %2703 = vmatpush1.bf16.msra.mxu0 0
        %2704 = vmatprep.subr.bf16.mxu0 0
        %2705 = vmatpush1.bf16.msra.mxu0 %v2673
        %2706 = vmatprep.subr.bf16.mxu0 0
        %2707 = vmatpush2.bf16.msra.mxu0 0
        %2708 = vmatprep.subr.bf16.mxu0 0
        %2709 = vmatpush2.bf16.msra.mxu0 0
        %2710 = vmatprep.subr.bf16.mxu0 0
        %2711 = vmatpush2.bf16.msra.mxu0 0
        %2712 = vmatprep.subr.bf16.mxu0 0
        %2713 = vmatpush2.bf16.msra.mxu0 0
        %2714 = vmatprep.subr.bf16.mxu0 0
        %2715 = vmatpush2.bf16.msra.mxu0 0
        %2716 = vmatprep.subr.bf16.mxu0 0
        %2717 = vmatpush2.bf16.msra.mxu0 0
        %2718 = vmatprep.subr.bf16.mxu0 0
        %2719 = vmatpush2.bf16.msra.mxu0 0
        %2720 = vmatprep.subr.bf16.mxu0 0
        %2721 = vmatpush2.bf16.msra.mxu0 0
        %2722 = vmatprep.mubr.bf16.mxu0 0
        %2723 = vmatmul.mubr.bf16.gmra.mxu0 %v2676
        %v2724 = vpop.f32.mrf.mxu0
        %v2725 = vadd.f32 0.0, %v2724
        %v2726 = vpop.f32.mrf.mxu0
        %v2727 = vpop.f32.mrf.mxu0
        %v2728 = vadd.f32 0.0, %v2727
        %v2729 = vpop.f32.mrf.mxu0
        %2730 = vmatprep.mubr.bf16.mxu0 0
        %2731 = vmatmul.mubr.bf16.gmra.mxu0 %v2679
        %v2732 = vpop.f32.mrf.mxu0
        %v2733 = vadd.f32 0.0, %v2732
        %v2734 = vpop.f32.mrf.mxu0
        %v2735 = vpop.f32.mrf.mxu0
        %v2736 = vadd.f32 0.0, %v2735
        %v2737 = vpop.f32.mrf.mxu0
        %2738 = vmatprep.mubr.bf16.mxu0 0
        %2739 = vmatmul.mubr.bf16.gmra.mxu0 %v2682
        %v2740 = vpop.f32.mrf.mxu0
        %v2741 = vadd.f32 0.0, %v2740
        %v2742 = vpop.f32.mrf.mxu0
        %v2743 = vpop.f32.mrf.mxu0
        %v2744 = vadd.f32 0.0, %v2743
        %v2745 = vpop.f32.mrf.mxu0
        %2746 = vmatprep.mubr.bf16.mxu0 0
        %2747 = vmatmul.mubr.bf16.gmra.mxu0 %v2685
        %v2748 = vpop.f32.mrf.mxu0
        %v2749 = vadd.f32 0.0, %v2748
        %v2750 = vpop.f32.mrf.mxu0
        %v2751 = vpop.f32.mrf.mxu0
        %v2752 = vadd.f32 0.0, %v2751
        %v2753 = vpop.f32.mrf.mxu0
        %2754 = vmatprep.mubr.bf16.mxu0 0
        %2755 = vmatmul.mubr.bf16.gmra.mxu0 %v2688
        %v2756 = vpop.f32.mrf.mxu0
        %v2757 = vadd.f32 0.0, %v2756
        %v2758 = vpop.f32.mrf.mxu0
        %v2759 = vpop.f32.mrf.mxu0
        %v2760 = vadd.f32 0.0, %v2759
        %v2761 = vpop.f32.mrf.mxu0
        %2762 = vdwg.mxu0
        %v2763 = vadd.f32 %v2641, %v2725
        %v2764 = vadd.f32 %v2642, %v2728
        %v2765 = vadd.f32 %v2643, %v2733
        %v2766 = vadd.f32 %v2644, %v2736
        %v2767 = vadd.f32 %v2645, %v2741
        %v2768 = vadd.f32 %v2646, %v2744
        %v2769 = vadd.f32 %v2647, %v2749
        %v2770 = vadd.f32 %v2648, %v2752
        %v2771 = vadd.f32 %v2649, %v2757
        %v2772 = vadd.f32 %v2650, %v2760
        %v2773 = vld [vmem:[#allocation2 + $0x16] sm:$0xff]
        %v2774 = vld [vmem:[#allocation2 + $0x1e] sm:$0xff]
        %v2775 = vld [vmem:[#allocation2 + $0x26] sm:$0xff]
        %v2776 = vld [vmem:[#allocation2 + $0x2e] sm:$0xff]
        %v2777 = vld [vmem:[#allocation2 + $0x36] sm:$0xff]
        %v2778 = vld [vmem:[#allocation2 + $0x3e] sm:$0xff]
        %v2779 = vld [vmem:[#allocation2 + $0x46] sm:$0xff]
        %v2780 = vld [vmem:[#allocation2 + $0x4e] sm:$0xff]
        %v2781 = vld [vmem:[#allocation2 + $0x56] sm:$0xff]
        %v2782 = vld [vmem:[#allocation2 + $0x5e] sm:$0xff]
        %v2783 = vpack.c.bf16 %v2774, %v2773
        %v2784 = vpack.c.bf16 %v2776, %v2775
        %v2785 = vpack.c.bf16 %v2778, %v2777
        %v2786 = vpack.c.bf16 %v2780, %v2779
        %v2787 = vpack.c.bf16 %v2782, %v2781
        %s2788 = scalar_lea.vmem %s6, 64
        %v2789 = vld [vmem:[%s2788] sm:$0xf]
        %v2790 = vld [vmem:[%s2788 + $0x4] sm:$0xf]
        %v2793 = vunpack.c.l.b16 %v2789
        %v2794 = vunpack.c.l.b16 %v2790
        %v2795 = vpack.c.b16 %v2794, %v2793
        %v2798 = vsel %vm1775, %v2783, 0
        %v2801 = vsel %vm1775, %v2784, 0
        %v2804 = vsel %vm1775, %v2785, 0
        %v2807 = vsel %vm1775, %v2786, 0
        %v2810 = vsel %vm1775, %v2787, 0
        %2812 = vmatprep.subr.bf16.mxu0 0
        %2813 = vmatpush1.bf16.msra.mxu0 0
        %2814 = vmatprep.subr.bf16.mxu0 0
        %2815 = vmatpush1.bf16.msra.mxu0 0
        %2816 = vmatprep.subr.bf16.mxu0 0
        %2817 = vmatpush1.bf16.msra.mxu0 0
        %2818 = vmatprep.subr.bf16.mxu0 0
        %2819 = vmatpush1.bf16.msra.mxu0 0
        %2820 = vmatprep.subr.bf16.mxu0 0
        %2821 = vmatpush1.bf16.msra.mxu0 0
        %2822 = vmatprep.subr.bf16.mxu0 0
        %2823 = vmatpush1.bf16.msra.mxu0 0
        %2824 = vmatprep.subr.bf16.mxu0 0
        %2825 = vmatpush1.bf16.msra.mxu0 0
        %2826 = vmatprep.subr.bf16.mxu0 0
        %2827 = vmatpush1.bf16.msra.mxu0 %v2795
        %2828 = vmatprep.subr.bf16.mxu0 0
        %2829 = vmatpush2.bf16.msra.mxu0 0
        %2830 = vmatprep.subr.bf16.mxu0 0
        %2831 = vmatpush2.bf16.msra.mxu0 0
        %2832 = vmatprep.subr.bf16.mxu0 0
        %2833 = vmatpush2.bf16.msra.mxu0 0
        %2834 = vmatprep.subr.bf16.mxu0 0
        %2835 = vmatpush2.bf16.msra.mxu0 0
        %2836 = vmatprep.subr.bf16.mxu0 0
        %2837 = vmatpush2.bf16.msra.mxu0 0
        %2838 = vmatprep.subr.bf16.mxu0 0
        %2839 = vmatpush2.bf16.msra.mxu0 0
        %2840 = vmatprep.subr.bf16.mxu0 0
        %2841 = vmatpush2.bf16.msra.mxu0 0
        %2842 = vmatprep.subr.bf16.mxu0 0
        %2843 = vmatpush2.bf16.msra.mxu0 0
        %2844 = vmatprep.mubr.bf16.mxu0 0
        %2845 = vmatmul.mubr.bf16.gmra.mxu0 %v2798
        %v2846 = vpop.f32.mrf.mxu0
        %v2847 = vadd.f32 0.0, %v2846
        %v2848 = vpop.f32.mrf.mxu0
        %v2849 = vpop.f32.mrf.mxu0
        %v2850 = vadd.f32 0.0, %v2849
        %v2851 = vpop.f32.mrf.mxu0
        %2852 = vmatprep.mubr.bf16.mxu0 0
        %2853 = vmatmul.mubr.bf16.gmra.mxu0 %v2801
        %v2854 = vpop.f32.mrf.mxu0
        %v2855 = vadd.f32 0.0, %v2854
        %v2856 = vpop.f32.mrf.mxu0
        %v2857 = vpop.f32.mrf.mxu0
        %v2858 = vadd.f32 0.0, %v2857
        %v2859 = vpop.f32.mrf.mxu0
        %2860 = vmatprep.mubr.bf16.mxu0 0
        %2861 = vmatmul.mubr.bf16.gmra.mxu0 %v2804
        %v2862 = vpop.f32.mrf.mxu0
        %v2863 = vadd.f32 0.0, %v2862
        %v2864 = vpop.f32.mrf.mxu0
        %v2865 = vpop.f32.mrf.mxu0
        %v2866 = vadd.f32 0.0, %v2865
        %v2867 = vpop.f32.mrf.mxu0
        %2868 = vmatprep.mubr.bf16.mxu0 0
        %2869 = vmatmul.mubr.bf16.gmra.mxu0 %v2807
        %v2870 = vpop.f32.mrf.mxu0
        %v2871 = vadd.f32 0.0, %v2870
        %v2872 = vpop.f32.mrf.mxu0
        %v2873 = vpop.f32.mrf.mxu0
        %v2874 = vadd.f32 0.0, %v2873
        %v2875 = vpop.f32.mrf.mxu0
        %2876 = vmatprep.mubr.bf16.mxu0 0
        %2877 = vmatmul.mubr.bf16.gmra.mxu0 %v2810
        %v2878 = vpop.f32.mrf.mxu0
        %v2879 = vadd.f32 0.0, %v2878
        %v2880 = vpop.f32.mrf.mxu0
        %v2881 = vpop.f32.mrf.mxu0
        %v2882 = vadd.f32 0.0, %v2881
        %v2883 = vpop.f32.mrf.mxu0
        %2884 = vdwg.mxu0
        %v2885 = vadd.f32 %v2763, %v2847
        %v2886 = vadd.f32 %v2764, %v2850
        %v2887 = vadd.f32 %v2765, %v2855
        %v2888 = vadd.f32 %v2766, %v2858
        %v2889 = vadd.f32 %v2767, %v2863
        %v2890 = vadd.f32 %v2768, %v2866
        %v2891 = vadd.f32 %v2769, %v2871
        %v2892 = vadd.f32 %v2770, %v2874
        %v2893 = vadd.f32 %v2771, %v2879
        %v2894 = vadd.f32 %v2772, %v2882
        %v2895 = vld [vmem:[%s7] sm:$0x1]
        %v2897 = vlaneseq
        %v2898 = vshrl.u32 %v2897, 7
        %v2899 = vsub.s32 0, %v2898
        %v2900 = vrot.slane %v2895, %v2899
        %v2902 = vadd.f32 %v2885, %v2900
        %v2903 = vadd.f32 %v2886, %v2900
        %v2904 = vadd.f32 %v2887, %v2900
        %v2905 = vadd.f32 %v2888, %v2900
        %v2906 = vadd.f32 %v2889, %v2900
        %v2907 = vadd.f32 %v2890, %v2900
        %v2908 = vadd.f32 %v2891, %v2900
        %v2909 = vadd.f32 %v2892, %v2900
        %v2910 = vadd.f32 %v2893, %v2900
        %v2911 = vadd.f32 %v2894, %v2900
        %v2912 = vmax.f32 %v2902, 0.0
        %v2913 = vmax.f32 %v2903, 0.0
        %v2914 = vmax.f32 %v2904, 0.0
        %v2915 = vmax.f32 %v2905, 0.0
        %v2916 = vmax.f32 %v2906, 0.0
        %v2917 = vmax.f32 %v2907, 0.0
        %v2918 = vmax.f32 %v2908, 0.0
        %v2919 = vmax.f32 %v2909, 0.0
        %v2920 = vmax.f32 %v2910, 0.0
        %v2921 = vmax.f32 %v2911, 0.0
        %2922 = vst.msk [vmem:[#allocation3] sm:$0xff] %vm1775, 0.0
        %2923 = vst.msk [vmem:[#allocation3 + $0x8] sm:$0xff] %vm1775, 0.0
        %2924 = vst.msk [vmem:[#allocation3 + $0x10] sm:$0xff] %vm1775, 0.0
        %2925 = vst.msk [vmem:[#allocation3 + $0x18] sm:$0xff] %vm1775, 0.0
        %2926 = vst.msk [vmem:[#allocation3 + $0x20] sm:$0xff] %vm1775, 0.0
        %2927 = vst.msk [vmem:[#allocation3 + $0x28] sm:$0xff] %vm1775, 0.0
        %2928 = vst.msk [vmem:[#allocation3 + $0x30] sm:$0xff] %vm1775, 0.0
        %2929 = vst.msk [vmem:[#allocation3 + $0x38] sm:$0xff] %vm1775, 0.0
        %2930 = vst.msk [vmem:[#allocation3 + $0x40] sm:$0xff] %vm1775, 0.0
        %2931 = vst.msk [vmem:[#allocation3 + $0x48] sm:$0xff] %vm1775, 0.0
        %2932 = vst.msk [vmem:[#allocation3 + $0x50] sm:$0xff] %vm1775, 0.0
        %2933 = vst.msk [vmem:[#allocation3 + $0x58] sm:$0xff] %vm1775, 0.0
        %2934 = vst.msk [vmem:[#allocation3 + $0x60] sm:$0xff] %vm1775, 0.0
        %2935 = vst.msk [vmem:[#allocation3 + $0xb] sm:$0xff] %vm1775, %v2912
        %2936 = vst.msk [vmem:[#allocation3 + $0x13] sm:$0xfc] %vm1794, %v2913
        %2937 = vst.msk [vmem:[#allocation3 + $0x1b] sm:$0x3] %vm1796, %v2914
        %2938 = vst.msk [vmem:[#allocation3 + $0x1b] sm:$0xf0] %vm1802, %v2914
        %2939 = vst.msk [vmem:[#allocation3 + $0x23] sm:$0xf] %vm1804, %v2915
        %2940 = vst.msk [vmem:[#allocation3 + $0x23] sm:$0xc0] %vm1810, %v2915
        %2941 = vst.msk [vmem:[#allocation3 + $0x2b] sm:$0x3f] %vm1812, %v2916
        %2942 = vst.msk [vmem:[#allocation3 + $0x33] sm:$0xff] %vm1775, %v2917
        %2943 = vst.msk [vmem:[#allocation3 + $0x3b] sm:$0xfc] %vm1794, %v2918
        %2944 = vst.msk [vmem:[#allocation3 + $0x43] sm:$0x3] %vm1796, %v2919
        %2945 = vst.msk [vmem:[#allocation3 + $0x43] sm:$0xf0] %vm1802, %v2919
        %2946 = vst.msk [vmem:[#allocation3 + $0x4b] sm:$0xf] %vm1804, %v2920
        %2947 = vst.msk [vmem:[#allocation3 + $0x4b] sm:$0xc0] %vm1810, %v2920
        %2948 = vst.msk [vmem:[#allocation3 + $0x53] sm:$0x3f] %vm1812, %v2921
        %v2949 = vld [vmem:[#allocation3] sm:$0xff]
        %v2950 = vld [vmem:[#allocation3 + $0x8] sm:$0xff]
        %v2951 = vld [vmem:[#allocation3 + $0x10] sm:$0xff]
        %v2952 = vld [vmem:[#allocation3 + $0x18] sm:$0xff]
        %v2953 = vld [vmem:[#allocation3 + $0x20] sm:$0xff]
        %v2954 = vld [vmem:[#allocation3 + $0x28] sm:$0xff]
        %v2955 = vld [vmem:[#allocation3 + $0x30] sm:$0xff]
        %v2956 = vld [vmem:[#allocation3 + $0x38] sm:$0xff]
        %v2957 = vld [vmem:[#allocation3 + $0x40] sm:$0xff]
        %v2958 = vld [vmem:[#allocation3 + $0x48] sm:$0xff]
        %v2959 = vpack.c.bf16 %v2950, %v2949
        %v2960 = vpack.c.bf16 %v2952, %v2951
        %v2961 = vpack.c.bf16 %v2954, %v2953
        %v2962 = vpack.c.bf16 %v2956, %v2955
        %v2963 = vpack.c.bf16 %v2958, %v2957
        %v2964 = vld [vmem:[%s8] sm:$0xf]
        %v2965 = vld [vmem:[%s8 + $0x4] sm:$0xf]
        %v2966 = vld [vmem:[#allocation3 + $0x1] sm:$0xff]
        %v2967 = vld [vmem:[#allocation3 + $0x9] sm:$0xff]
        %v2968 = vld [vmem:[#allocation3 + $0x11] sm:$0xff]
        %v2969 = vld [vmem:[#allocation3 + $0x19] sm:$0xff]
        %v2970 = vld [vmem:[#allocation3 + $0x21] sm:$0xff]
        %v2971 = vld [vmem:[#allocation3 + $0x29] sm:$0xff]
        %v2972 = vld [vmem:[#allocation3 + $0x31] sm:$0xff]
        %v2973 = vld [vmem:[#allocation3 + $0x39] sm:$0xff]
        %v2974 = vld [vmem:[#allocation3 + $0x41] sm:$0xff]
        %v2975 = vld [vmem:[#allocation3 + $0x49] sm:$0xff]
        %v2976 = vpack.c.bf16 %v2967, %v2966
        %v2977 = vpack.c.bf16 %v2969, %v2968
        %v2978 = vpack.c.bf16 %v2971, %v2970
        %v2979 = vpack.c.bf16 %v2973, %v2972
        %v2980 = vpack.c.bf16 %v2975, %v2974
        %s2981 = scalar_lea.vmem %s8, 8
        %v2982 = vld [vmem:[%s2981] sm:$0xf]
        %v2983 = vld [vmem:[%s2981 + $0x4] sm:$0xf]
        %v2986 = vunpack.c.l.b16 %v2982
        %v2987 = vunpack.c.l.b16 %v2983
        %v2988 = vpack.c.b16 %v2987, %v2986
        %v2991 = vsel %vm1775, %v2976, 0
        %v2994 = vsel %vm1775, %v2977, 0
        %v2997 = vsel %vm1775, %v2978, 0
        %v3000 = vsel %vm1775, %v2979, 0
        %v3003 = vsel %vm1775, %v2980, 0
        %3005 = vmatprep.subr.bf16.mxu0 0
        %3006 = vmatpush1.bf16.msra.mxu0 0
        %3007 = vmatprep.subr.bf16.mxu0 0
        %3008 = vmatpush1.bf16.msra.mxu0 0
        %3009 = vmatprep.subr.bf16.mxu0 0
        %3010 = vmatpush1.bf16.msra.mxu0 0
        %3011 = vmatprep.subr.bf16.mxu0 0
        %3012 = vmatpush1.bf16.msra.mxu0 0
        %3013 = vmatprep.subr.bf16.mxu0 0
        %3014 = vmatpush1.bf16.msra.mxu0 0
        %3015 = vmatprep.subr.bf16.mxu0 0
        %3016 = vmatpush1.bf16.msra.mxu0 0
        %3017 = vmatprep.subr.bf16.mxu0 0
        %3018 = vmatpush1.bf16.msra.mxu0 0
        %3019 = vmatprep.subr.bf16.mxu0 0
        %3020 = vmatpush1.bf16.msra.mxu0 %v2988
        %3021 = vmatprep.subr.bf16.mxu0 0
        %3022 = vmatpush2.bf16.msra.mxu0 0
        %3023 = vmatprep.subr.bf16.mxu0 0
        %3024 = vmatpush2.bf16.msra.mxu0 0
        %3025 = vmatprep.subr.bf16.mxu0 0
        %3026 = vmatpush2.bf16.msra.mxu0 0
        %3027 = vmatprep.subr.bf16.mxu0 0
        %3028 = vmatpush2.bf16.msra.mxu0 0
        %3029 = vmatprep.subr.bf16.mxu0 0
        %3030 = vmatpush2.bf16.msra.mxu0 0
        %3031 = vmatprep.subr.bf16.mxu0 0
        %3032 = vmatpush2.bf16.msra.mxu0 0
        %3033 = vmatprep.subr.bf16.mxu0 0
        %3034 = vmatpush2.bf16.msra.mxu0 0
        %3035 = vmatprep.subr.bf16.mxu0 0
        %3036 = vmatpush2.bf16.msra.mxu0 0
        %3037 = vmatprep.mubr.bf16.mxu0 0
        %3038 = vmatmul.mubr.bf16.gmra.mxu0 %v2991
        %v3039 = vpop.f32.mrf.mxu0
        %v3040 = vadd.f32 0.0, %v3039
        %v3041 = vpop.f32.mrf.mxu0
        %v3042 = vpop.f32.mrf.mxu0
        %v3043 = vadd.f32 0.0, %v3042
        %v3044 = vpop.f32.mrf.mxu0
        %3045 = vmatprep.mubr.bf16.mxu0 0
        %3046 = vmatmul.mubr.bf16.gmra.mxu0 %v2994
        %v3047 = vpop.f32.mrf.mxu0
        %v3048 = vadd.f32 0.0, %v3047
        %v3049 = vpop.f32.mrf.mxu0
        %v3050 = vpop.f32.mrf.mxu0
        %v3051 = vadd.f32 0.0, %v3050
        %v3052 = vpop.f32.mrf.mxu0
        %3053 = vmatprep.mubr.bf16.mxu0 0
        %3054 = vmatmul.mubr.bf16.gmra.mxu0 %v2997
        %v3055 = vpop.f32.mrf.mxu0
        %v3056 = vadd.f32 0.0, %v3055
        %v3057 = vpop.f32.mrf.mxu0
        %v3058 = vpop.f32.mrf.mxu0
        %v3059 = vadd.f32 0.0, %v3058
        %v3060 = vpop.f32.mrf.mxu0
        %3061 = vmatprep.mubr.bf16.mxu0 0
        %3062 = vmatmul.mubr.bf16.gmra.mxu0 %v3000
        %v3063 = vpop.f32.mrf.mxu0
        %v3064 = vadd.f32 0.0, %v3063
        %v3065 = vpop.f32.mrf.mxu0
        %v3066 = vpop.f32.mrf.mxu0
        %v3067 = vadd.f32 0.0, %v3066
        %v3068 = vpop.f32.mrf.mxu0
        %3069 = vmatprep.mubr.bf16.mxu0 0
        %3070 = vmatmul.mubr.bf16.gmra.mxu0 %v3003
        %v3071 = vpop.f32.mrf.mxu0
        %v3072 = vadd.f32 0.0, %v3071
        %v3073 = vpop.f32.mrf.mxu0
        %v3074 = vpop.f32.mrf.mxu0
        %v3075 = vadd.f32 0.0, %v3074
        %v3076 = vpop.f32.mrf.mxu0
        %3077 = vdwg.mxu0
        %v3080 = vunpack.c.l.b16 %v2964
        %v3081 = vunpack.c.l.b16 %v2965
        %v3082 = vpack.c.b16 %v3081, %v3080
        %v3085 = vsel %vm1775, %v2959, 0
        %v3088 = vsel %vm1775, %v2960, 0
        %v3091 = vsel %vm1775, %v2961, 0
        %v3094 = vsel %vm1775, %v2962, 0
        %v3097 = vsel %vm1775, %v2963, 0
        %3099 = vmatprep.subr.bf16.mxu0 0
        %3100 = vmatpush1.bf16.msra.mxu0 0
        %3101 = vmatprep.subr.bf16.mxu0 0
        %3102 = vmatpush1.bf16.msra.mxu0 0
        %3103 = vmatprep.subr.bf16.mxu0 0
        %3104 = vmatpush1.bf16.msra.mxu0 0
        %3105 = vmatprep.subr.bf16.mxu0 0
        %3106 = vmatpush1.bf16.msra.mxu0 0
        %3107 = vmatprep.subr.bf16.mxu0 0
        %3108 = vmatpush1.bf16.msra.mxu0 0
        %3109 = vmatprep.subr.bf16.mxu0 0
        %3110 = vmatpush1.bf16.msra.mxu0 0
        %3111 = vmatprep.subr.bf16.mxu0 0
        %3112 = vmatpush1.bf16.msra.mxu0 0
        %3113 = vmatprep.subr.bf16.mxu0 0
        %3114 = vmatpush1.bf16.msra.mxu0 %v3082
        %3115 = vmatprep.subr.bf16.mxu0 0
        %3116 = vmatpush2.bf16.msra.mxu0 0
        %3117 = vmatprep.subr.bf16.mxu0 0
        %3118 = vmatpush2.bf16.msra.mxu0 0
        %3119 = vmatprep.subr.bf16.mxu0 0
        %3120 = vmatpush2.bf16.msra.mxu0 0
        %3121 = vmatprep.subr.bf16.mxu0 0
        %3122 = vmatpush2.bf16.msra.mxu0 0
        %3123 = vmatprep.subr.bf16.mxu0 0
        %3124 = vmatpush2.bf16.msra.mxu0 0
        %3125 = vmatprep.subr.bf16.mxu0 0
        %3126 = vmatpush2.bf16.msra.mxu0 0
        %3127 = vmatprep.subr.bf16.mxu0 0
        %3128 = vmatpush2.bf16.msra.mxu0 0
        %3129 = vmatprep.subr.bf16.mxu0 0
        %3130 = vmatpush2.bf16.msra.mxu0 0
        %3131 = vmatprep.mubr.bf16.mxu0 0
        %3132 = vmatmul.mubr.bf16.gmra.mxu0 %v3085
        %v3133 = vpop.f32.mrf.mxu0
        %v3134 = vadd.f32 %v3040, %v3133
        %v3135 = vpop.f32.mrf.mxu0
        %v3136 = vpop.f32.mrf.mxu0
        %v3137 = vadd.f32 %v3043, %v3136
        %v3138 = vpop.f32.mrf.mxu0
        %3139 = vmatprep.mubr.bf16.mxu0 0
        %3140 = vmatmul.mubr.bf16.gmra.mxu0 %v3088
        %v3141 = vpop.f32.mrf.mxu0
        %v3142 = vadd.f32 %v3048, %v3141
        %v3143 = vpop.f32.mrf.mxu0
        %v3144 = vpop.f32.mrf.mxu0
        %v3145 = vadd.f32 %v3051, %v3144
        %v3146 = vpop.f32.mrf.mxu0
        %3147 = vmatprep.mubr.bf16.mxu0 0
        %3148 = vmatmul.mubr.bf16.gmra.mxu0 %v3091
        %v3149 = vpop.f32.mrf.mxu0
        %v3150 = vadd.f32 %v3056, %v3149
        %v3151 = vpop.f32.mrf.mxu0
        %v3152 = vpop.f32.mrf.mxu0
        %v3153 = vadd.f32 %v3059, %v3152
        %v3154 = vpop.f32.mrf.mxu0
        %3155 = vmatprep.mubr.bf16.mxu0 0
        %3156 = vmatmul.mubr.bf16.gmra.mxu0 %v3094
        %v3157 = vpop.f32.mrf.mxu0
        %v3158 = vadd.f32 %v3064, %v3157
        %v3159 = vpop.f32.mrf.mxu0
        %v3160 = vpop.f32.mrf.mxu0
        %v3161 = vadd.f32 %v3067, %v3160
        %v3162 = vpop.f32.mrf.mxu0
        %3163 = vmatprep.mubr.bf16.mxu0 0
        %3164 = vmatmul.mubr.bf16.gmra.mxu0 %v3097
        %v3165 = vpop.f32.mrf.mxu0
        %v3166 = vadd.f32 %v3072, %v3165
        %v3167 = vpop.f32.mrf.mxu0
        %v3168 = vpop.f32.mrf.mxu0
        %v3169 = vadd.f32 %v3075, %v3168
        %v3170 = vpop.f32.mrf.mxu0
        %3171 = vdwg.mxu0
        %v3172 = vld [vmem:[#allocation3 + $0x2] sm:$0xff]
        %v3173 = vld [vmem:[#allocation3 + $0xa] sm:$0xff]
        %v3174 = vld [vmem:[#allocation3 + $0x12] sm:$0xff]
        %v3175 = vld [vmem:[#allocation3 + $0x1a] sm:$0xff]
        %v3176 = vld [vmem:[#allocation3 + $0x22] sm:$0xff]
        %v3177 = vld [vmem:[#allocation3 + $0x2a] sm:$0xff]
        %v3178 = vld [vmem:[#allocation3 + $0x32] sm:$0xff]
        %v3179 = vld [vmem:[#allocation3 + $0x3a] sm:$0xff]
        %v3180 = vld [vmem:[#allocation3 + $0x42] sm:$0xff]
        %v3181 = vld [vmem:[#allocation3 + $0x4a] sm:$0xff]
        %v3182 = vpack.c.bf16 %v3173, %v3172
        %v3183 = vpack.c.bf16 %v3175, %v3174
        %v3184 = vpack.c.bf16 %v3177, %v3176
        %v3185 = vpack.c.bf16 %v3179, %v3178
        %v3186 = vpack.c.bf16 %v3181, %v3180
        %s3187 = scalar_lea.vmem %s8, 16
        %v3188 = vld [vmem:[%s3187] sm:$0xf]
        %v3189 = vld [vmem:[%s3187 + $0x4] sm:$0xf]
        %v3192 = vunpack.c.l.b16 %v3188
        %v3193 = vunpack.c.l.b16 %v3189
        %v3194 = vpack.c.b16 %v3193, %v3192
        %v3197 = vsel %vm1775, %v3182, 0
        %v3200 = vsel %vm1775, %v3183, 0
        %v3203 = vsel %vm1775, %v3184, 0
        %v3206 = vsel %vm1775, %v3185, 0
        %v3209 = vsel %vm1775, %v3186, 0
        %3211 = vmatprep.subr.bf16.mxu0 0
        %3212 = vmatpush1.bf16.msra.mxu0 0
        %3213 = vmatprep.subr.bf16.mxu0 0
        %3214 = vmatpush1.bf16.msra.mxu0 0
        %3215 = vmatprep.subr.bf16.mxu0 0
        %3216 = vmatpush1.bf16.msra.mxu0 0
        %3217 = vmatprep.subr.bf16.mxu0 0
        %3218 = vmatpush1.bf16.msra.mxu0 0
        %3219 = vmatprep.subr.bf16.mxu0 0
        %3220 = vmatpush1.bf16.msra.mxu0 0
        %3221 = vmatprep.subr.bf16.mxu0 0
        %3222 = vmatpush1.bf16.msra.mxu0 0
        %3223 = vmatprep.subr.bf16.mxu0 0
        %3224 = vmatpush1.bf16.msra.mxu0 0
        %3225 = vmatprep.subr.bf16.mxu0 0
        %3226 = vmatpush1.bf16.msra.mxu0 %v3194
        %3227 = vmatprep.subr.bf16.mxu0 0
        %3228 = vmatpush2.bf16.msra.mxu0 0
        %3229 = vmatprep.subr.bf16.mxu0 0
        %3230 = vmatpush2.bf16.msra.mxu0 0
        %3231 = vmatprep.subr.bf16.mxu0 0
        %3232 = vmatpush2.bf16.msra.mxu0 0
        %3233 = vmatprep.subr.bf16.mxu0 0
        %3234 = vmatpush2.bf16.msra.mxu0 0
        %3235 = vmatprep.subr.bf16.mxu0 0
        %3236 = vmatpush2.bf16.msra.mxu0 0
        %3237 = vmatprep.subr.bf16.mxu0 0
        %3238 = vmatpush2.bf16.msra.mxu0 0
        %3239 = vmatprep.subr.bf16.mxu0 0
        %3240 = vmatpush2.bf16.msra.mxu0 0
        %3241 = vmatprep.subr.bf16.mxu0 0
        %3242 = vmatpush2.bf16.msra.mxu0 0
        %3243 = vmatprep.mubr.bf16.mxu0 0
        %3244 = vmatmul.mubr.bf16.gmra.mxu0 %v3197
        %v3245 = vpop.f32.mrf.mxu0
        %v3246 = vadd.f32 0.0, %v3245
        %v3247 = vpop.f32.mrf.mxu0
        %v3248 = vpop.f32.mrf.mxu0
        %v3249 = vadd.f32 0.0, %v3248
        %v3250 = vpop.f32.mrf.mxu0
        %3251 = vmatprep.mubr.bf16.mxu0 0
        %3252 = vmatmul.mubr.bf16.gmra.mxu0 %v3200
        %v3253 = vpop.f32.mrf.mxu0
        %v3254 = vadd.f32 0.0, %v3253
        %v3255 = vpop.f32.mrf.mxu0
        %v3256 = vpop.f32.mrf.mxu0
        %v3257 = vadd.f32 0.0, %v3256
        %v3258 = vpop.f32.mrf.mxu0
        %3259 = vmatprep.mubr.bf16.mxu0 0
        %3260 = vmatmul.mubr.bf16.gmra.mxu0 %v3203
        %v3261 = vpop.f32.mrf.mxu0
        %v3262 = vadd.f32 0.0, %v3261
        %v3263 = vpop.f32.mrf.mxu0
        %v3264 = vpop.f32.mrf.mxu0
        %v3265 = vadd.f32 0.0, %v3264
        %v3266 = vpop.f32.mrf.mxu0
        %3267 = vmatprep.mubr.bf16.mxu0 0
        %3268 = vmatmul.mubr.bf16.gmra.mxu0 %v3206
        %v3269 = vpop.f32.mrf.mxu0
        %v3270 = vadd.f32 0.0, %v3269
        %v3271 = vpop.f32.mrf.mxu0
        %v3272 = vpop.f32.mrf.mxu0
        %v3273 = vadd.f32 0.0, %v3272
        %v3274 = vpop.f32.mrf.mxu0
        %3275 = vmatprep.mubr.bf16.mxu0 0
        %3276 = vmatmul.mubr.bf16.gmra.mxu0 %v3209
        %v3277 = vpop.f32.mrf.mxu0
        %v3278 = vadd.f32 0.0, %v3277
        %v3279 = vpop.f32.mrf.mxu0
        %v3280 = vpop.f32.mrf.mxu0
        %v3281 = vadd.f32 0.0, %v3280
        %v3282 = vpop.f32.mrf.mxu0
        %3283 = vdwg.mxu0
        %v3284 = vadd.f32 %v3134, %v3246
        %v3285 = vadd.f32 %v3137, %v3249
        %v3286 = vadd.f32 %v3142, %v3254
        %v3287 = vadd.f32 %v3145, %v3257
        %v3288 = vadd.f32 %v3150, %v3262
        %v3289 = vadd.f32 %v3153, %v3265
        %v3290 = vadd.f32 %v3158, %v3270
        %v3291 = vadd.f32 %v3161, %v3273
        %v3292 = vadd.f32 %v3166, %v3278
        %v3293 = vadd.f32 %v3169, %v3281
        %v3294 = vld [vmem:[#allocation3 + $0xa] sm:$0xff]
        %v3295 = vld [vmem:[#allocation3 + $0x12] sm:$0xff]
        %v3296 = vld [vmem:[#allocation3 + $0x1a] sm:$0xff]
        %v3297 = vld [vmem:[#allocation3 + $0x22] sm:$0xff]
        %v3298 = vld [vmem:[#allocation3 + $0x2a] sm:$0xff]
        %v3299 = vld [vmem:[#allocation3 + $0x32] sm:$0xff]
        %v3300 = vld [vmem:[#allocation3 + $0x3a] sm:$0xff]
        %v3301 = vld [vmem:[#allocation3 + $0x42] sm:$0xff]
        %v3302 = vld [vmem:[#allocation3 + $0x4a] sm:$0xff]
        %v3303 = vld [vmem:[#allocation3 + $0x52] sm:$0xff]
        %v3304 = vpack.c.bf16 %v3295, %v3294
        %v3305 = vpack.c.bf16 %v3297, %v3296
        %v3306 = vpack.c.bf16 %v3299, %v3298
        %v3307 = vpack.c.bf16 %v3301, %v3300
        %v3308 = vpack.c.bf16 %v3303, %v3302
        %s3309 = scalar_lea.vmem %s8, 24
        %v3310 = vld [vmem:[%s3309] sm:$0xf]
        %v3311 = vld [vmem:[%s3309 + $0x4] sm:$0xf]
        %v3314 = vunpack.c.l.b16 %v3310
        %v3315 = vunpack.c.l.b16 %v3311
        %v3316 = vpack.c.b16 %v3315, %v3314
        %v3319 = vsel %vm1775, %v3304, 0
        %v3322 = vsel %vm1775, %v3305, 0
        %v3325 = vsel %vm1775, %v3306, 0
        %v3328 = vsel %vm1775, %v3307, 0
        %v3331 = vsel %vm1775, %v3308, 0
        %3333 = vmatprep.subr.bf16.mxu0 0
        %3334 = vmatpush1.bf16.msra.mxu0 0
        %3335 = vmatprep.subr.bf16.mxu0 0
        %3336 = vmatpush1.bf16.msra.mxu0 0
        %3337 = vmatprep.subr.bf16.mxu0 0
        %3338 = vmatpush1.bf16.msra.mxu0 0
        %3339 = vmatprep.subr.bf16.mxu0 0
        %3340 = vmatpush1.bf16.msra.mxu0 0
        %3341 = vmatprep.subr.bf16.mxu0 0
        %3342 = vmatpush1.bf16.msra.mxu0 0
        %3343 = vmatprep.subr.bf16.mxu0 0
        %3344 = vmatpush1.bf16.msra.mxu0 0
        %3345 = vmatprep.subr.bf16.mxu0 0
        %3346 = vmatpush1.bf16.msra.mxu0 0
        %3347 = vmatprep.subr.bf16.mxu0 0
        %3348 = vmatpush1.bf16.msra.mxu0 %v3316
        %3349 = vmatprep.subr.bf16.mxu0 0
        %3350 = vmatpush2.bf16.msra.mxu0 0
        %3351 = vmatprep.subr.bf16.mxu0 0
        %3352 = vmatpush2.bf16.msra.mxu0 0
        %3353 = vmatprep.subr.bf16.mxu0 0
        %3354 = vmatpush2.bf16.msra.mxu0 0
        %3355 = vmatprep.subr.bf16.mxu0 0
        %3356 = vmatpush2.bf16.msra.mxu0 0
        %3357 = vmatprep.subr.bf16.mxu0 0
        %3358 = vmatpush2.bf16.msra.mxu0 0
        %3359 = vmatprep.subr.bf16.mxu0 0
        %3360 = vmatpush2.bf16.msra.mxu0 0
        %3361 = vmatprep.subr.bf16.mxu0 0
        %3362 = vmatpush2.bf16.msra.mxu0 0
        %3363 = vmatprep.subr.bf16.mxu0 0
        %3364 = vmatpush2.bf16.msra.mxu0 0
        %3365 = vmatprep.mubr.bf16.mxu0 0
        %3366 = vmatmul.mubr.bf16.gmra.mxu0 %v3319
        %v3367 = vpop.f32.mrf.mxu0
        %v3368 = vadd.f32 0.0, %v3367
        %v3369 = vpop.f32.mrf.mxu0
        %v3370 = vpop.f32.mrf.mxu0
        %v3371 = vadd.f32 0.0, %v3370
        %v3372 = vpop.f32.mrf.mxu0
        %3373 = vmatprep.mubr.bf16.mxu0 0
        %3374 = vmatmul.mubr.bf16.gmra.mxu0 %v3322
        %v3375 = vpop.f32.mrf.mxu0
        %v3376 = vadd.f32 0.0, %v3375
        %v3377 = vpop.f32.mrf.mxu0
        %v3378 = vpop.f32.mrf.mxu0
        %v3379 = vadd.f32 0.0, %v3378
        %v3380 = vpop.f32.mrf.mxu0
        %3381 = vmatprep.mubr.bf16.mxu0 0
        %3382 = vmatmul.mubr.bf16.gmra.mxu0 %v3325
        %v3383 = vpop.f32.mrf.mxu0
        %v3384 = vadd.f32 0.0, %v3383
        %v3385 = vpop.f32.mrf.mxu0
        %v3386 = vpop.f32.mrf.mxu0
        %v3387 = vadd.f32 0.0, %v3386
        %v3388 = vpop.f32.mrf.mxu0
        %3389 = vmatprep.mubr.bf16.mxu0 0
        %3390 = vmatmul.mubr.bf16.gmra.mxu0 %v3328
        %v3391 = vpop.f32.mrf.mxu0
        %v3392 = vadd.f32 0.0, %v3391
        %v3393 = vpop.f32.mrf.mxu0
        %v3394 = vpop.f32.mrf.mxu0
        %v3395 = vadd.f32 0.0, %v3394
        %v3396 = vpop.f32.mrf.mxu0
        %3397 = vmatprep.mubr.bf16.mxu0 0
        %3398 = vmatmul.mubr.bf16.gmra.mxu0 %v3331
        %v3399 = vpop.f32.mrf.mxu0
        %v3400 = vadd.f32 0.0, %v3399
        %v3401 = vpop.f32.mrf.mxu0
        %v3402 = vpop.f32.mrf.mxu0
        %v3403 = vadd.f32 0.0, %v3402
        %v3404 = vpop.f32.mrf.mxu0
        %3405 = vdwg.mxu0
        %v3406 = vadd.f32 %v3284, %v3368
        %v3407 = vadd.f32 %v3285, %v3371
        %v3408 = vadd.f32 %v3286, %v3376
        %v3409 = vadd.f32 %v3287, %v3379
        %v3410 = vadd.f32 %v3288, %v3384
        %v3411 = vadd.f32 %v3289, %v3387
        %v3412 = vadd.f32 %v3290, %v3392
        %v3413 = vadd.f32 %v3291, %v3395
        %v3414 = vadd.f32 %v3292, %v3400
        %v3415 = vadd.f32 %v3293, %v3403
        %v3416 = vld [vmem:[#allocation3 + $0xb] sm:$0xff]
        %v3417 = vld [vmem:[#allocation3 + $0x13] sm:$0xff]
        %v3418 = vld [vmem:[#allocation3 + $0x1b] sm:$0xff]
        %v3419 = vld [vmem:[#allocation3 + $0x23] sm:$0xff]
        %v3420 = vld [vmem:[#allocation3 + $0x2b] sm:$0xff]
        %v3421 = vld [vmem:[#allocation3 + $0x33] sm:$0xff]
        %v3422 = vld [vmem:[#allocation3 + $0x3b] sm:$0xff]
        %v3423 = vld [vmem:[#allocation3 + $0x43] sm:$0xff]
        %v3424 = vld [vmem:[#allocation3 + $0x4b] sm:$0xff]
        %v3425 = vld [vmem:[#allocation3 + $0x53] sm:$0xff]
        %v3426 = vpack.c.bf16 %v3417, %v3416
        %v3427 = vpack.c.bf16 %v3419, %v3418
        %v3428 = vpack.c.bf16 %v3421, %v3420
        %v3429 = vpack.c.bf16 %v3423, %v3422
        %v3430 = vpack.c.bf16 %v3425, %v3424
        %s3431 = scalar_lea.vmem %s8, 32
        %v3432 = vld [vmem:[%s3431] sm:$0xf]
        %v3433 = vld [vmem:[%s3431 + $0x4] sm:$0xf]
        %v3436 = vunpack.c.l.b16 %v3432
        %v3437 = vunpack.c.l.b16 %v3433
        %v3438 = vpack.c.b16 %v3437, %v3436
        %v3441 = vsel %vm1775, %v3426, 0
        %v3444 = vsel %vm1775, %v3427, 0
        %v3447 = vsel %vm1775, %v3428, 0
        %v3450 = vsel %vm1775, %v3429, 0
        %v3453 = vsel %vm1775, %v3430, 0
        %3455 = vmatprep.subr.bf16.mxu0 0
        %3456 = vmatpush1.bf16.msra.mxu0 0
        %3457 = vmatprep.subr.bf16.mxu0 0
        %3458 = vmatpush1.bf16.msra.mxu0 0
        %3459 = vmatprep.subr.bf16.mxu0 0
        %3460 = vmatpush1.bf16.msra.mxu0 0
        %3461 = vmatprep.subr.bf16.mxu0 0
        %3462 = vmatpush1.bf16.msra.mxu0 0
        %3463 = vmatprep.subr.bf16.mxu0 0
        %3464 = vmatpush1.bf16.msra.mxu0 0
        %3465 = vmatprep.subr.bf16.mxu0 0
        %3466 = vmatpush1.bf16.msra.mxu0 0
        %3467 = vmatprep.subr.bf16.mxu0 0
        %3468 = vmatpush1.bf16.msra.mxu0 0
        %3469 = vmatprep.subr.bf16.mxu0 0
        %3470 = vmatpush1.bf16.msra.mxu0 %v3438
        %3471 = vmatprep.subr.bf16.mxu0 0
        %3472 = vmatpush2.bf16.msra.mxu0 0
        %3473 = vmatprep.subr.bf16.mxu0 0
        %3474 = vmatpush2.bf16.msra.mxu0 0
        %3475 = vmatprep.subr.bf16.mxu0 0
        %3476 = vmatpush2.bf16.msra.mxu0 0
        %3477 = vmatprep.subr.bf16.mxu0 0
        %3478 = vmatpush2.bf16.msra.mxu0 0
        %3479 = vmatprep.subr.bf16.mxu0 0
        %3480 = vmatpush2.bf16.msra.mxu0 0
        %3481 = vmatprep.subr.bf16.mxu0 0
        %3482 = vmatpush2.bf16.msra.mxu0 0
        %3483 = vmatprep.subr.bf16.mxu0 0
        %3484 = vmatpush2.bf16.msra.mxu0 0
        %3485 = vmatprep.subr.bf16.mxu0 0
        %3486 = vmatpush2.bf16.msra.mxu0 0
        %3487 = vmatprep.mubr.bf16.mxu0 0
        %3488 = vmatmul.mubr.bf16.gmra.mxu0 %v3441
        %v3489 = vpop.f32.mrf.mxu0
        %v3490 = vadd.f32 0.0, %v3489
        %v3491 = vpop.f32.mrf.mxu0
        %v3492 = vpop.f32.mrf.mxu0
        %v3493 = vadd.f32 0.0, %v3492
        %v3494 = vpop.f32.mrf.mxu0
        %3495 = vmatprep.mubr.bf16.mxu0 0
        %3496 = vmatmul.mubr.bf16.gmra.mxu0 %v3444
        %v3497 = vpop.f32.mrf.mxu0
        %v3498 = vadd.f32 0.0, %v3497
        %v3499 = vpop.f32.mrf.mxu0
        %v3500 = vpop.f32.mrf.mxu0
        %v3501 = vadd.f32 0.0, %v3500
        %v3502 = vpop.f32.mrf.mxu0
        %3503 = vmatprep.mubr.bf16.mxu0 0
        %3504 = vmatmul.mubr.bf16.gmra.mxu0 %v3447
        %v3505 = vpop.f32.mrf.mxu0
        %v3506 = vadd.f32 0.0, %v3505
        %v3507 = vpop.f32.mrf.mxu0
        %v3508 = vpop.f32.mrf.mxu0
        %v3509 = vadd.f32 0.0, %v3508
        %v3510 = vpop.f32.mrf.mxu0
        %3511 = vmatprep.mubr.bf16.mxu0 0
        %3512 = vmatmul.mubr.bf16.gmra.mxu0 %v3450
        %v3513 = vpop.f32.mrf.mxu0
        %v3514 = vadd.f32 0.0, %v3513
        %v3515 = vpop.f32.mrf.mxu0
        %v3516 = vpop.f32.mrf.mxu0
        %v3517 = vadd.f32 0.0, %v3516
        %v3518 = vpop.f32.mrf.mxu0
        %3519 = vmatprep.mubr.bf16.mxu0 0
        %3520 = vmatmul.mubr.bf16.gmra.mxu0 %v3453
        %v3521 = vpop.f32.mrf.mxu0
        %v3522 = vadd.f32 0.0, %v3521
        %v3523 = vpop.f32.mrf.mxu0
        %v3524 = vpop.f32.mrf.mxu0
        %v3525 = vadd.f32 0.0, %v3524
        %v3526 = vpop.f32.mrf.mxu0
        %3527 = vdwg.mxu0
        %v3528 = vadd.f32 %v3406, %v3490
        %v3529 = vadd.f32 %v3407, %v3493
        %v3530 = vadd.f32 %v3408, %v3498
        %v3531 = vadd.f32 %v3409, %v3501
        %v3532 = vadd.f32 %v3410, %v3506
        %v3533 = vadd.f32 %v3411, %v3509
        %v3534 = vadd.f32 %v3412, %v3514
        %v3535 = vadd.f32 %v3413, %v3517
        %v3536 = vadd.f32 %v3414, %v3522
        %v3537 = vadd.f32 %v3415, %v3525
        %v3538 = vld [vmem:[#allocation3 + $0xc] sm:$0xff]
        %v3539 = vld [vmem:[#allocation3 + $0x14] sm:$0xff]
        %v3540 = vld [vmem:[#allocation3 + $0x1c] sm:$0xff]
        %v3541 = vld [vmem:[#allocation3 + $0x24] sm:$0xff]
        %v3542 = vld [vmem:[#allocation3 + $0x2c] sm:$0xff]
        %v3543 = vld [vmem:[#allocation3 + $0x34] sm:$0xff]
        %v3544 = vld [vmem:[#allocation3 + $0x3c] sm:$0xff]
        %v3545 = vld [vmem:[#allocation3 + $0x44] sm:$0xff]
        %v3546 = vld [vmem:[#allocation3 + $0x4c] sm:$0xff]
        %v3547 = vld [vmem:[#allocation3 + $0x54] sm:$0xff]
        %v3548 = vpack.c.bf16 %v3539, %v3538
        %v3549 = vpack.c.bf16 %v3541, %v3540
        %v3550 = vpack.c.bf16 %v3543, %v3542
        %v3551 = vpack.c.bf16 %v3545, %v3544
        %v3552 = vpack.c.bf16 %v3547, %v3546
        %s3553 = scalar_lea.vmem %s8, 40
        %v3554 = vld [vmem:[%s3553] sm:$0xf]
        %v3555 = vld [vmem:[%s3553 + $0x4] sm:$0xf]
        %v3558 = vunpack.c.l.b16 %v3554
        %v3559 = vunpack.c.l.b16 %v3555
        %v3560 = vpack.c.b16 %v3559, %v3558
        %v3563 = vsel %vm1775, %v3548, 0
        %v3566 = vsel %vm1775, %v3549, 0
        %v3569 = vsel %vm1775, %v3550, 0
        %v3572 = vsel %vm1775, %v3551, 0
        %v3575 = vsel %vm1775, %v3552, 0
        %3577 = vmatprep.subr.bf16.mxu0 0
        %3578 = vmatpush1.bf16.msra.mxu0 0
        %3579 = vmatprep.subr.bf16.mxu0 0
        %3580 = vmatpush1.bf16.msra.mxu0 0
        %3581 = vmatprep.subr.bf16.mxu0 0
        %3582 = vmatpush1.bf16.msra.mxu0 0
        %3583 = vmatprep.subr.bf16.mxu0 0
        %3584 = vmatpush1.bf16.msra.mxu0 0
        %3585 = vmatprep.subr.bf16.mxu0 0
        %3586 = vmatpush1.bf16.msra.mxu0 0
        %3587 = vmatprep.subr.bf16.mxu0 0
        %3588 = vmatpush1.bf16.msra.mxu0 0
        %3589 = vmatprep.subr.bf16.mxu0 0
        %3590 = vmatpush1.bf16.msra.mxu0 0
        %3591 = vmatprep.subr.bf16.mxu0 0
        %3592 = vmatpush1.bf16.msra.mxu0 %v3560
        %3593 = vmatprep.subr.bf16.mxu0 0
        %3594 = vmatpush2.bf16.msra.mxu0 0
        %3595 = vmatprep.subr.bf16.mxu0 0
        %3596 = vmatpush2.bf16.msra.mxu0 0
        %3597 = vmatprep.subr.bf16.mxu0 0
        %3598 = vmatpush2.bf16.msra.mxu0 0
        %3599 = vmatprep.subr.bf16.mxu0 0
        %3600 = vmatpush2.bf16.msra.mxu0 0
        %3601 = vmatprep.subr.bf16.mxu0 0
        %3602 = vmatpush2.bf16.msra.mxu0 0
        %3603 = vmatprep.subr.bf16.mxu0 0
        %3604 = vmatpush2.bf16.msra.mxu0 0
        %3605 = vmatprep.subr.bf16.mxu0 0
        %3606 = vmatpush2.bf16.msra.mxu0 0
        %3607 = vmatprep.subr.bf16.mxu0 0
        %3608 = vmatpush2.bf16.msra.mxu0 0
        %3609 = vmatprep.mubr.bf16.mxu0 0
        %3610 = vmatmul.mubr.bf16.gmra.mxu0 %v3563
        %v3611 = vpop.f32.mrf.mxu0
        %v3612 = vadd.f32 0.0, %v3611
        %v3613 = vpop.f32.mrf.mxu0
        %v3614 = vpop.f32.mrf.mxu0
        %v3615 = vadd.f32 0.0, %v3614
        %v3616 = vpop.f32.mrf.mxu0
        %3617 = vmatprep.mubr.bf16.mxu0 0
        %3618 = vmatmul.mubr.bf16.gmra.mxu0 %v3566
        %v3619 = vpop.f32.mrf.mxu0
        %v3620 = vadd.f32 0.0, %v3619
        %v3621 = vpop.f32.mrf.mxu0
        %v3622 = vpop.f32.mrf.mxu0
        %v3623 = vadd.f32 0.0, %v3622
        %v3624 = vpop.f32.mrf.mxu0
        %3625 = vmatprep.mubr.bf16.mxu0 0
        %3626 = vmatmul.mubr.bf16.gmra.mxu0 %v3569
        %v3627 = vpop.f32.mrf.mxu0
        %v3628 = vadd.f32 0.0, %v3627
        %v3629 = vpop.f32.mrf.mxu0
        %v3630 = vpop.f32.mrf.mxu0
        %v3631 = vadd.f32 0.0, %v3630
        %v3632 = vpop.f32.mrf.mxu0
        %3633 = vmatprep.mubr.bf16.mxu0 0
        %3634 = vmatmul.mubr.bf16.gmra.mxu0 %v3572
        %v3635 = vpop.f32.mrf.mxu0
        %v3636 = vadd.f32 0.0, %v3635
        %v3637 = vpop.f32.mrf.mxu0
        %v3638 = vpop.f32.mrf.mxu0
        %v3639 = vadd.f32 0.0, %v3638
        %v3640 = vpop.f32.mrf.mxu0
        %3641 = vmatprep.mubr.bf16.mxu0 0
        %3642 = vmatmul.mubr.bf16.gmra.mxu0 %v3575
        %v3643 = vpop.f32.mrf.mxu0
        %v3644 = vadd.f32 0.0, %v3643
        %v3645 = vpop.f32.mrf.mxu0
        %v3646 = vpop.f32.mrf.mxu0
        %v3647 = vadd.f32 0.0, %v3646
        %v3648 = vpop.f32.mrf.mxu0
        %3649 = vdwg.mxu0
        %v3650 = vadd.f32 %v3528, %v3612
        %v3651 = vadd.f32 %v3529, %v3615
        %v3652 = vadd.f32 %v3530, %v3620
        %v3653 = vadd.f32 %v3531, %v3623
        %v3654 = vadd.f32 %v3532, %v3628
        %v3655 = vadd.f32 %v3533, %v3631
        %v3656 = vadd.f32 %v3534, %v3636
        %v3657 = vadd.f32 %v3535, %v3639
        %v3658 = vadd.f32 %v3536, %v3644
        %v3659 = vadd.f32 %v3537, %v3647
        %v3660 = vld [vmem:[#allocation3 + $0x14] sm:$0xff]
        %v3661 = vld [vmem:[#allocation3 + $0x1c] sm:$0xff]
        %v3662 = vld [vmem:[#allocation3 + $0x24] sm:$0xff]
        %v3663 = vld [vmem:[#allocation3 + $0x2c] sm:$0xff]
        %v3664 = vld [vmem:[#allocation3 + $0x34] sm:$0xff]
        %v3665 = vld [vmem:[#allocation3 + $0x3c] sm:$0xff]
        %v3666 = vld [vmem:[#allocation3 + $0x44] sm:$0xff]
        %v3667 = vld [vmem:[#allocation3 + $0x4c] sm:$0xff]
        %v3668 = vld [vmem:[#allocation3 + $0x54] sm:$0xff]
        %v3669 = vld [vmem:[#allocation3 + $0x5c] sm:$0xff]
        %v3670 = vpack.c.bf16 %v3661, %v3660
        %v3671 = vpack.c.bf16 %v3663, %v3662
        %v3672 = vpack.c.bf16 %v3665, %v3664
        %v3673 = vpack.c.bf16 %v3667, %v3666
        %v3674 = vpack.c.bf16 %v3669, %v3668
        %s3675 = scalar_lea.vmem %s8, 48
        %v3676 = vld [vmem:[%s3675] sm:$0xf]
        %v3677 = vld [vmem:[%s3675 + $0x4] sm:$0xf]
        %v3680 = vunpack.c.l.b16 %v3676
        %v3681 = vunpack.c.l.b16 %v3677
        %v3682 = vpack.c.b16 %v3681, %v3680
        %v3685 = vsel %vm1775, %v3670, 0
        %v3688 = vsel %vm1775, %v3671, 0
        %v3691 = vsel %vm1775, %v3672, 0
        %v3694 = vsel %vm1775, %v3673, 0
        %v3697 = vsel %vm1775, %v3674, 0
        %3699 = vmatprep.subr.bf16.mxu0 0
        %3700 = vmatpush1.bf16.msra.mxu0 0
        %3701 = vmatprep.subr.bf16.mxu0 0
        %3702 = vmatpush1.bf16.msra.mxu0 0
        %3703 = vmatprep.subr.bf16.mxu0 0
        %3704 = vmatpush1.bf16.msra.mxu0 0
        %3705 = vmatprep.subr.bf16.mxu0 0
        %3706 = vmatpush1.bf16.msra.mxu0 0
        %3707 = vmatprep.subr.bf16.mxu0 0
        %3708 = vmatpush1.bf16.msra.mxu0 0
        %3709 = vmatprep.subr.bf16.mxu0 0
        %3710 = vmatpush1.bf16.msra.mxu0 0
        %3711 = vmatprep.subr.bf16.mxu0 0
        %3712 = vmatpush1.bf16.msra.mxu0 0
        %3713 = vmatprep.subr.bf16.mxu0 0
        %3714 = vmatpush1.bf16.msra.mxu0 %v3682
        %3715 = vmatprep.subr.bf16.mxu0 0
        %3716 = vmatpush2.bf16.msra.mxu0 0
        %3717 = vmatprep.subr.bf16.mxu0 0
        %3718 = vmatpush2.bf16.msra.mxu0 0
        %3719 = vmatprep.subr.bf16.mxu0 0
        %3720 = vmatpush2.bf16.msra.mxu0 0
        %3721 = vmatprep.subr.bf16.mxu0 0
        %3722 = vmatpush2.bf16.msra.mxu0 0
        %3723 = vmatprep.subr.bf16.mxu0 0
        %3724 = vmatpush2.bf16.msra.mxu0 0
        %3725 = vmatprep.subr.bf16.mxu0 0
        %3726 = vmatpush2.bf16.msra.mxu0 0
        %3727 = vmatprep.subr.bf16.mxu0 0
        %3728 = vmatpush2.bf16.msra.mxu0 0
        %3729 = vmatprep.subr.bf16.mxu0 0
        %3730 = vmatpush2.bf16.msra.mxu0 0
        %3731 = vmatprep.mubr.bf16.mxu0 0
        %3732 = vmatmul.mubr.bf16.gmra.mxu0 %v3685
        %v3733 = vpop.f32.mrf.mxu0
        %v3734 = vadd.f32 0.0, %v3733
        %v3735 = vpop.f32.mrf.mxu0
        %v3736 = vpop.f32.mrf.mxu0
        %v3737 = vadd.f32 0.0, %v3736
        %v3738 = vpop.f32.mrf.mxu0
        %3739 = vmatprep.mubr.bf16.mxu0 0
        %3740 = vmatmul.mubr.bf16.gmra.mxu0 %v3688
        %v3741 = vpop.f32.mrf.mxu0
        %v3742 = vadd.f32 0.0, %v3741
        %v3743 = vpop.f32.mrf.mxu0
        %v3744 = vpop.f32.mrf.mxu0
        %v3745 = vadd.f32 0.0, %v3744
        %v3746 = vpop.f32.mrf.mxu0
        %3747 = vmatprep.mubr.bf16.mxu0 0
        %3748 = vmatmul.mubr.bf16.gmra.mxu0 %v3691
        %v3749 = vpop.f32.mrf.mxu0
        %v3750 = vadd.f32 0.0, %v3749
        %v3751 = vpop.f32.mrf.mxu0
        %v3752 = vpop.f32.mrf.mxu0
        %v3753 = vadd.f32 0.0, %v3752
        %v3754 = vpop.f32.mrf.mxu0
        %3755 = vmatprep.mubr.bf16.mxu0 0
        %3756 = vmatmul.mubr.bf16.gmra.mxu0 %v3694
        %v3757 = vpop.f32.mrf.mxu0
        %v3758 = vadd.f32 0.0, %v3757
        %v3759 = vpop.f32.mrf.mxu0
        %v3760 = vpop.f32.mrf.mxu0
        %v3761 = vadd.f32 0.0, %v3760
        %v3762 = vpop.f32.mrf.mxu0
        %3763 = vmatprep.mubr.bf16.mxu0 0
        %3764 = vmatmul.mubr.bf16.gmra.mxu0 %v3697
        %v3765 = vpop.f32.mrf.mxu0
        %v3766 = vadd.f32 0.0, %v3765
        %v3767 = vpop.f32.mrf.mxu0
        %v3768 = vpop.f32.mrf.mxu0
        %v3769 = vadd.f32 0.0, %v3768
        %v3770 = vpop.f32.mrf.mxu0
        %3771 = vdwg.mxu0
        %v3772 = vadd.f32 %v3650, %v3734
        %v3773 = vadd.f32 %v3651, %v3737
        %v3774 = vadd.f32 %v3652, %v3742
        %v3775 = vadd.f32 %v3653, %v3745
        %v3776 = vadd.f32 %v3654, %v3750
        %v3777 = vadd.f32 %v3655, %v3753
        %v3778 = vadd.f32 %v3656, %v3758
        %v3779 = vadd.f32 %v3657, %v3761
        %v3780 = vadd.f32 %v3658, %v3766
        %v3781 = vadd.f32 %v3659, %v3769
        %v3782 = vld [vmem:[#allocation3 + $0x15] sm:$0xff]
        %v3783 = vld [vmem:[#allocation3 + $0x1d] sm:$0xff]
        %v3784 = vld [vmem:[#allocation3 + $0x25] sm:$0xff]
        %v3785 = vld [vmem:[#allocation3 + $0x2d] sm:$0xff]
        %v3786 = vld [vmem:[#allocation3 + $0x35] sm:$0xff]
        %v3787 = vld [vmem:[#allocation3 + $0x3d] sm:$0xff]
        %v3788 = vld [vmem:[#allocation3 + $0x45] sm:$0xff]
        %v3789 = vld [vmem:[#allocation3 + $0x4d] sm:$0xff]
        %v3790 = vld [vmem:[#allocation3 + $0x55] sm:$0xff]
        %v3791 = vld [vmem:[#allocation3 + $0x5d] sm:$0xff]
        %v3792 = vpack.c.bf16 %v3783, %v3782
        %v3793 = vpack.c.bf16 %v3785, %v3784
        %v3794 = vpack.c.bf16 %v3787, %v3786
        %v3795 = vpack.c.bf16 %v3789, %v3788
        %v3796 = vpack.c.bf16 %v3791, %v3790
        %s3797 = scalar_lea.vmem %s8, 56
        %v3798 = vld [vmem:[%s3797] sm:$0xf]
        %v3799 = vld [vmem:[%s3797 + $0x4] sm:$0xf]
        %v3802 = vunpack.c.l.b16 %v3798
        %v3803 = vunpack.c.l.b16 %v3799
        %v3804 = vpack.c.b16 %v3803, %v3802
        %v3807 = vsel %vm1775, %v3792, 0
        %v3810 = vsel %vm1775, %v3793, 0
        %v3813 = vsel %vm1775, %v3794, 0
        %v3816 = vsel %vm1775, %v3795, 0
        %v3819 = vsel %vm1775, %v3796, 0
        %3821 = vmatprep.subr.bf16.mxu0 0
        %3822 = vmatpush1.bf16.msra.mxu0 0
        %3823 = vmatprep.subr.bf16.mxu0 0
        %3824 = vmatpush1.bf16.msra.mxu0 0
        %3825 = vmatprep.subr.bf16.mxu0 0
        %3826 = vmatpush1.bf16.msra.mxu0 0
        %3827 = vmatprep.subr.bf16.mxu0 0
        %3828 = vmatpush1.bf16.msra.mxu0 0
        %3829 = vmatprep.subr.bf16.mxu0 0
        %3830 = vmatpush1.bf16.msra.mxu0 0
        %3831 = vmatprep.subr.bf16.mxu0 0
        %3832 = vmatpush1.bf16.msra.mxu0 0
        %3833 = vmatprep.subr.bf16.mxu0 0
        %3834 = vmatpush1.bf16.msra.mxu0 0
        %3835 = vmatprep.subr.bf16.mxu0 0
        %3836 = vmatpush1.bf16.msra.mxu0 %v3804
        %3837 = vmatprep.subr.bf16.mxu0 0
        %3838 = vmatpush2.bf16.msra.mxu0 0
        %3839 = vmatprep.subr.bf16.mxu0 0
        %3840 = vmatpush2.bf16.msra.mxu0 0
        %3841 = vmatprep.subr.bf16.mxu0 0
        %3842 = vmatpush2.bf16.msra.mxu0 0
        %3843 = vmatprep.subr.bf16.mxu0 0
        %3844 = vmatpush2.bf16.msra.mxu0 0
        %3845 = vmatprep.subr.bf16.mxu0 0
        %3846 = vmatpush2.bf16.msra.mxu0 0
        %3847 = vmatprep.subr.bf16.mxu0 0
        %3848 = vmatpush2.bf16.msra.mxu0 0
        %3849 = vmatprep.subr.bf16.mxu0 0
        %3850 = vmatpush2.bf16.msra.mxu0 0
        %3851 = vmatprep.subr.bf16.mxu0 0
        %3852 = vmatpush2.bf16.msra.mxu0 0
        %3853 = vmatprep.mubr.bf16.mxu0 0
        %3854 = vmatmul.mubr.bf16.gmra.mxu0 %v3807
        %v3855 = vpop.f32.mrf.mxu0
        %v3856 = vadd.f32 0.0, %v3855
        %v3857 = vpop.f32.mrf.mxu0
        %v3858 = vpop.f32.mrf.mxu0
        %v3859 = vadd.f32 0.0, %v3858
        %v3860 = vpop.f32.mrf.mxu0
        %3861 = vmatprep.mubr.bf16.mxu0 0
        %3862 = vmatmul.mubr.bf16.gmra.mxu0 %v3810
        %v3863 = vpop.f32.mrf.mxu0
        %v3864 = vadd.f32 0.0, %v3863
        %v3865 = vpop.f32.mrf.mxu0
        %v3866 = vpop.f32.mrf.mxu0
        %v3867 = vadd.f32 0.0, %v3866
        %v3868 = vpop.f32.mrf.mxu0
        %3869 = vmatprep.mubr.bf16.mxu0 0
        %3870 = vmatmul.mubr.bf16.gmra.mxu0 %v3813
        %v3871 = vpop.f32.mrf.mxu0
        %v3872 = vadd.f32 0.0, %v3871
        %v3873 = vpop.f32.mrf.mxu0
        %v3874 = vpop.f32.mrf.mxu0
        %v3875 = vadd.f32 0.0, %v3874
        %v3876 = vpop.f32.mrf.mxu0
        %3877 = vmatprep.mubr.bf16.mxu0 0
        %3878 = vmatmul.mubr.bf16.gmra.mxu0 %v3816
        %v3879 = vpop.f32.mrf.mxu0
        %v3880 = vadd.f32 0.0, %v3879
        %v3881 = vpop.f32.mrf.mxu0
        %v3882 = vpop.f32.mrf.mxu0
        %v3883 = vadd.f32 0.0, %v3882
        %v3884 = vpop.f32.mrf.mxu0
        %3885 = vmatprep.mubr.bf16.mxu0 0
        %3886 = vmatmul.mubr.bf16.gmra.mxu0 %v3819
        %v3887 = vpop.f32.mrf.mxu0
        %v3888 = vadd.f32 0.0, %v3887
        %v3889 = vpop.f32.mrf.mxu0
        %v3890 = vpop.f32.mrf.mxu0
        %v3891 = vadd.f32 0.0, %v3890
        %v3892 = vpop.f32.mrf.mxu0
        %3893 = vdwg.mxu0
        %v3894 = vadd.f32 %v3772, %v3856
        %v3895 = vadd.f32 %v3773, %v3859
        %v3896 = vadd.f32 %v3774, %v3864
        %v3897 = vadd.f32 %v3775, %v3867
        %v3898 = vadd.f32 %v3776, %v3872
        %v3899 = vadd.f32 %v3777, %v3875
        %v3900 = vadd.f32 %v3778, %v3880
        %v3901 = vadd.f32 %v3779, %v3883
        %v3902 = vadd.f32 %v3780, %v3888
        %v3903 = vadd.f32 %v3781, %v3891
        %v3904 = vld [vmem:[#allocation3 + $0x16] sm:$0xff]
        %v3905 = vld [vmem:[#allocation3 + $0x1e] sm:$0xff]
        %v3906 = vld [vmem:[#allocation3 + $0x26] sm:$0xff]
        %v3907 = vld [vmem:[#allocation3 + $0x2e] sm:$0xff]
        %v3908 = vld [vmem:[#allocation3 + $0x36] sm:$0xff]
        %v3909 = vld [vmem:[#allocation3 + $0x3e] sm:$0xff]
        %v3910 = vld [vmem:[#allocation3 + $0x46] sm:$0xff]
        %v3911 = vld [vmem:[#allocation3 + $0x4e] sm:$0xff]
        %v3912 = vld [vmem:[#allocation3 + $0x56] sm:$0xff]
        %v3913 = vld [vmem:[#allocation3 + $0x5e] sm:$0xff]
        %v3914 = vpack.c.bf16 %v3905, %v3904
        %v3915 = vpack.c.bf16 %v3907, %v3906
        %v3916 = vpack.c.bf16 %v3909, %v3908
        %v3917 = vpack.c.bf16 %v3911, %v3910
        %v3918 = vpack.c.bf16 %v3913, %v3912
        %s3919 = scalar_lea.vmem %s8, 64
        %v3920 = vld [vmem:[%s3919] sm:$0xf]
        %v3921 = vld [vmem:[%s3919 + $0x4] sm:$0xf]
        %v3924 = vunpack.c.l.b16 %v3920
        %v3925 = vunpack.c.l.b16 %v3921
        %v3926 = vpack.c.b16 %v3925, %v3924
        %v3929 = vsel %vm1775, %v3914, 0
        %v3932 = vsel %vm1775, %v3915, 0
        %v3935 = vsel %vm1775, %v3916, 0
        %v3938 = vsel %vm1775, %v3917, 0
        %v3941 = vsel %vm1775, %v3918, 0
        %3943 = vmatprep.subr.bf16.mxu0 0
        %3944 = vmatpush1.bf16.msra.mxu0 0
        %3945 = vmatprep.subr.bf16.mxu0 0
        %3946 = vmatpush1.bf16.msra.mxu0 0
        %3947 = vmatprep.subr.bf16.mxu0 0
        %3948 = vmatpush1.bf16.msra.mxu0 0
        %3949 = vmatprep.subr.bf16.mxu0 0
        %3950 = vmatpush1.bf16.msra.mxu0 0
        %3951 = vmatprep.subr.bf16.mxu0 0
        %3952 = vmatpush1.bf16.msra.mxu0 0
        %3953 = vmatprep.subr.bf16.mxu0 0
        %3954 = vmatpush1.bf16.msra.mxu0 0
        %3955 = vmatprep.subr.bf16.mxu0 0
        %3956 = vmatpush1.bf16.msra.mxu0 0
        %3957 = vmatprep.subr.bf16.mxu0 0
        %3958 = vmatpush1.bf16.msra.mxu0 %v3926
        %3959 = vmatprep.subr.bf16.mxu0 0
        %3960 = vmatpush2.bf16.msra.mxu0 0
        %3961 = vmatprep.subr.bf16.mxu0 0
        %3962 = vmatpush2.bf16.msra.mxu0 0
        %3963 = vmatprep.subr.bf16.mxu0 0
        %3964 = vmatpush2.bf16.msra.mxu0 0
        %3965 = vmatprep.subr.bf16.mxu0 0
        %3966 = vmatpush2.bf16.msra.mxu0 0
        %3967 = vmatprep.subr.bf16.mxu0 0
        %3968 = vmatpush2.bf16.msra.mxu0 0
        %3969 = vmatprep.subr.bf16.mxu0 0
        %3970 = vmatpush2.bf16.msra.mxu0 0
        %3971 = vmatprep.subr.bf16.mxu0 0
        %3972 = vmatpush2.bf16.msra.mxu0 0
        %3973 = vmatprep.subr.bf16.mxu0 0
        %3974 = vmatpush2.bf16.msra.mxu0 0
        %3975 = vmatprep.mubr.bf16.mxu0 0
        %3976 = vmatmul.mubr.bf16.gmra.mxu0 %v3929
        %v3977 = vpop.f32.mrf.mxu0
        %v3978 = vadd.f32 0.0, %v3977
        %v3979 = vpop.f32.mrf.mxu0
        %v3980 = vpop.f32.mrf.mxu0
        %v3981 = vadd.f32 0.0, %v3980
        %v3982 = vpop.f32.mrf.mxu0
        %3983 = vmatprep.mubr.bf16.mxu0 0
        %3984 = vmatmul.mubr.bf16.gmra.mxu0 %v3932
        %v3985 = vpop.f32.mrf.mxu0
        %v3986 = vadd.f32 0.0, %v3985
        %v3987 = vpop.f32.mrf.mxu0
        %v3988 = vpop.f32.mrf.mxu0
        %v3989 = vadd.f32 0.0, %v3988
        %v3990 = vpop.f32.mrf.mxu0
        %3991 = vmatprep.mubr.bf16.mxu0 0
        %3992 = vmatmul.mubr.bf16.gmra.mxu0 %v3935
        %v3993 = vpop.f32.mrf.mxu0
        %v3994 = vadd.f32 0.0, %v3993
        %v3995 = vpop.f32.mrf.mxu0
        %v3996 = vpop.f32.mrf.mxu0
        %v3997 = vadd.f32 0.0, %v3996
        %v3998 = vpop.f32.mrf.mxu0
        %3999 = vmatprep.mubr.bf16.mxu0 0
        %4000 = vmatmul.mubr.bf16.gmra.mxu0 %v3938
        %v4001 = vpop.f32.mrf.mxu0
        %v4002 = vadd.f32 0.0, %v4001
        %v4003 = vpop.f32.mrf.mxu0
        %v4004 = vpop.f32.mrf.mxu0
        %v4005 = vadd.f32 0.0, %v4004
        %v4006 = vpop.f32.mrf.mxu0
        %4007 = vmatprep.mubr.bf16.mxu0 0
        %4008 = vmatmul.mubr.bf16.gmra.mxu0 %v3941
        %v4009 = vpop.f32.mrf.mxu0
        %v4010 = vadd.f32 0.0, %v4009
        %v4011 = vpop.f32.mrf.mxu0
        %v4012 = vpop.f32.mrf.mxu0
        %v4013 = vadd.f32 0.0, %v4012
        %v4014 = vpop.f32.mrf.mxu0
        %4015 = vdwg.mxu0
        %v4016 = vadd.f32 %v3894, %v3978
        %v4017 = vadd.f32 %v3895, %v3981
        %v4018 = vadd.f32 %v3896, %v3986
        %v4019 = vadd.f32 %v3897, %v3989
        %v4020 = vadd.f32 %v3898, %v3994
        %v4021 = vadd.f32 %v3899, %v3997
        %v4022 = vadd.f32 %v3900, %v4002
        %v4023 = vadd.f32 %v3901, %v4005
        %v4024 = vadd.f32 %v3902, %v4010
        %v4025 = vadd.f32 %v3903, %v4013
        %v4026 = vld [vmem:[%s9] sm:$0x1]
        %v4028 = vlaneseq
        %v4029 = vshrl.u32 %v4028, 7
        %v4030 = vsub.s32 0, %v4029
        %v4031 = vrot.slane %v4026, %v4030
        %v4033 = vadd.f32 %v4016, %v4031
        %v4034 = vadd.f32 %v4017, %v4031
        %v4035 = vadd.f32 %v4018, %v4031
        %v4036 = vadd.f32 %v4019, %v4031
        %v4037 = vadd.f32 %v4020, %v4031
        %v4038 = vadd.f32 %v4021, %v4031
        %v4039 = vadd.f32 %v4022, %v4031
        %v4040 = vadd.f32 %v4023, %v4031
        %v4041 = vadd.f32 %v4024, %v4031
        %v4042 = vadd.f32 %v4025, %v4031
        %v4043 = vmax.f32 %v4033, 0.0
        %v4044 = vmax.f32 %v4034, 0.0
        %v4045 = vmax.f32 %v4035, 0.0
        %v4046 = vmax.f32 %v4036, 0.0
        %v4047 = vmax.f32 %v4037, 0.0
        %v4048 = vmax.f32 %v4038, 0.0
        %v4049 = vmax.f32 %v4039, 0.0
        %v4050 = vmax.f32 %v4040, 0.0
        %v4051 = vmax.f32 %v4041, 0.0
        %v4052 = vmax.f32 %v4042, 0.0
        %vm4053 = vcmask 261120
        %4054 = vst.msk [vmem:[#allocation4] sm:$0xff] %vm4053, 0.0
        %4055 = vst.msk [vmem:[#allocation4 + $0x8] sm:$0xff] %vm4053, 0.0
        %4056 = vst.msk [vmem:[#allocation4 + $0x10] sm:$0xff] %vm4053, 0.0
        %4057 = vst.msk [vmem:[#allocation4 + $0x18] sm:$0xff] %vm4053, 0.0
        %4058 = vst.msk [vmem:[#allocation4 + $0x20] sm:$0xff] %vm4053, 0.0
        %4059 = vst.msk [vmem:[#allocation4 + $0x28] sm:$0xff] %vm4053, 0.0
        %4060 = vst.msk [vmem:[#allocation4 + $0x30] sm:$0xff] %vm4053, 0.0
        %4061 = vst.msk [vmem:[#allocation4 + $0x38] sm:$0xff] %vm4053, 0.0
        %4062 = vst.msk [vmem:[#allocation4 + $0x40] sm:$0xff] %vm4053, 0.0
        %4063 = vst.msk [vmem:[#allocation4 + $0x48] sm:$0xff] %vm4053, 0.0
        %4064 = vst.msk [vmem:[#allocation4 + $0x50] sm:$0xff] %vm4053, 0.0
        %4065 = vst.msk [vmem:[#allocation4 + $0x58] sm:$0xff] %vm4053, 0.0
        %4066 = vst.msk [vmem:[#allocation4 + $0x60] sm:$0xff] %vm4053, 0.0
        %4067 = vst.msk [vmem:[#allocation4 + $0xb] sm:$0xff] %vm4053, %v4043
        %vm4068 = vcmask 261122
        %4069 = vst.msk [vmem:[#allocation4 + $0x13] sm:$0xfc] %vm4068, %v4044
        %vm4070 = vcmask 254976
        %4071 = vst.msk [vmem:[#allocation4 + $0x1b] sm:$0x3] %vm4070, %v4045
        %vm4072 = vcmask 261124
        %4073 = vst.msk [vmem:[#allocation4 + $0x1b] sm:$0xf0] %vm4072, %v4045
        %vm4074 = vcmask 257024
        %4075 = vst.msk [vmem:[#allocation4 + $0x23] sm:$0xf] %vm4074, %v4046
        %vm4076 = vcmask 261126
        %4077 = vst.msk [vmem:[#allocation4 + $0x23] sm:$0xc0] %vm4076, %v4046
        %vm4078 = vcmask 259072
        %4079 = vst.msk [vmem:[#allocation4 + $0x2b] sm:$0x3f] %vm4078, %v4047
        %4080 = vst.msk [vmem:[#allocation4 + $0x33] sm:$0xff] %vm4053, %v4048
        %4081 = vst.msk [vmem:[#allocation4 + $0x3b] sm:$0xfc] %vm4068, %v4049
        %4082 = vst.msk [vmem:[#allocation4 + $0x43] sm:$0x3] %vm4070, %v4050
        %4083 = vst.msk [vmem:[#allocation4 + $0x43] sm:$0xf0] %vm4072, %v4050
        %4084 = vst.msk [vmem:[#allocation4 + $0x4b] sm:$0xf] %vm4074, %v4051
        %4085 = vst.msk [vmem:[#allocation4 + $0x4b] sm:$0xc0] %vm4076, %v4051
        %4086 = vst.msk [vmem:[#allocation4 + $0x53] sm:$0x3f] %vm4078, %v4052
        %v4087 = vld [vmem:[#allocation4] sm:$0xff]
        %v4088 = vld [vmem:[#allocation4 + $0x8] sm:$0xff]
        %v4089 = vld [vmem:[#allocation4 + $0x10] sm:$0xff]
        %v4090 = vld [vmem:[#allocation4 + $0x18] sm:$0xff]
        %v4091 = vld [vmem:[#allocation4 + $0x20] sm:$0xff]
        %v4092 = vld [vmem:[#allocation4 + $0x28] sm:$0xff]
        %v4093 = vld [vmem:[#allocation4 + $0x30] sm:$0xff]
        %v4094 = vld [vmem:[#allocation4 + $0x38] sm:$0xff]
        %v4095 = vld [vmem:[#allocation4 + $0x40] sm:$0xff]
        %v4096 = vld [vmem:[#allocation4 + $0x48] sm:$0xff]
        %v4097 = vld [vmem:[#allocation4 + $0x50] sm:$0xff]
        %v4098 = vld [vmem:[#allocation4 + $0x58] sm:$0xff]
        %v4099 = vld [vmem:[#allocation4 + $0x1] sm:$0xff]
        %v4100 = vld [vmem:[#allocation4 + $0x9] sm:$0xff]
        %v4101 = vld [vmem:[#allocation4 + $0x11] sm:$0xff]
        %v4102 = vld [vmem:[#allocation4 + $0x19] sm:$0xff]
        %v4103 = vld [vmem:[#allocation4 + $0x21] sm:$0xff]
        %v4104 = vld [vmem:[#allocation4 + $0x29] sm:$0xff]
        %v4105 = vld [vmem:[#allocation4 + $0x31] sm:$0xff]
        %v4106 = vld [vmem:[#allocation4 + $0x39] sm:$0xff]
        %v4107 = vld [vmem:[#allocation4 + $0x41] sm:$0xff]
        %v4108 = vld [vmem:[#allocation4 + $0x49] sm:$0xff]
        %v4109 = vld [vmem:[#allocation4 + $0x51] sm:$0xff]
        %v4110 = vld [vmem:[#allocation4 + $0x59] sm:$0xff]
        %v4111 = vmax.f32 %v4087, %v4099
        %v4112 = vmax.f32 %v4088, %v4100
        %v4113 = vmax.f32 %v4089, %v4101
        %v4114 = vmax.f32 %v4090, %v4102
        %v4115 = vmax.f32 %v4091, %v4103
        %v4116 = vmax.f32 %v4092, %v4104
        %v4117 = vmax.f32 %v4093, %v4105
        %v4118 = vmax.f32 %v4094, %v4106
        %v4119 = vmax.f32 %v4095, %v4107
        %v4120 = vmax.f32 %v4096, %v4108
        %v4121 = vmax.f32 %v4097, %v4109
        %v4122 = vmax.f32 %v4098, %v4110
        %v4123 = vld [vmem:[#allocation4 + $0x2] sm:$0xff]
        %v4124 = vld [vmem:[#allocation4 + $0xa] sm:$0xff]
        %v4125 = vld [vmem:[#allocation4 + $0x12] sm:$0xff]
        %v4126 = vld [vmem:[#allocation4 + $0x1a] sm:$0xff]
        %v4127 = vld [vmem:[#allocation4 + $0x22] sm:$0xff]
        %v4128 = vld [vmem:[#allocation4 + $0x2a] sm:$0xff]
        %v4129 = vld [vmem:[#allocation4 + $0x32] sm:$0xff]
        %v4130 = vld [vmem:[#allocation4 + $0x3a] sm:$0xff]
        %v4131 = vld [vmem:[#allocation4 + $0x42] sm:$0xff]
        %v4132 = vld [vmem:[#allocation4 + $0x4a] sm:$0xff]
        %v4133 = vld [vmem:[#allocation4 + $0x52] sm:$0xff]
        %v4134 = vld [vmem:[#allocation4 + $0x5a] sm:$0xff]
        %v4135 = vmax.f32 %v4111, %v4123
        %v4136 = vmax.f32 %v4112, %v4124
        %v4137 = vmax.f32 %v4113, %v4125
        %v4138 = vmax.f32 %v4114, %v4126
        %v4139 = vmax.f32 %v4115, %v4127
        %v4140 = vmax.f32 %v4116, %v4128
        %v4141 = vmax.f32 %v4117, %v4129
        %v4142 = vmax.f32 %v4118, %v4130
        %v4143 = vmax.f32 %v4119, %v4131
        %v4144 = vmax.f32 %v4120, %v4132
        %v4145 = vmax.f32 %v4121, %v4133
        %v4146 = vmax.f32 %v4122, %v4134
        %vm4157 = vcmask 1045504
        %v4158 = vrot.slane %v4136, 2
        %v4159 = vrot.slane %v4137, 2
        %v4160 = vsel %vm4157, %v4158, %v4159
        %v4161 = vrot.slane %v4138, 2
        %v4162 = vsel %vm4157, %v4159, %v4161
        %v4163 = vrot.slane %v4139, 2
        %v4164 = vsel %vm4157, %v4161, %v4163
        %v4165 = vrot.slane %v4140, 2
        %v4166 = vsel %vm4157, %v4163, %v4165
        %v4167 = vrot.slane %v4141, 2
        %v4168 = vsel %vm4157, %v4165, %v4167
        %v4169 = vrot.slane %v4142, 2
        %v4170 = vsel %vm4157, %v4167, %v4169
        %v4171 = vrot.slane %v4143, 2
        %v4172 = vsel %vm4157, %v4169, %v4171
        %v4173 = vrot.slane %v4144, 2
        %v4174 = vsel %vm4157, %v4171, %v4173
        %v4175 = vrot.slane %v4145, 2
        %v4176 = vsel %vm4157, %v4173, %v4175
        %v4186 = vmax.f32 %v4135, %v4160
        %v4187 = vmax.f32 %v4136, %v4162
        %v4188 = vmax.f32 %v4137, %v4164
        %v4189 = vmax.f32 %v4138, %v4166
        %v4190 = vmax.f32 %v4139, %v4168
        %v4191 = vmax.f32 %v4140, %v4170
        %v4192 = vmax.f32 %v4141, %v4172
        %v4193 = vmax.f32 %v4142, %v4174
        %v4194 = vmax.f32 %v4143, %v4176
        %vm4196 = vcmask 1043456
        %v4197 = vrot.slane %v4137, 4
        %v4198 = vrot.slane %v4138, 4
        %v4199 = vsel %vm4196, %v4197, %v4198
        %v4200 = vrot.slane %v4139, 4
        %v4201 = vsel %vm4196, %v4198, %v4200
        %v4202 = vrot.slane %v4140, 4
        %v4203 = vsel %vm4196, %v4200, %v4202
        %v4204 = vrot.slane %v4141, 4
        %v4205 = vsel %vm4196, %v4202, %v4204
        %v4206 = vrot.slane %v4142, 4
        %v4207 = vsel %vm4196, %v4204, %v4206
        %v4208 = vrot.slane %v4143, 4
        %v4209 = vsel %vm4196, %v4206, %v4208
        %v4210 = vrot.slane %v4144, 4
        %v4211 = vsel %vm4196, %v4208, %v4210
        %v4212 = vrot.slane %v4145, 4
        %v4213 = vsel %vm4196, %v4210, %v4212
        %v4214 = vrot.slane %v4146, 4
        %v4215 = vsel %vm4196, %v4212, %v4214
        %v4225 = vmax.f32 %v4186, %v4199
        %v4226 = vmax.f32 %v4187, %v4201
        %v4227 = vmax.f32 %v4188, %v4203
        %v4228 = vmax.f32 %v4189, %v4205
        %v4229 = vmax.f32 %v4190, %v4207
        %v4230 = vmax.f32 %v4191, %v4209
        %v4231 = vmax.f32 %v4192, %v4211
        %v4232 = vmax.f32 %v4193, %v4213
        %v4233 = vmax.f32 %v4194, %v4215
        %4234 = vst.msk [vmem:[#allocation5] sm:$0xff] %vm4053, %v4225
        %4235 = vst.msk [vmem:[#allocation5 + $0x8] sm:$0xff] %vm4053, %v4226
        %4236 = vst.msk [vmem:[#allocation5 + $0x10] sm:$0xff] %vm4053, %v4227
        %4237 = vst.msk [vmem:[#allocation5 + $0x18] sm:$0xff] %vm4053, %v4228
        %4238 = vst.msk [vmem:[#allocation5 + $0x20] sm:$0xff] %vm4053, %v4229
        %4239 = vst.msk [vmem:[#allocation5 + $0x28] sm:$0xff] %vm4053, %v4230
        %4240 = vst.msk [vmem:[#allocation5 + $0x30] sm:$0xff] %vm4053, %v4231
        %4241 = vst.msk [vmem:[#allocation5 + $0x38] sm:$0xff] %vm4053, %v4232
        %4242 = vst.msk [vmem:[#allocation5 + $0x40] sm:$0xff] %vm4053, %v4233
        %v4243 = vld [vmem:[#allocation5] ss:$2 sm:$0xf]
        %4244 = vst.msk [vmem:[%s397] sm:$0xf] %vm4074, %v4243
        %s4245 = scalar_lea.vmem [#allocation5], 20
        %v4246 = vld [vmem:[%s4245] ss:$2 sm:$0xf]
        %s4247 = scalar_lea.vmem %s397, 4 [#allocation6]
        %4248 = vst.msk [vmem:[%s4247] sm:$0xf] %vm4074, %v4246
        %s4249 = scalar_lea.vmem [#allocation5], 40
        %v4250 = vld [vmem:[%s4249] ss:$2 sm:$0xf]
        %s4251 = scalar_lea.vmem %s397, 8 [#allocation6]
        %4252 = vst.msk [vmem:[%s4251] sm:$0xf] %vm4074, %v4250
        %s4253 = scalar_lea.vmem [#allocation5], 60
        %v4254 = vld [vmem:[%s4253] ss:$2 sm:$0xf]
        %s4255 = scalar_lea.vmem %s397, 12 [#allocation6]
        %4256 = vst.msk [vmem:[%s4255] sm:$0xf] %vm4074, %v4254
        %s4257 = sand.u32 %s262, 1
        %s4258 = scalar_lea.sflag [#allocation7], %s4257
        %s4259 = sand.u32 %s262, 1
        %s4260 = smul.addr %s4259, 16
        %s4261 = scalar_lea.vmem [#allocation6], %s4260
        // Predicated region
        $region61: #{se_init_block.1} parent=59 // pred_check
          %p4262 = pneg %p272
        $region62: #{se_init_block.1} parent=59 // pred_check_branch
          %4264 = sbr.rel (%p4262) target = $region64
        $region63: #{se_init_block.1} parent=59 // pred_region
          %s4266 = ssub.s32 256, 256
          %4267 = vsyncadd %s4258, %s4266
          %s4268 = smul.addr %s24, 4
          %s4269 = smul.addr %s4268, 64
          %s4270 = scalar_lea.hbm %s10, %s4269
          %s4271 = sshll.u32 %s4261, 4
          %s4272 = int_to_ptr.vmem [resolvable:$true] %s4271
          %4277 = dma.vmem_to_hbm [thread:$0]  %s4272, 256, %s4270, %s4258, 64, 64, 4
        $region64: #{se_init_block.1} parent=59 // pred_fallthru
          _
      $region60: #{se_init_block.1} parent=5 // pred_fallthru
        _
      %p4278 = scmp.le.s32.totalorder 2, %s19
      // Predicated region
      $region65: #{se_init_block.1} parent=5 // pred_check
        %p4279 = pneg %p4278
      $region66: #{se_init_block.1} parent=5 // pred_check_branch
        %4281 = sbr.rel (%p4279) target = $region68
      $region67: #{se_init_block.1} parent=5 // pred_region
        %s4282 = ssub.s32 %s19, 2
        // Predicated region
        $region69: #{se_init_block.1} parent=67 // pred_check
          %p4283 = pneg %p278
        $region70: #{se_init_block.1} parent=67 // pred_check_branch
          %4285 = sbr.rel (%p4283) target = $region72
        $region71: #{se_init_block.1} parent=67 // pred_region
          %s4286 = sand.u32 %s263, 1
          %s4287 = scalar_lea.sflag [#allocation7], %s4286
          %s4288 = sand.u32 %s263, 1
          %s4289 = smul.addr %s4288, 16
          %s4290 = scalar_lea.vmem [#allocation6], %s4289
          %4291 = dma.done %s4287, 256
        $region72: #{se_init_block.1} parent=67 // pred_fallthru
          _
      $region68: #{se_init_block.1} parent=5 // pred_fallthru
        _
    $region6: #{se_init_block.1} parent=1 // loop_footer
      %s23 = sadd.s32 1, %s19
    $region7: #{se_init_block.1} parent=1 // loop_footer_branch
      %18 = sbr.rel target = $region3
    $region8: #{se_init_block.1} parent=1 // loop_exit
      _
    %4292 = vsyncpa [#allocation7], 1
    %s4293 = scalar_lea.sflag [#allocation7], 1
    %4294 = vsyncpa %s4293, 1

</llo_original>
